<compile_context>
chip_gen: v5e
topology: v5e:2x2
jax: 0.10.0
libtpu: 0.0.40
codegen_flags: <defaults>
</compile_context>

<pallas_src>
import functools
import math

import jax
import jax.numpy as jnp
from jax.experimental import pallas as pl
from jax.experimental.pallas import tpu as pltpu


# ------------------------------- helpers ------------------------------------

def _layernorm(x, g, b, eps=1e-6):
    # iBOT / timm ViT uses eps=1e-6 (torch.nn.LayerNorm default is 1e-5).
    mu = jnp.mean(x, axis=-1, keepdims=True)
    var = jnp.mean((x - mu) ** 2, axis=-1, keepdims=True)
    return (x - mu) * jax.lax.rsqrt(var + eps) * g + b


def _pick_tile(m, target=256):
    for t in (target, 128, 64, 32, 16, 8):
        if t <= m and m % t == 0:
            return t
    return m


def _vmem_limit_bytes():
    """Generation-aware VMEM budget: headroom on v7x (64 MiB physical),
    larger budget on v5e/v6e (128 MiB physical)."""
    cap = 128 * 1024 * 1024
    try:
        cap = int(pltpu.get_tpu_info().vmem_capacity_bytes)
    except Exception:
        pass
    return int(max(32 * 1024 * 1024,
                   min(cap - 16 * 1024 * 1024, 100 * 1024 * 1024)))


# ----------------------------- Pallas kernels -------------------------------

def matmul_bias_kernel(x_ref, w_ref, b_ref, o_ref):
    """o = x @ w + b  (patch embedding).  bf16 operands, f32 accumulation,
    bf16 output so the token slab round-trips HBM at half width."""
    o_ref[...] = (jnp.dot(x_ref[...], w_ref[...],
                          preferred_element_type=jnp.float32)
                  + b_ref[...]).astype(o_ref.dtype)


def vit_stack_kernel(num_heads, head_dim, n_real, B, Np,
                     tok_ref, ln1_g, ln1_b, wqkv_r, bqkv_r, wo_r, bo_r,
                     ln2_g, ln2_b, w1_r, b1_r, w2_r, b2_r,
                     lnf_g, lnf_b, headw_r, headb_r,
                     o_ref, state, ctx):
    """Whole pre-norm transformer stack + fused final LayerNorm/head.

    grid = (depth,).  The full (B*Np, D) residual stream lives in an f32 VMEM
    scratch across all layers, so per-layer weights are DMA'd from HBM exactly
    once per forward while the BlockSpec pipeline prefetches layer l+1 weights
    behind layer l compute.  Only the (B, num_out_padded) logits leave VMEM.
    """
    l = pl.program_id(0)
    M, D = state.shape                                     # M = B * Np

    @pl.when(l == 0)
    def _():
        state[...] = tok_ref[...].astype(jnp.float32)

    x = state[...]                                         # (M, D) f32

    # Additive mask for padded key columns (sequence padded to a multiple of 8).
    neg_mask = None
    if n_real < Np:
        neg_mask = jnp.where(
            jax.lax.broadcasted_iota(jnp.int32, (1, Np), 1) < n_real,
            0.0, -1e30).astype(jnp.float32)

    # --- multi-head self-attention (fused QKV, single output projection) ----
    h1 = _layernorm(x, ln1_g[...], ln1_b[...]).astype(jnp.bfloat16)
    qkv = (jnp.dot(h1, wqkv_r[...], preferred_element_type=jnp.float32)
           + bqkv_r[...])                                  # (M, 3D) f32
    scale = 1.0 / math.sqrt(head_dim)
    q = (qkv[:, :D] * scale).astype(jnp.bfloat16)          # fold scale once
    k = qkv[:, D:2 * D].astype(jnp.bfloat16)
    v = qkv[:, 2 * D:].astype(jnp.bfloat16)

    # Group heads so context stores are lane-dense (>= 128 lanes per store).
    gsize = max(1, 128 // head_dim) if head_dim < 128 else 1
    while num_heads % gsize:
        gsize -= 1
    gwidth = gsize * head_dim

    # TODO(synk): at real ViT-B sizes (B*Np large, 12 heads) switch this static
    # unroll to lax.fori_loop(..., unroll=True) over head groups / query tiles
    # to bound f32 score-tile live ranges within the 64-vreg file.
    for b in range(B):
        r0 = b * Np                                        # multiple of 8
        for g in range(num_heads // gsize):
            glo = g * gwidth
            outs = []
            for hh in range(gsize):
                lo = glo + hh * head_dim
                qh = q[r0:r0 + Np, lo:lo + head_dim]
                kh = k[r0:r0 + Np, lo:lo + head_dim]
                vh = v[r0:r0 + Np, lo:lo + head_dim]
                # q @ k^T without materializing a transpose
                s = jax.lax.dot_general(qh, kh, (((1,), (1,)), ((), ())),
                                        preferred_element_type=jnp.float32)
                if neg_mask is not None:
                    s = s + neg_mask
                m = jnp.max(s, axis=-1, keepdims=True)
                p = jnp.exp(s - m)
                denom = jnp.sum(p, axis=-1, keepdims=True)
                oh = jnp.dot(p.astype(jnp.bfloat16), vh,
                             preferred_element_type=jnp.float32)
                outs.append((oh * pl.reciprocal(denom, approx=True)
                             ).astype(jnp.bfloat16))
            slab = outs[0] if gsize == 1 else jnp.concatenate(outs, axis=-1)
            ctx[r0:r0 + Np, glo:glo + gwidth] = slab       # lane-dense store

    # One full-K (M, D) @ (D, D) projection instead of per-head K=64 matmuls.
    x = x + jnp.dot(ctx[...], wo_r[...],
                    preferred_element_type=jnp.float32) + bo_r[...]

    # --- MLP -----------------------------------------------------------------
    # TODO(synk): for ViT-L on v7x, tile w1/w2 along the MLP dim (inner grid
    # axis or pltpu.emit_pipeline) so double-buffered weights fit 64 MiB VMEM.
    h2 = _layernorm(x, ln2_g[...], ln2_b[...]).astype(jnp.bfloat16)
    m1 = (jnp.dot(h2, w1_r[...], preferred_element_type=jnp.float32)
          + b1_r[...])
    # TODO(synk): PyTorch nn.GELU defaults to exact erf; tanh approx used here.
    m1 = jax.nn.gelu(m1, approximate=True)
    x = x + jnp.dot(m1.astype(jnp.bfloat16), w2_r[...],
                    preferred_element_type=jnp.float32) + b2_r[...]

    state[...] = x

    # --- fused final LayerNorm + classification head on the CLS rows --------
    @pl.when(l == pl.num_programs(0) - 1)
    def _():
        cls = jnp.concatenate(
            [x[b * Np:b * Np + 1, :] for b in range(B)], axis=0)   # (B, D)
        hc = _layernorm(cls, lnf_g[...], lnf_b[...])
        o_ref[...] = (jnp.dot(hc.astype(jnp.bfloat16), headw_r[...],
                              preferred_element_type=jnp.float32)
                      + headb_r[...]).astype(o_ref.dtype)


# ------------------------------ wrappers ------------------------------------

def matmul_bias(x, w, b):
    """M-tiled x @ w + b with the (K, N) weight resident across the grid.
    bf16 output."""
    M, K = x.shape
    N = w.shape[1]
    tm = _pick_tile(M)
    return pl.pallas_call(
        matmul_bias_kernel,
        grid=(M // tm,),
        in_specs=[pl.BlockSpec((tm, K), lambda i: (i, 0)),
                  pl.BlockSpec((K, N), lambda i: (0, 0)),
                  pl.BlockSpec((1, N), lambda i: (0, 0))],
        out_specs=pl.BlockSpec((tm, N), lambda i: (i, 0)),
        out_shape=jax.ShapeDtypeStruct((M, N), jnp.bfloat16),
        compiler_params=pltpu.CompilerParams(
            dimension_semantics=("parallel",)),
    )(x, w, b)


def vit_stack(tok, p, num_heads, head_dim, n_real, B):
    """All transformer blocks + final LN + head in one pallas_call, grid=(depth,).

    Tokens for the whole batch stay resident in VMEM, so each layer's weights
    are streamed from HBM once per forward and prefetched behind compute."""
    M, D = tok.shape
    Np = M // B
    depth = p["wqkv"].shape[0]
    Dh = p["w1"].shape[2]
    NOp = p["head_w"].shape[1]

    wspec = lambda r, c: pl.BlockSpec((None, r, c), lambda l: (l, 0, 0))
    cspec = lambda r, c: pl.BlockSpec((r, c), lambda l: (0, 0))   # resident

    kernel = functools.partial(vit_stack_kernel, num_heads, head_dim,
                               n_real, B, Np)
    return pl.pallas_call(
        kernel,
        grid=(depth,),
        in_specs=[cspec(M, D),                              # tokens (bf16)
                  wspec(1, D), wspec(1, D),                 # ln1
                  wspec(D, 3 * D), wspec(1, 3 * D),         # fused qkv
                  wspec(D, D), wspec(1, D),                 # out proj
                  wspec(1, D), wspec(1, D),                 # ln2
                  wspec(D, Dh), wspec(1, Dh),               # fc1
                  wspec(Dh, D), wspec(1, D),                # fc2
                  cspec(1, D), cspec(1, D),                 # final LN
                  cspec(D, NOp), cspec(1, NOp)],            # head
        out_specs=pl.BlockSpec((B, NOp), lambda l: (0, 0)),
        out_shape=jax.ShapeDtypeStruct((B, NOp), jnp.float32),
        scratch_shapes=[pltpu.VMEM((M, D), jnp.float32),    # residual stream
                        pltpu.VMEM((M, D), jnp.bfloat16)],  # attn context
        compiler_params=pltpu.CompilerParams(
            dimension_semantics=("arbitrary",),
            vmem_limit_bytes=_vmem_limit_bytes()),
    )(tok,
      p["ln1_g"], p["ln1_b"], p["wqkv"], p["bqkv"], p["wo"], p["bo"],
      p["ln2_g"], p["ln2_b"], p["w1"], p["b1"], p["w2"], p["b2"],
      p["lnf_g"], p["lnf_b"], p["head_w"], p["head_b"])


def ibot_forward(p, x, *, patch_size, num_heads, head_dim, num_outputs):
    B, C, H, W = x.shape
    ph = pw = patch_size
    gh, gw = H // ph, W // pw
    D = p["patch_w"].shape[1]

    # conv-as-matmul patch extraction (NCHW, (C, ph, pw)-ordered flattening —
    # identical to flattening a Conv2d patch-embed weight (D, C, ph, pw)).
    patches = (x.reshape(B, C, gh, ph, gw, pw)
                 .transpose(0, 2, 4, 1, 3, 5)
                 .reshape(B * gh * gw, C * ph * pw)).astype(jnp.bfloat16)
    M = patches.shape[0]
    Mp = ((M + 7) // 8) * 8
    if Mp != M:
        patches = jnp.pad(patches, ((0, Mp - M), (0, 0)))
    tok = matmul_bias(patches, p["patch_w"], p["patch_b"])[:M]    # bf16
    tok = tok.reshape(B, gh * gw, D)

    cls = jnp.broadcast_to(p["cls"], (B, 1, D)).astype(jnp.bfloat16)
    tok = (jnp.concatenate([cls, tok], axis=1).astype(jnp.float32)
           + p["pos"]).astype(jnp.bfloat16)                       # (B, N, D)
    n_real = tok.shape[1]
    n_pad = ((n_real + 7) // 8) * 8
    if n_pad != n_real:
        tok = jnp.pad(tok, ((0, 0), (0, n_pad - n_real), (0, 0)))
    tok = tok.reshape(B * n_pad, D)                               # bf16 slab

    logits = vit_stack(tok, p, num_heads, head_dim, n_real, B)    # (B, NOp)
    return logits[:, :num_outputs]                                # drop lane pad


# --------------------------- parameter handling ------------------------------

def init_params(key, *, patch_dim, dim, depth, mlp_dim, num_tokens, num_outputs):
    keys = iter(jax.random.split(key, 8 + 8 * depth))
    nrm = lambda shape, std=0.02: jax.random.normal(next(keys), shape,
                                                    jnp.float32) * std
    params = {
        "patch_w": nrm((patch_dim, dim)),
        "patch_b": jnp.zeros((dim,), jnp.float32),
        "cls": nrm((1, 1, dim)),
        "pos": nrm((1, num_tokens, dim)),
        "lnf_g": jnp.ones((dim,), jnp.float32),
        "lnf_b": jnp.zeros((dim,), jnp.float32),
        # nn.init.trunc_normal_(std=2e-5) is effectively a normal at this std.
        "head_w": nrm((dim, num_outputs), std=2e-5),
        "head_b": jnp.zeros((num_outputs,), jnp.float32),
        "blocks": [],
    }
    for _ in range(depth):
        params["blocks"].append({
            "ln1_g": jnp.ones((dim,), jnp.float32),
            "ln1_b": jnp.zeros((dim,), jnp.float32),
            "wq": nrm((dim, dim)), "bq": jnp.zeros((dim,), jnp.float32),
            "wk": nrm((dim, dim)), "bk": jnp.zeros((dim,), jnp.float32),
            "wv": nrm((dim, dim)), "bv": jnp.zeros((dim,), jnp.float32),
            "wo": nrm((dim, dim)), "bo": jnp.zeros((dim,), jnp.float32),
            "ln2_g": jnp.ones((dim,), jnp.float32),
            "ln2_b": jnp.zeros((dim,), jnp.float32),
            "w1": nrm((dim, mlp_dim)), "b1": jnp.zeros((mlp_dim,), jnp.float32),
            "w2": nrm((mlp_dim, dim)), "b2": jnp.zeros((dim,), jnp.float32),
        })
    return params


def pack_params(params):
    """Stack per-layer weights to (depth, ...), cast matmul weights to bf16,
    pre-fuse QKV, reshape biases to (depth, 1, dim), pad the head to 128 lanes.
    Done once outside jit."""
    bf = lambda a: a.astype(jnp.bfloat16)
    blocks = params["blocks"]
    stack = lambda name: jnp.stack([blk[name] for blk in blocks])
    row = lambda name: stack(name)[:, None, :]                # (L, 1, dim) f32

    num_out = params["head_w"].shape[1]
    no_pad = ((num_out + 127) // 128) * 128

    return {
        "patch_w": bf(params["patch_w"]),
        "patch_b": params["patch_b"].reshape(1, -1),
        "cls": params["cls"],
        "pos": params["pos"],
        "lnf_g": params["lnf_g"].reshape(1, -1),
        "lnf_b": params["lnf_b"].reshape(1, -1),
        "head_w": bf(jnp.pad(params["head_w"],
                             ((0, 0), (0, no_pad - num_out)))),
        "head_b": jnp.pad(params["head_b"],
                          (0, no_pad - num_out)).reshape(1, -1),
        "ln1_g": row("ln1_g"), "ln1_b": row("ln1_b"),
        "wqkv": bf(jnp.stack([jnp.concatenate(
            [blk["wq"], blk["wk"], blk["wv"]], axis=1) for blk in blocks])),
        "bqkv": jnp.stack([jnp.concatenate(
            [blk["bq"], blk["bk"], blk["bv"]]) for blk in blocks])[:, None, :],
        "wo": bf(stack("wo")), "bo": row("bo"),
        "ln2_g": row("ln2_g"), "ln2_b": row("ln2_b"),
        "w1": bf(stack("w1")), "b1": row("b1"),
        "w2": bf(stack("w2")), "b2": row("b2"),
    }


# --------------------------------- main --------------------------------------

if __name__ == "__main__":
    B, C, H, W = 2, 3, 32, 32            # small stand-in for (3, 224, 224)
    PATCH = 8
    DIM = 128                            # lane-aligned hidden dim
    DEPTH = 2
    HEADS = 2
    HEAD_DIM = DIM // HEADS
    MLP = 4 * DIM
    NUM_OUT = 10
    NUM_TOKENS = (H // PATCH) * (W // PATCH) + 1

    key = jax.random.PRNGKey(0)
    k_params, k_x = jax.random.split(key)
    params = init_params(k_params, patch_dim=C * PATCH * PATCH, dim=DIM,
                         depth=DEPTH, mlp_dim=MLP, num_tokens=NUM_TOKENS,
                         num_outputs=NUM_OUT)
    packed = pack_params(params)
    x = jax.random.normal(k_x, (B, C, H, W), jnp.float32)

    fwd = jax.jit(functools.partial(ibot_forward, patch_size=PATCH,
                                    num_heads=HEADS, head_dim=HEAD_DIM,
                                    num_outputs=NUM_OUT))
    out = fwd(packed, x)
    jax.block_until_ready(out)
    assert out.shape == (B, NUM_OUT), out.shape
    print("KERNEL_OK")
</pallas_src>

<mosaic_0001>
module attributes {stable_mosaic.version = 11 : i64} {
  func.func @matmul_bias_kernel(%arg0: i32, %arg1: memref<32x192xbf16, #tpu.memory_space<vmem>>, %arg2: memref<192x128xbf16, #tpu.memory_space<vmem>>, %arg3: memref<1x128xf32, #tpu.memory_space<vmem>>, %arg4: memref<32x128xbf16, #tpu.memory_space<vmem>>) attributes {dimension_semantics = [#tpu.dimension_semantics<parallel>], iteration_bounds = array<i64: 1>, scalar_prefetch = 0 : i64, scratch_operands = 0 : i64, tpu.core_type = #tpu.core_type<tc>, window_params = [{transform_indices = @transform_0, window_bounds = array<i64: 32, 192>}, {pipeline_mode = #tpu.pipeline_mode<synchronous>, transform_indices = @transform_1, window_bounds = array<i64: 192, 128>}, {pipeline_mode = #tpu.pipeline_mode<synchronous>, transform_indices = @transform_2, window_bounds = array<i64: 1, 128>}, {transform_indices = @transform_3, window_bounds = array<i64: 32, 128>}]} {
    %c0 = arith.constant 0 : index
    %c0_0 = arith.constant 0 : index
    %0 = vector.load %arg1[%c0, %c0_0] : memref<32x192xbf16, #tpu.memory_space<vmem>>, vector<32x192xbf16>
    %c0_1 = arith.constant 0 : index
    %c0_2 = arith.constant 0 : index
    %1 = vector.load %arg2[%c0_1, %c0_2] : memref<192x128xbf16, #tpu.memory_space<vmem>>, vector<192x128xbf16>
    %cst = arith.constant dense<0.000000e+00> : vector<32x128xf32>
    %2 = tpu.matmul %0, %1, %cst {dimension_numbers = #tpu.dot_dimension_numbers<[1], [0], [0], [1], [0, 0, 1, 1], [], []>} : vector<32x192xbf16>, vector<192x128xbf16>, vector<32x128xf32> -> vector<32x128xf32>
    %c0_3 = arith.constant 0 : index
    %c0_4 = arith.constant 0 : index
    %3 = vector.load %arg3[%c0_3, %c0_4] : memref<1x128xf32, #tpu.memory_space<vmem>>, vector<1x128xf32>
    %4 = vector.broadcast %3 : vector<1x128xf32> to vector<32x128xf32>
    %5 = arith.addf %2, %4 : vector<32x128xf32>
    %6 = arith.truncf %5 : vector<32x128xf32> to vector<32x128xbf16>
    %c0_5 = arith.constant 0 : index
    %c0_6 = arith.constant 0 : index
    %7 = vector.load %arg4[%c0_5, %c0_6] : memref<32x128xbf16, #tpu.memory_space<vmem>>, vector<32x128xbf16>
    tpu.vector_store %arg4[%c0_5, %c0_6], %6 {strides = array<i32>} : memref<32x128xbf16, #tpu.memory_space<vmem>>, vector<32x128xbf16>,
    return
  }
  func.func @transform_0(%arg0: i32) -> (i32, i32) {
    %c0_i32 = arith.constant 0 : i32
    %c0_i32_0 = arith.constant 0 : i32
    return %arg0, %c0_i32 : i32, i32
  }
  func.func @transform_1(%arg0: i32) -> (i32, i32) {
    %c0_i32 = arith.constant 0 : i32
    %c0_i32_0 = arith.constant 0 : i32
    %c0_i32_1 = arith.constant 0 : i32
    return %c0_i32, %c0_i32_0 : i32, i32
  }
  func.func @transform_2(%arg0: i32) -> (i32, i32) {
    %c0_i32 = arith.constant 0 : i32
    %c0_i32_0 = arith.constant 0 : i32
    %c0_i32_1 = arith.constant 0 : i32
    return %c0_i32, %c0_i32_0 : i32, i32
  }
  func.func @transform_3(%arg0: i32) -> (i32, i32) {
    %c0_i32 = arith.constant 0 : i32
    %c0_i32_0 = arith.constant 0 : i32
    return %arg0, %c0_i32 : i32, i32
  }
}

module attributes {stable_mosaic.version = 11 : i64} {
  func.func @vit_stack_kernel(%arg0: i32, %arg1: memref<48x128xbf16, #tpu.memory_space<vmem>>, %arg2: memref<1x1x128xf32, #tpu.memory_space<vmem>>, %arg3: memref<1x1x128xf32, #tpu.memory_space<vmem>>, %arg4: memref<1x128x384xbf16, #tpu.memory_space<vmem>>, %arg5: memref<1x1x384xf32, #tpu.memory_space<vmem>>, %arg6: memref<1x128x128xbf16, #tpu.memory_space<vmem>>, %arg7: memref<1x1x128xf32, #tpu.memory_space<vmem>>, %arg8: memref<1x1x128xf32, #tpu.memory_space<vmem>>, %arg9: memref<1x1x128xf32, #tpu.memory_space<vmem>>, %arg10: memref<1x128x512xbf16, #tpu.memory_space<vmem>>, %arg11: memref<1x1x512xf32, #tpu.memory_space<vmem>>, %arg12: memref<1x512x128xbf16, #tpu.memory_space<vmem>>, %arg13: memref<1x1x128xf32, #tpu.memory_space<vmem>>, %arg14: memref<1x128xf32, #tpu.memory_space<vmem>>, %arg15: memref<1x128xf32, #tpu.memory_space<vmem>>, %arg16: memref<128x128xbf16, #tpu.memory_space<vmem>>, %arg17: memref<1x128xf32, #tpu.memory_space<vmem>>, %arg18: memref<2x128xf32, #tpu.memory_space<vmem>>, %arg19: memref<48x128xf32, #tpu.memory_space<vmem>>, %arg20: memref<48x128xbf16, #tpu.memory_space<vmem>>) attributes {dimension_semantics = [#tpu.dimension_semantics<arbitrary>], iteration_bounds = array<i64: 2>, scalar_prefetch = 0 : i64, scratch_operands = 2 : i64, tpu.core_type = #tpu.core_type<tc>, window_params = [{pipeline_mode = #tpu.pipeline_mode<synchronous>, transform_indices = @transform_0, window_bounds = array<i64: 48, 128>}, {transform_indices = @transform_1, window_bounds = array<i64: 1, 1, 128>}, {transform_indices = @transform_2, window_bounds = array<i64: 1, 1, 128>}, {transform_indices = @transform_3, window_bounds = array<i64: 1, 128, 384>}, {transform_indices = @transform_4, window_bounds = array<i64: 1, 1, 384>}, {transform_indices = @transform_5, window_bounds = array<i64: 1, 128, 128>}, {transform_indices = @transform_6, window_bounds = array<i64: 1, 1, 128>}, {transform_indices = @transform_7, window_bounds = array<i64: 1, 1, 128>}, {transform_indices = @transform_8, window_bounds = array<i64: 1, 1, 128>}, {transform_indices = @transform_9, window_bounds = array<i64: 1, 128, 512>}, {transform_indices = @transform_10, window_bounds = array<i64: 1, 1, 512>}, {transform_indices = @transform_11, window_bounds = array<i64: 1, 512, 128>}, {transform_indices = @transform_12, window_bounds = array<i64: 1, 1, 128>}, {pipeline_mode = #tpu.pipeline_mode<synchronous>, transform_indices = @transform_13, window_bounds = array<i64: 1, 128>}, {pipeline_mode = #tpu.pipeline_mode<synchronous>, transform_indices = @transform_14, window_bounds = array<i64: 1, 128>}, {pipeline_mode = #tpu.pipeline_mode<synchronous>, transform_indices = @transform_15, window_bounds = array<i64: 128, 128>}, {pipeline_mode = #tpu.pipeline_mode<synchronous>, transform_indices = @transform_16, window_bounds = array<i64: 1, 128>}, {pipeline_mode = #tpu.pipeline_mode<synchronous>, transform_indices = @transform_17, window_bounds = array<i64: 2, 128>}]} {
    %c0_i32 = arith.constant 0 : i32
    %0 = arith.cmpi eq, %arg0, %c0_i32 : i32
    %1 = arith.extui %0 : i1 to i32
    %c0_i32_0 = arith.constant 0 : i32
    %2 = arith.cmpi ne, %1, %c0_i32_0 : i32
    scf.if %2 {
      %c0_82 = arith.constant 0 : index
      %c0_83 = arith.constant 0 : index
      %201 = vector.load %arg1[%c0_82, %c0_83] : memref<48x128xbf16, #tpu.memory_space<vmem>>, vector<48x128xbf16>
      %202 = arith.extf %201 : vector<48x128xbf16> to vector<48x128xf32>
      %c0_84 = arith.constant 0 : index
      %c0_85 = arith.constant 0 : index
      %203 = vector.load %arg19[%c0_84, %c0_85] : memref<48x128xf32, #tpu.memory_space<vmem>>, vector<48x128xf32>
      tpu.vector_store %arg19[%c0_84, %c0_85], %202 {strides = array<i32>} : memref<48x128xf32, #tpu.memory_space<vmem>>, vector<48x128xf32>,
    } else {
    }
    %c0 = arith.constant 0 : index
    %c0_1 = arith.constant 0 : index
    %3 = vector.load %arg19[%c0, %c0_1] : memref<48x128xf32, #tpu.memory_space<vmem>>, vector<48x128xf32>
    %4 = tpu.iota {dimensions = array<i32: 1>} : vector<1x24xi32>
    %c17_i32 = arith.constant 17 : i32
    %5 = vector.broadcast %c17_i32 : i32 to vector<1x24xi32>
    %6 = arith.cmpi slt, %4, %5 : vector<1x24xi32>
    %cst = arith.constant 0.000000e+00 : f32
    %cst_2 = arith.constant -1.000000e+30 : f32
    %7 = vector.broadcast %cst : f32 to vector<1x24xf32>
    %8 = vector.broadcast %cst_2 : f32 to vector<1x24xf32>
    %9 = arith.select %6, %7, %8 : vector<1x24xi1>, vector<1x24xf32>
    %c0_3 = arith.constant 0 : index
    %c0_4 = arith.constant 0 : index
    %c0_5 = arith.constant 0 : index
    %10 = vector.load %arg2[%c0_3, %c0_4, %c0_5] : memref<1x1x128xf32, #tpu.memory_space<vmem>>, vector<1x1x128xf32>
    %11 = vector.shape_cast %10 : vector<1x1x128xf32> to vector<1x128xf32>
    %c0_6 = arith.constant 0 : index
    %c0_7 = arith.constant 0 : index
    %c0_8 = arith.constant 0 : index
    %12 = vector.load %arg3[%c0_6, %c0_7, %c0_8] : memref<1x1x128xf32, #tpu.memory_space<vmem>>, vector<1x1x128xf32>
    %13 = vector.shape_cast %12 : vector<1x1x128xf32> to vector<1x128xf32>
    %cst_9 = arith.constant dense<0.000000e+00> : vector<48xf32>
    %14 = vector.multi_reduction <add>, %3, %cst_9 [1] : vector<48x128xf32> to vector<48xf32>
    %15 = vector.shape_cast %14 : vector<48xf32> to vector<48x1xf32>
    %cst_10 = arith.constant 1.280000e+02 : f32
    %16 = vector.broadcast %cst_10 : f32 to vector<48x1xf32>
    %17 = arith.divf %15, %16 : vector<48x1xf32>
    %18 = vector.broadcast %17 : vector<48x1xf32> to vector<48x128xf32>
    %19 = arith.subf %3, %18 : vector<48x128xf32>
    %20 = arith.mulf %19, %19 : vector<48x128xf32>
    %cst_11 = arith.constant dense<0.000000e+00> : vector<48xf32>
    %21 = vector.multi_reduction <add>, %20, %cst_11 [1] : vector<48x128xf32> to vector<48xf32>
    %22 = vector.shape_cast %21 : vector<48xf32> to vector<48x1xf32>
    %cst_12 = arith.constant 1.280000e+02 : f32
    %23 = vector.broadcast %cst_12 : f32 to vector<48x1xf32>
    %24 = arith.divf %22, %23 : vector<48x1xf32>
    %25 = vector.broadcast %17 : vector<48x1xf32> to vector<48x128xf32>
    %26 = arith.subf %3, %25 : vector<48x128xf32>
    %cst_13 = arith.constant 9.99999997E-7 : f32
    %27 = vector.broadcast %cst_13 : f32 to vector<48x1xf32>
    %28 = arith.addf %24, %27 : vector<48x1xf32>
    %29 = math.rsqrt %28 : vector<48x1xf32>
    %30 = vector.broadcast %29 : vector<48x1xf32> to vector<48x128xf32>
    %31 = arith.mulf %26, %30 : vector<48x128xf32>
    %32 = vector.broadcast %11 : vector<1x128xf32> to vector<48x128xf32>
    %33 = arith.mulf %31, %32 : vector<48x128xf32>
    %34 = vector.broadcast %13 : vector<1x128xf32> to vector<48x128xf32>
    %35 = arith.addf %33, %34 : vector<48x128xf32>
    %36 = arith.truncf %35 : vector<48x128xf32> to vector<48x128xbf16>
    %c0_14 = arith.constant 0 : index
    %c0_15 = arith.constant 0 : index
    %c0_16 = arith.constant 0 : index
    %37 = vector.load %arg4[%c0_14, %c0_15, %c0_16] : memref<1x128x384xbf16, #tpu.memory_space<vmem>>, vector<1x128x384xbf16>
    %38 = vector.shape_cast %37 : vector<1x128x384xbf16> to vector<128x384xbf16>
    %cst_17 = arith.constant dense<0.000000e+00> : vector<48x384xf32>
    %39 = tpu.matmul %36, %38, %cst_17 {dimension_numbers = #tpu.dot_dimension_numbers<[1], [0], [0], [1], [0, 0, 1, 1], [], []>} : vector<48x128xbf16>, vector<128x384xbf16>, vector<48x384xf32> -> vector<48x384xf32>
    %c0_18 = arith.constant 0 : index
    %c0_19 = arith.constant 0 : index
    %c0_20 = arith.constant 0 : index
    %40 = vector.load %arg5[%c0_18, %c0_19, %c0_20] : memref<1x1x384xf32, #tpu.memory_space<vmem>>, vector<1x1x384xf32>
    %41 = vector.shape_cast %40 : vector<1x1x384xf32> to vector<1x384xf32>
    %42 = vector.broadcast %41 : vector<1x384xf32> to vector<48x384xf32>
    %43 = arith.addf %39, %42 : vector<48x384xf32>
    %44 = vector.extract_strided_slice %43 {offsets = [0, 0], sizes = [48, 128], strides = [1, 1]} : vector<48x384xf32> to vector<48x128xf32>
    %cst_21 = arith.constant 1.250000e-01 : f32
    %45 = vector.broadcast %cst_21 : f32 to vector<48x128xf32>
    %46 = arith.mulf %44, %45 : vector<48x128xf32>
    %47 = arith.truncf %46 : vector<48x128xf32> to vector<48x128xbf16>
    %48 = vector.extract_strided_slice %43 {offsets = [0, 128], sizes = [48, 128], strides = [1, 1]} : vector<48x384xf32> to vector<48x128xf32>
    %49 = arith.truncf %48 : vector<48x128xf32> to vector<48x128xbf16>
    %50 = vector.extract_strided_slice %43 {offsets = [0, 256], sizes = [48, 128], strides = [1, 1]} : vector<48x384xf32> to vector<48x128xf32>
    %51 = arith.truncf %50 : vector<48x128xf32> to vector<48x128xbf16>
    %52 = vector.extract_strided_slice %47 {offsets = [0, 0], sizes = [24, 64], strides = [1, 1]} : vector<48x128xbf16> to vector<24x64xbf16>
    %53 = vector.extract_strided_slice %49 {offsets = [0, 0], sizes = [24, 64], strides = [1, 1]} : vector<48x128xbf16> to vector<24x64xbf16>
    %54 = vector.extract_strided_slice %51 {offsets = [0, 0], sizes = [24, 64], strides = [1, 1]} : vector<48x128xbf16> to vector<24x64xbf16>
    %cst_22 = arith.constant dense<0.000000e+00> : vector<24x24xf32>
    %55 = tpu.matmul %52, %53, %cst_22 {dimension_numbers = #tpu.dot_dimension_numbers<[1], [1], [0], [0], [0, 0, 1, 0], [], []>} : vector<24x64xbf16>, vector<24x64xbf16>, vector<24x24xf32> -> vector<24x24xf32>
    %56 = vector.broadcast %9 : vector<1x24xf32> to vector<24x24xf32>
    %57 = arith.addf %55, %56 : vector<24x24xf32>
    %cst_23 = arith.constant dense<0xFF800000> : vector<24xf32>
    %58 = vector.multi_reduction <maximumf>, %57, %cst_23 [1] : vector<24x24xf32> to vector<24xf32>
    %59 = vector.shape_cast %58 : vector<24xf32> to vector<24x1xf32>
    %60 = vector.broadcast %59 : vector<24x1xf32> to vector<24x24xf32>
    %61 = arith.subf %57, %60 : vector<24x24xf32>
    %62 = math.exp %61 : vector<24x24xf32>
    %cst_24 = arith.constant dense<0.000000e+00> : vector<24xf32>
    %63 = vector.multi_reduction <add>, %62, %cst_24 [1] : vector<24x24xf32> to vector<24xf32>
    %64 = vector.shape_cast %63 : vector<24xf32> to vector<24x1xf32>
    %65 = arith.truncf %62 : vector<24x24xf32> to vector<24x24xbf16>
    %cst_25 = arith.constant dense<0.000000e+00> : vector<24x64xf32>
    %66 = tpu.matmul %65, %54, %cst_25 {dimension_numbers = #tpu.dot_dimension_numbers<[1], [0], [0], [1], [0, 0, 1, 1], [], []>} : vector<24x24xbf16>, vector<24x64xbf16>, vector<24x64xf32> -> vector<24x64xf32>
    %67 = tpu.reciprocal %64 {approx = true} : vector<24x1xf32> -> vector<24x1xf32>
    %68 = vector.broadcast %67 : vector<24x1xf32> to vector<24x64xf32>
    %69 = arith.mulf %66, %68 : vector<24x64xf32>
    %70 = arith.truncf %69 : vector<24x64xf32> to vector<24x64xbf16>
    %71 = vector.extract_strided_slice %47 {offsets = [0, 64], sizes = [24, 64], strides = [1, 1]} : vector<48x128xbf16> to vector<24x64xbf16>
    %72 = vector.extract_strided_slice %49 {offsets = [0, 64], sizes = [24, 64], strides = [1, 1]} : vector<48x128xbf16> to vector<24x64xbf16>
    %73 = vector.extract_strided_slice %51 {offsets = [0, 64], sizes = [24, 64], strides = [1, 1]} : vector<48x128xbf16> to vector<24x64xbf16>
    %cst_26 = arith.constant dense<0.000000e+00> : vector<24x24xf32>
    %74 = tpu.matmul %71, %72, %cst_26 {dimension_numbers = #tpu.dot_dimension_numbers<[1], [1], [0], [0], [0, 0, 1, 0], [], []>} : vector<24x64xbf16>, vector<24x64xbf16>, vector<24x24xf32> -> vector<24x24xf32>
    %75 = vector.broadcast %9 : vector<1x24xf32> to vector<24x24xf32>
    %76 = arith.addf %74, %75 : vector<24x24xf32>
    %cst_27 = arith.constant dense<0xFF800000> : vector<24xf32>
    %77 = vector.multi_reduction <maximumf>, %76, %cst_27 [1] : vector<24x24xf32> to vector<24xf32>
    %78 = vector.shape_cast %77 : vector<24xf32> to vector<24x1xf32>
    %79 = vector.broadcast %78 : vector<24x1xf32> to vector<24x24xf32>
    %80 = arith.subf %76, %79 : vector<24x24xf32>
    %81 = math.exp %80 : vector<24x24xf32>
    %cst_28 = arith.constant dense<0.000000e+00> : vector<24xf32>
    %82 = vector.multi_reduction <add>, %81, %cst_28 [1] : vector<24x24xf32> to vector<24xf32>
    %83 = vector.shape_cast %82 : vector<24xf32> to vector<24x1xf32>
    %84 = arith.truncf %81 : vector<24x24xf32> to vector<24x24xbf16>
    %cst_29 = arith.constant dense<0.000000e+00> : vector<24x64xf32>
    %85 = tpu.matmul %84, %73, %cst_29 {dimension_numbers = #tpu.dot_dimension_numbers<[1], [0], [0], [1], [0, 0, 1, 1], [], []>} : vector<24x24xbf16>, vector<24x64xbf16>, vector<24x64xf32> -> vector<24x64xf32>
    %86 = tpu.reciprocal %83 {approx = true} : vector<24x1xf32> -> vector<24x1xf32>
    %87 = vector.broadcast %86 : vector<24x1xf32> to vector<24x64xf32>
    %88 = arith.mulf %85, %87 : vector<24x64xf32>
    %89 = arith.truncf %88 : vector<24x64xf32> to vector<24x64xbf16>
    %90 = tpu.concatenate %70, %89 in 1 : vector<24x64xbf16>, vector<24x64xbf16> -> vector<24x128xbf16>
    %c0_30 = arith.constant 0 : index
    %c0_31 = arith.constant 0 : index
    %91 = vector.load %arg20[%c0_30, %c0_31] : memref<48x128xbf16, #tpu.memory_space<vmem>>, vector<24x128xbf16>
    tpu.vector_store %arg20[%c0_30, %c0_31], %90 {strides = array<i32>} : memref<48x128xbf16, #tpu.memory_space<vmem>>, vector<24x128xbf16>,
    %92 = vector.extract_strided_slice %47 {offsets = [24, 0], sizes = [24, 64], strides = [1, 1]} : vector<48x128xbf16> to vector<24x64xbf16>
    %93 = vector.extract_strided_slice %49 {offsets = [24, 0], sizes = [24, 64], strides = [1, 1]} : vector<48x128xbf16> to vector<24x64xbf16>
    %94 = vector.extract_strided_slice %51 {offsets = [24, 0], sizes = [24, 64], strides = [1, 1]} : vector<48x128xbf16> to vector<24x64xbf16>
    %cst_32 = arith.constant dense<0.000000e+00> : vector<24x24xf32>
    %95 = tpu.matmul %92, %93, %cst_32 {dimension_numbers = #tpu.dot_dimension_numbers<[1], [1], [0], [0], [0, 0, 1, 0], [], []>} : vector<24x64xbf16>, vector<24x64xbf16>, vector<24x24xf32> -> vector<24x24xf32>
    %96 = vector.broadcast %9 : vector<1x24xf32> to vector<24x24xf32>
    %97 = arith.addf %95, %96 : vector<24x24xf32>
    %cst_33 = arith.constant dense<0xFF800000> : vector<24xf32>
    %98 = vector.multi_reduction <maximumf>, %97, %cst_33 [1] : vector<24x24xf32> to vector<24xf32>
    %99 = vector.shape_cast %98 : vector<24xf32> to vector<24x1xf32>
    %100 = vector.broadcast %99 : vector<24x1xf32> to vector<24x24xf32>
    %101 = arith.subf %97, %100 : vector<24x24xf32>
    %102 = math.exp %101 : vector<24x24xf32>
    %cst_34 = arith.constant dense<0.000000e+00> : vector<24xf32>
    %103 = vector.multi_reduction <add>, %102, %cst_34 [1] : vector<24x24xf32> to vector<24xf32>
    %104 = vector.shape_cast %103 : vector<24xf32> to vector<24x1xf32>
    %105 = arith.truncf %102 : vector<24x24xf32> to vector<24x24xbf16>
    %cst_35 = arith.constant dense<0.000000e+00> : vector<24x64xf32>
    %106 = tpu.matmul %105, %94, %cst_35 {dimension_numbers = #tpu.dot_dimension_numbers<[1], [0], [0], [1], [0, 0, 1, 1], [], []>} : vector<24x24xbf16>, vector<24x64xbf16>, vector<24x64xf32> -> vector<24x64xf32>
    %107 = tpu.reciprocal %104 {approx = true} : vector<24x1xf32> -> vector<24x1xf32>
    %108 = vector.broadcast %107 : vector<24x1xf32> to vector<24x64xf32>
    %109 = arith.mulf %106, %108 : vector<24x64xf32>
    %110 = arith.truncf %109 : vector<24x64xf32> to vector<24x64xbf16>
    %111 = vector.extract_strided_slice %47 {offsets = [24, 64], sizes = [24, 64], strides = [1, 1]} : vector<48x128xbf16> to vector<24x64xbf16>
    %112 = vector.extract_strided_slice %49 {offsets = [24, 64], sizes = [24, 64], strides = [1, 1]} : vector<48x128xbf16> to vector<24x64xbf16>
    %113 = vector.extract_strided_slice %51 {offsets = [24, 64], sizes = [24, 64], strides = [1, 1]} : vector<48x128xbf16> to vector<24x64xbf16>
    %cst_36 = arith.constant dense<0.000000e+00> : vector<24x24xf32>
    %114 = tpu.matmul %111, %112, %cst_36 {dimension_numbers = #tpu.dot_dimension_numbers<[1], [1], [0], [0], [0, 0, 1, 0], [], []>} : vector<24x64xbf16>, vector<24x64xbf16>, vector<24x24xf32> -> vector<24x24xf32>
    %115 = vector.broadcast %9 : vector<1x24xf32> to vector<24x24xf32>
    %116 = arith.addf %114, %115 : vector<24x24xf32>
    %cst_37 = arith.constant dense<0xFF800000> : vector<24xf32>
    %117 = vector.multi_reduction <maximumf>, %116, %cst_37 [1] : vector<24x24xf32> to vector<24xf32>
    %118 = vector.shape_cast %117 : vector<24xf32> to vector<24x1xf32>
    %119 = vector.broadcast %118 : vector<24x1xf32> to vector<24x24xf32>
    %120 = arith.subf %116, %119 : vector<24x24xf32>
    %121 = math.exp %120 : vector<24x24xf32>
    %cst_38 = arith.constant dense<0.000000e+00> : vector<24xf32>
    %122 = vector.multi_reduction <add>, %121, %cst_38 [1] : vector<24x24xf32> to vector<24xf32>
    %123 = vector.shape_cast %122 : vector<24xf32> to vector<24x1xf32>
    %124 = arith.truncf %121 : vector<24x24xf32> to vector<24x24xbf16>
    %cst_39 = arith.constant dense<0.000000e+00> : vector<24x64xf32>
    %125 = tpu.matmul %124, %113, %cst_39 {dimension_numbers = #tpu.dot_dimension_numbers<[1], [0], [0], [1], [0, 0, 1, 1], [], []>} : vector<24x24xbf16>, vector<24x64xbf16>, vector<24x64xf32> -> vector<24x64xf32>
    %126 = tpu.reciprocal %123 {approx = true} : vector<24x1xf32> -> vector<24x1xf32>
    %127 = vector.broadcast %126 : vector<24x1xf32> to vector<24x64xf32>
    %128 = arith.mulf %125, %127 : vector<24x64xf32>
    %129 = arith.truncf %128 : vector<24x64xf32> to vector<24x64xbf16>
    %130 = tpu.concatenate %110, %129 in 1 : vector<24x64xbf16>, vector<24x64xbf16> -> vector<24x128xbf16>
    %c24 = arith.constant 24 : index
    %c0_40 = arith.constant 0 : index
    %131 = vector.load %arg20[%c24, %c0_40] : memref<48x128xbf16, #tpu.memory_space<vmem>>, vector<24x128xbf16>
    tpu.vector_store %arg20[%c24, %c0_40], %130 {strides = array<i32>} : memref<48x128xbf16, #tpu.memory_space<vmem>>, vector<24x128xbf16>,
    %c0_41 = arith.constant 0 : index
    %c0_42 = arith.constant 0 : index
    %132 = vector.load %arg20[%c0_41, %c0_42] : memref<48x128xbf16, #tpu.memory_space<vmem>>, vector<48x128xbf16>
    %c0_43 = arith.constant 0 : index
    %c0_44 = arith.constant 0 : index
    %c0_45 = arith.constant 0 : index
    %133 = vector.load %arg6[%c0_43, %c0_44, %c0_45] : memref<1x128x128xbf16, #tpu.memory_space<vmem>>, vector<1x128x128xbf16>
    %134 = vector.shape_cast %133 : vector<1x128x128xbf16> to vector<128x128xbf16>
    %cst_46 = arith.constant dense<0.000000e+00> : vector<48x128xf32>
    %135 = tpu.matmul %132, %134, %cst_46 {dimension_numbers = #tpu.dot_dimension_numbers<[1], [0], [0], [1], [0, 0, 1, 1], [], []>} : vector<48x128xbf16>, vector<128x128xbf16>, vector<48x128xf32> -> vector<48x128xf32>
    %136 = arith.addf %3, %135 : vector<48x128xf32>
    %c0_47 = arith.constant 0 : index
    %c0_48 = arith.constant 0 : index
    %c0_49 = arith.constant 0 : index
    %137 = vector.load %arg7[%c0_47, %c0_48, %c0_49] : memref<1x1x128xf32, #tpu.memory_space<vmem>>, vector<1x1x128xf32>
    %138 = vector.shape_cast %137 : vector<1x1x128xf32> to vector<1x128xf32>
    %139 = vector.broadcast %138 : vector<1x128xf32> to vector<48x128xf32>
    %140 = arith.addf %136, %139 : vector<48x128xf32>
    %c0_50 = arith.constant 0 : index
    %c0_51 = arith.constant 0 : index
    %c0_52 = arith.constant 0 : index
    %141 = vector.load %arg8[%c0_50, %c0_51, %c0_52] : memref<1x1x128xf32, #tpu.memory_space<vmem>>, vector<1x1x128xf32>
    %142 = vector.shape_cast %141 : vector<1x1x128xf32> to vector<1x128xf32>
    %c0_53 = arith.constant 0 : index
    %c0_54 = arith.constant 0 : index
    %c0_55 = arith.constant 0 : index
    %143 = vector.load %arg9[%c0_53, %c0_54, %c0_55] : memref<1x1x128xf32, #tpu.memory_space<vmem>>, vector<1x1x128xf32>
    %144 = vector.shape_cast %143 : vector<1x1x128xf32> to vector<1x128xf32>
    %cst_56 = arith.constant dense<0.000000e+00> : vector<48xf32>
    %145 = vector.multi_reduction <add>, %140, %cst_56 [1] : vector<48x128xf32> to vector<48xf32>
    %146 = vector.shape_cast %145 : vector<48xf32> to vector<48x1xf32>
    %cst_57 = arith.constant 1.280000e+02 : f32
    %147 = vector.broadcast %cst_57 : f32 to vector<48x1xf32>
    %148 = arith.divf %146, %147 : vector<48x1xf32>
    %149 = vector.broadcast %148 : vector<48x1xf32> to vector<48x128xf32>
    %150 = arith.subf %140, %149 : vector<48x128xf32>
    %151 = arith.mulf %150, %150 : vector<48x128xf32>
    %cst_58 = arith.constant dense<0.000000e+00> : vector<48xf32>
    %152 = vector.multi_reduction <add>, %151, %cst_58 [1] : vector<48x128xf32> to vector<48xf32>
    %153 = vector.shape_cast %152 : vector<48xf32> to vector<48x1xf32>
    %cst_59 = arith.constant 1.280000e+02 : f32
    %154 = vector.broadcast %cst_59 : f32 to vector<48x1xf32>
    %155 = arith.divf %153, %154 : vector<48x1xf32>
    %156 = vector.broadcast %148 : vector<48x1xf32> to vector<48x128xf32>
    %157 = arith.subf %140, %156 : vector<48x128xf32>
    %cst_60 = arith.constant 9.99999997E-7 : f32
    %158 = vector.broadcast %cst_60 : f32 to vector<48x1xf32>
    %159 = arith.addf %155, %158 : vector<48x1xf32>
    %160 = math.rsqrt %159 : vector<48x1xf32>
    %161 = vector.broadcast %160 : vector<48x1xf32> to vector<48x128xf32>
    %162 = arith.mulf %157, %161 : vector<48x128xf32>
    %163 = vector.broadcast %142 : vector<1x128xf32> to vector<48x128xf32>
    %164 = arith.mulf %162, %163 : vector<48x128xf32>
    %165 = vector.broadcast %144 : vector<1x128xf32> to vector<48x128xf32>
    %166 = arith.addf %164, %165 : vector<48x128xf32>
    %167 = arith.truncf %166 : vector<48x128xf32> to vector<48x128xbf16>
    %c0_61 = arith.constant 0 : index
    %c0_62 = arith.constant 0 : index
    %c0_63 = arith.constant 0 : index
    %168 = vector.load %arg10[%c0_61, %c0_62, %c0_63] : memref<1x128x512xbf16, #tpu.memory_space<vmem>>, vector<1x128x512xbf16>
    %169 = vector.shape_cast %168 : vector<1x128x512xbf16> to vector<128x512xbf16>
    %cst_64 = arith.constant dense<0.000000e+00> : vector<48x512xf32>
    %170 = tpu.matmul %167, %169, %cst_64 {dimension_numbers = #tpu.dot_dimension_numbers<[1], [0], [0], [1], [0, 0, 1, 1], [], []>} : vector<48x128xbf16>, vector<128x512xbf16>, vector<48x512xf32> -> vector<48x512xf32>
    %c0_65 = arith.constant 0 : index
    %c0_66 = arith.constant 0 : index
    %c0_67 = arith.constant 0 : index
    %171 = vector.load %arg11[%c0_65, %c0_66, %c0_67] : memref<1x1x512xf32, #tpu.memory_space<vmem>>, vector<1x1x512xf32>
    %172 = vector.shape_cast %171 : vector<1x1x512xf32> to vector<1x512xf32>
    %173 = vector.broadcast %172 : vector<1x512xf32> to vector<48x512xf32>
    %174 = arith.addf %170, %173 : vector<48x512xf32>
    %175 = arith.mulf %174, %174 : vector<48x512xf32>
    %176 = arith.mulf %174, %175 : vector<48x512xf32>
    %cst_68 = arith.constant 4.471500e-02 : f32
    %177 = vector.broadcast %cst_68 : f32 to vector<48x512xf32>
    %178 = arith.mulf %177, %176 : vector<48x512xf32>
    %179 = arith.addf %174, %178 : vector<48x512xf32>
    %cst_69 = arith.constant 0.797884583 : f32
    %180 = vector.broadcast %cst_69 : f32 to vector<48x512xf32>
    %181 = arith.mulf %180, %179 : vector<48x512xf32>
    %182 = math.tanh %181 : vector<48x512xf32>
    %cst_70 = arith.constant 1.000000e+00 : f32
    %183 = vector.broadcast %cst_70 : f32 to vector<48x512xf32>
    %184 = arith.addf %183, %182 : vector<48x512xf32>
    %cst_71 = arith.constant 5.000000e-01 : f32
    %185 = vector.broadcast %cst_71 : f32 to vector<48x512xf32>
    %186 = arith.mulf %185, %184 : vector<48x512xf32>
    %187 = arith.mulf %174, %186 : vector<48x512xf32>
    %188 = arith.truncf %187 : vector<48x512xf32> to vector<48x512xbf16>
    %c0_72 = arith.constant 0 : index
    %c0_73 = arith.constant 0 : index
    %c0_74 = arith.constant 0 : index
    %189 = vector.load %arg12[%c0_72, %c0_73, %c0_74] : memref<1x512x128xbf16, #tpu.memory_space<vmem>>, vector<1x512x128xbf16>
    %190 = vector.shape_cast %189 : vector<1x512x128xbf16> to vector<512x128xbf16>
    %cst_75 = arith.constant dense<0.000000e+00> : vector<48x128xf32>
    %191 = tpu.matmul %188, %190, %cst_75 {dimension_numbers = #tpu.dot_dimension_numbers<[1], [0], [0], [1], [0, 0, 1, 1], [], []>} : vector<48x512xbf16>, vector<512x128xbf16>, vector<48x128xf32> -> vector<48x128xf32>
    %192 = arith.addf %140, %191 : vector<48x128xf32>
    %c0_76 = arith.constant 0 : index
    %c0_77 = arith.constant 0 : index
    %c0_78 = arith.constant 0 : index
    %193 = vector.load %arg13[%c0_76, %c0_77, %c0_78] : memref<1x1x128xf32, #tpu.memory_space<vmem>>, vector<1x1x128xf32>
    %194 = vector.shape_cast %193 : vector<1x1x128xf32> to vector<1x128xf32>
    %195 = vector.broadcast %194 : vector<1x128xf32> to vector<48x128xf32>
    %196 = arith.addf %192, %195 : vector<48x128xf32>
    %c0_79 = arith.constant 0 : index
    %c0_80 = arith.constant 0 : index
    %197 = vector.load %arg19[%c0_79, %c0_80] : memref<48x128xf32, #tpu.memory_space<vmem>>, vector<48x128xf32>
    tpu.vector_store %arg19[%c0_79, %c0_80], %196 {strides = array<i32>} : memref<48x128xf32, #tpu.memory_space<vmem>>, vector<48x128xf32>,
    %c1_i32 = arith.constant 1 : i32
    %198 = arith.cmpi eq, %arg0, %c1_i32 : i32
    %199 = arith.extui %198 : i1 to i32
    %c0_i32_81 = arith.constant 0 : i32
    %200 = arith.cmpi ne, %199, %c0_i32_81 : i32
    scf.if %200 {
      %201 = vector.extract_strided_slice %196 {offsets = [0, 0], sizes = [1, 128], strides = [1, 1]} : vector<48x128xf32> to vector<1x128xf32>
      %202 = vector.extract_strided_slice %196 {offsets = [24, 0], sizes = [1, 128], strides = [1, 1]} : vector<48x128xf32> to vector<1x128xf32>
      %203 = tpu.concatenate %201, %202 in 0 : vector<1x128xf32>, vector<1x128xf32> -> vector<2x128xf32>
      %c0_82 = arith.constant 0 : index
      %c0_83 = arith.constant 0 : index
      %204 = vector.load %arg14[%c0_82, %c0_83] : memref<1x128xf32, #tpu.memory_space<vmem>>, vector<1x128xf32>
      %c0_84 = arith.constant 0 : index
      %c0_85 = arith.constant 0 : index
      %205 = vector.load %arg15[%c0_84, %c0_85] : memref<1x128xf32, #tpu.memory_space<vmem>>, vector<1x128xf32>
      %cst_86 = arith.constant dense<0.000000e+00> : vector<2xf32>
      %206 = vector.multi_reduction <add>, %203, %cst_86 [1] : vector<2x128xf32> to vector<2xf32>
      %207 = vector.shape_cast %206 : vector<2xf32> to vector<2x1xf32>
      %cst_87 = arith.constant 1.280000e+02 : f32
      %208 = vector.broadcast %cst_87 : f32 to vector<2x1xf32>
      %209 = arith.divf %207, %208 : vector<2x1xf32>
      %210 = vector.broadcast %209 : vector<2x1xf32> to vector<2x128xf32>
      %211 = arith.subf %203, %210 : vector<2x128xf32>
      %212 = arith.mulf %211, %211 : vector<2x128xf32>
      %cst_88 = arith.constant dense<0.000000e+00> : vector<2xf32>
      %213 = vector.multi_reduction <add>, %212, %cst_88 [1] : vector<2x128xf32> to vector<2xf32>
      %214 = vector.shape_cast %213 : vector<2xf32> to vector<2x1xf32>
      %cst_89 = arith.constant 1.280000e+02 : f32
      %215 = vector.broadcast %cst_89 : f32 to vector<2x1xf32>
      %216 = arith.divf %214, %215 : vector<2x1xf32>
      %217 = vector.broadcast %209 : vector<2x1xf32> to vector<2x128xf32>
      %218 = arith.subf %203, %217 : vector<2x128xf32>
      %cst_90 = arith.constant 9.99999997E-7 : f32
      %219 = vector.broadcast %cst_90 : f32 to vector<2x1xf32>
      %220 = arith.addf %216, %219 : vector<2x1xf32>
      %221 = math.rsqrt %220 : vector<2x1xf32>
      %222 = vector.broadcast %221 : vector<2x1xf32> to vector<2x128xf32>
      %223 = arith.mulf %218, %222 : vector<2x128xf32>
      %224 = vector.broadcast %204 : vector<1x128xf32> to vector<2x128xf32>
      %225 = arith.mulf %223, %224 : vector<2x128xf32>
      %226 = vector.broadcast %205 : vector<1x128xf32> to vector<2x128xf32>
      %227 = arith.addf %225, %226 : vector<2x128xf32>
      %228 = arith.truncf %227 : vector<2x128xf32> to vector<2x128xbf16>
      %c0_91 = arith.constant 0 : index
      %c0_92 = arith.constant 0 : index
      %229 = vector.load %arg16[%c0_91, %c0_92] : memref<128x128xbf16, #tpu.memory_space<vmem>>, vector<128x128xbf16>
      %cst_93 = arith.constant dense<0.000000e+00> : vector<2x128xf32>
      %230 = tpu.matmul %228, %229, %cst_93 {dimension_numbers = #tpu.dot_dimension_numbers<[1], [0], [0], [1], [0, 0, 1, 1], [], []>} : vector<2x128xbf16>, vector<128x128xbf16>, vector<2x128xf32> -> vector<2x128xf32>
      %c0_94 = arith.constant 0 : index
      %c0_95 = arith.constant 0 : index
      %231 = vector.load %arg17[%c0_94, %c0_95] : memref<1x128xf32, #tpu.memory_space<vmem>>, vector<1x128xf32>
      %232 = vector.broadcast %231 : vector<1x128xf32> to vector<2x128xf32>
      %233 = arith.addf %230, %232 : vector<2x128xf32>
      %c0_96 = arith.constant 0 : index
      %c0_97 = arith.constant 0 : index
      %234 = vector.load %arg18[%c0_96, %c0_97] : memref<2x128xf32, #tpu.memory_space<vmem>>, vector<2x128xf32>
      tpu.vector_store %arg18[%c0_96, %c0_97], %233 {strides = array<i32>} : memref<2x128xf32, #tpu.memory_space<vmem>>, vector<2x128xf32>,
    } else {
    }
    return
  }
  func.func @transform_0(%arg0: i32) -> (i32, i32) {
    %c0_i32 = arith.constant 0 : i32
    %c0_i32_0 = arith.constant 0 : i32
    %c0_i32_1 = arith.constant 0 : i32
    return %c0_i32, %c0_i32_0 : i32, i32
  }
  func.func @transform_1(%arg0: i32) -> (i32, i32, i32) {
    %c0_i32 = arith.constant 0 : i32
    %c0_i32_0 = arith.constant 0 : i32
    %c0_i32_1 = arith.constant 0 : i32
    return %arg0, %c0_i32, %c0_i32_0 : i32, i32, i32
  }
  func.func @transform_2(%arg0: i32) -> (i32, i32, i32) {
    %c0_i32 = arith.constant 0 : i32
    %c0_i32_0 = arith.constant 0 : i32
    %c0_i32_1 = arith.constant 0 : i32
    return %arg0, %c0_i32, %c0_i32_0 : i32, i32, i32
  }
  func.func @transform_3(%arg0: i32) -> (i32, i32, i32) {
    %c0_i32 = arith.constant 0 : i32
    %c0_i32_0 = arith.constant 0 : i32
    %c0_i32_1 = arith.constant 0 : i32
    return %arg0, %c0_i32, %c0_i32_0 : i32, i32, i32
  }
  func.func @transform_4(%arg0: i32) -> (i32, i32, i32) {
    %c0_i32 = arith.constant 0 : i32
    %c0_i32_0 = arith.constant 0 : i32
    %c0_i32_1 = arith.constant 0 : i32
    return %arg0, %c0_i32, %c0_i32_0 : i32, i32, i32
  }
  func.func @transform_5(%arg0: i32) -> (i32, i32, i32) {
    %c0_i32 = arith.constant 0 : i32
    %c0_i32_0 = arith.constant 0 : i32
    %c0_i32_1 = arith.constant 0 : i32
    return %arg0, %c0_i32, %c0_i32_0 : i32, i32, i32
  }
  func.func @transform_6(%arg0: i32) -> (i32, i32, i32) {
    %c0_i32 = arith.constant 0 : i32
    %c0_i32_0 = arith.constant 0 : i32
    %c0_i32_1 = arith.constant 0 : i32
    return %arg0, %c0_i32, %c0_i32_0 : i32, i32, i32
  }
  func.func @transform_7(%arg0: i32) -> (i32, i32, i32) {
    %c0_i32 = arith.constant 0 : i32
    %c0_i32_0 = arith.constant 0 : i32
    %c0_i32_1 = arith.constant 0 : i32
    return %arg0, %c0_i32, %c0_i32_0 : i32, i32, i32
  }
  func.func @transform_8(%arg0: i32) -> (i32, i32, i32) {
    %c0_i32 = arith.constant 0 : i32
    %c0_i32_0 = arith.constant 0 : i32
    %c0_i32_1 = arith.constant 0 : i32
    return %arg0, %c0_i32, %c0_i32_0 : i32, i32, i32
  }
  func.func @transform_9(%arg0: i32) -> (i32, i32, i32) {
    %c0_i32 = arith.constant 0 : i32
    %c0_i32_0 = arith.constant 0 : i32
    %c0_i32_1 = arith.constant 0 : i32
    return %arg0, %c0_i32, %c0_i32_0 : i32, i32, i32
  }
  func.func @transform_10(%arg0: i32) -> (i32, i32, i32) {
    %c0_i32 = arith.constant 0 : i32
    %c0_i32_0 = arith.constant 0 : i32
    %c0_i32_1 = arith.constant 0 : i32
    return %arg0, %c0_i32, %c0_i32_0 : i32, i32, i32
  }
  func.func @transform_11(%arg0: i32) -> (i32, i32, i32) {
    %c0_i32 = arith.constant 0 : i32
    %c0_i32_0 = arith.constant 0 : i32
    %c0_i32_1 = arith.constant 0 : i32
    return %arg0, %c0_i32, %c0_i32_0 : i32, i32, i32
  }
  func.func @transform_12(%arg0: i32) -> (i32, i32, i32) {
    %c0_i32 = arith.constant 0 : i32
    %c0_i32_0 = arith.constant 0 : i32
    %c0_i32_1 = arith.constant 0 : i32
    return %arg0, %c0_i32, %c0_i32_0 : i32, i32, i32
  }
  func.func @transform_13(%arg0: i32) -> (i32, i32) {
    %c0_i32 = arith.constant 0 : i32
    %c0_i32_0 = arith.constant 0 : i32
    %c0_i32_1 = arith.constant 0 : i32
    return %c0_i32, %c0_i32_0 : i32, i32
  }
  func.func @transform_14(%arg0: i32) -> (i32, i32) {
    %c0_i32 = arith.constant 0 : i32
    %c0_i32_0 = arith.constant 0 : i32
    %c0_i32_1 = arith.constant 0 : i32
    return %c0_i32, %c0_i32_0 : i32, i32
  }
  func.func @transform_15(%arg0: i32) -> (i32, i32) {
    %c0_i32 = arith.constant 0 : i32
    %c0_i32_0 = arith.constant 0 : i32
    %c0_i32_1 = arith.constant 0 : i32
    return %c0_i32, %c0_i32_0 : i32, i32
  }
  func.func @transform_16(%arg0: i32) -> (i32, i32) {
    %c0_i32 = arith.constant 0 : i32
    %c0_i32_0 = arith.constant 0 : i32
    %c0_i32_1 = arith.constant 0 : i32
    return %c0_i32, %c0_i32_0 : i32, i32
  }
  func.func @transform_17(%arg0: i32) -> (i32, i32) {
    %c0_i32 = arith.constant 0 : i32
    %c0_i32_0 = arith.constant 0 : i32
    %c0_i32_1 = arith.constant 0 : i32
    return %c0_i32, %c0_i32_0 : i32, i32
  }
}

</mosaic_0001>

<llo_original>
// kernel: ibot_forward.2
$region0: #{ibot_forward.2}
  #allocation0 [shape = 'u32[]', space=smem, size = 0x4, offset = 0x4, fixed_abs, tag = 'smem constant byte address 0x4 - core index']
  #allocation1 [shape = 'u32[72,128]{1,0:T(1,128)}', space=vmem, size = 0x9000, scoped, tag = 'internal scratch']
  %s0 = inlined_call_operand.vmem [shape: bf16[32,192], index: 0, kind: input, shape index: {}]
  %s1 = inlined_call_operand.vmem [shape: bf16[192,128], index: 1, kind: input, shape index: {}]
  %s2 = inlined_call_operand.vmem [shape: f32[1,128], index: 2, kind: input, shape index: {}]
  %s3 = inlined_call_operand.vmem [shape: bf16[32,128], index: 3, kind: output, shape index: {}]
  %s4 = sld [smem:[#allocation0]]
  $region22: #{ibot_forward.2} parent=0
    _
  %s6 = ssub.s32 1, %s4
  %s7 = scalar_select 0, %s6, %s4
  // Predicated region
  $region2: #{ibot_forward.2} parent=0 // pred_check
    _
  $region3: #{ibot_forward.2} parent=0 // pred_check_branch
    %9 = sbr.rel (0) target = $region5
  $region4: #{ibot_forward.2} parent=0 // pred_region
    _
  $region5: #{ibot_forward.2} parent=0 // pred_fallthru
    _
  // Predicated region
  $region6: #{ibot_forward.2} parent=0 // pred_check
    _
  $region7: #{ibot_forward.2} parent=0 // pred_check_branch
    %11 = sbr.rel (0) target = $region9
  $region8: #{ibot_forward.2} parent=0 // pred_region
    _
  $region9: #{ibot_forward.2} parent=0 // pred_fallthru
    _
  // Predicated region
  $region10: #{ibot_forward.2} parent=0 // pred_check
    _
  $region11: #{ibot_forward.2} parent=0 // pred_check_branch
    %13 = sbr.rel (0) target = $region13
  $region12: #{ibot_forward.2} parent=0 // pred_region
    _
  $region13: #{ibot_forward.2} parent=0 // pred_fallthru
    _
  %v15 = vld [vmem:[%s0] sm:$0xff]
  %v16 = vld [vmem:[%s0 + $0x8] sm:$0xff]
  %v17 = vld [vmem:[%s0 + $0x10] sm:$0xff]
  %v18 = vld [vmem:[%s0 + $0x18] sm:$0xff]
  %v19 = vld [vmem:[%s1] sm:$0xf]
  %v20 = vld [vmem:[%s1 + $0x4] sm:$0xf]
  %v21 = vld [vmem:[%s1 + $0x8] sm:$0xf]
  %v22 = vld [vmem:[%s1 + $0xc] sm:$0xf]
  %v23 = vld [vmem:[%s1 + $0x10] sm:$0xf]
  %v24 = vld [vmem:[%s1 + $0x14] sm:$0xf]
  %v25 = vld [vmem:[%s1 + $0x18] sm:$0xf]
  %v26 = vld [vmem:[%s1 + $0x1c] sm:$0xf]
  %v27 = vld [vmem:[%s1 + $0x20] sm:$0xf]
  %v28 = vld [vmem:[%s1 + $0x24] sm:$0xf]
  %v29 = vld [vmem:[%s1 + $0x28] sm:$0xf]
  %v30 = vld [vmem:[%s1 + $0x2c] sm:$0xf]
  %v31 = vld [vmem:[%s1 + $0x30] sm:$0xf]
  %v32 = vld [vmem:[%s1 + $0x34] sm:$0xf]
  %v33 = vld [vmem:[%s1 + $0x38] sm:$0xf]
  %v34 = vld [vmem:[%s1 + $0x3c] sm:$0xf]
  %v35 = vld [vmem:[%s1 + $0x40] sm:$0xf]
  %v36 = vld [vmem:[%s1 + $0x44] sm:$0xf]
  %v37 = vld [vmem:[%s1 + $0x48] sm:$0xf]
  %v38 = vld [vmem:[%s1 + $0x4c] sm:$0xf]
  %v39 = vld [vmem:[%s1 + $0x50] sm:$0xf]
  %v40 = vld [vmem:[%s1 + $0x54] sm:$0xf]
  %v41 = vld [vmem:[%s1 + $0x58] sm:$0xf]
  %v42 = vld [vmem:[%s1 + $0x5c] sm:$0xf]
  %v43 = vld [vmem:[%s2] sm:$0x1]
  %v45 = vperm.slane %v43, 0
  %v51 = vunpack.c.l.b16 %v15
  %v52 = vunpack.c.h.b16 %v15
  %v53 = vunpack.c.l.b16 %v16
  %v54 = vunpack.c.h.b16 %v16
  %v55 = vunpack.c.l.b16 %v17
  %v56 = vunpack.c.h.b16 %v17
  %v57 = vunpack.c.l.b16 %v18
  %v58 = vunpack.c.h.b16 %v18
  %v59 = vpack.c.b16 %v53, %v51
  %v60 = vpack.c.b16 %v54, %v52
  %v61 = vpack.c.b16 %v57, %v55
  %v62 = vpack.c.b16 %v58, %v56
  %v89 = vunpack.c.l.b16 %v19
  %v90 = vunpack.c.l.b16 %v20
  %v91 = vunpack.c.l.b16 %v21
  %v92 = vunpack.c.l.b16 %v22
  %v93 = vunpack.c.l.b16 %v23
  %v94 = vunpack.c.l.b16 %v24
  %v95 = vunpack.c.l.b16 %v25
  %v96 = vunpack.c.l.b16 %v26
  %v97 = vunpack.c.l.b16 %v27
  %v98 = vunpack.c.l.b16 %v28
  %v99 = vunpack.c.l.b16 %v29
  %v100 = vunpack.c.l.b16 %v30
  %v101 = vunpack.c.l.b16 %v31
  %v102 = vunpack.c.l.b16 %v32
  %v103 = vunpack.c.l.b16 %v33
  %v104 = vunpack.c.l.b16 %v34
  %v105 = vunpack.c.l.b16 %v35
  %v106 = vunpack.c.l.b16 %v36
  %v107 = vunpack.c.l.b16 %v37
  %v108 = vunpack.c.l.b16 %v38
  %v109 = vunpack.c.l.b16 %v39
  %v110 = vunpack.c.l.b16 %v40
  %v111 = vunpack.c.l.b16 %v41
  %v112 = vunpack.c.l.b16 %v42
  %v113 = vpack.c.b16 %v90, %v89
  %v114 = vpack.c.b16 %v92, %v91
  %v115 = vpack.c.b16 %v94, %v93
  %v116 = vpack.c.b16 %v96, %v95
  %v117 = vpack.c.b16 %v98, %v97
  %v118 = vpack.c.b16 %v100, %v99
  %v119 = vpack.c.b16 %v102, %v101
  %v120 = vpack.c.b16 %v104, %v103
  %v121 = vpack.c.b16 %v106, %v105
  %v122 = vpack.c.b16 %v108, %v107
  %v123 = vpack.c.b16 %v110, %v109
  %v124 = vpack.c.b16 %v112, %v111
  %vm137 = vcmask 523264
  %v139 = vsel %vm137, %v60, 0
  %v142 = vsel %vm137, %v62, 0
  %144 = vmatpush.bf16.msra.mxu0 %v120
  %145 = vmatpush.bf16.msra.mxu0 %v119
  %146 = vmatpush.bf16.msra.mxu0 %v118
  %147 = vmatpush.bf16.msra.mxu0 %v117
  %148 = vmatpush.bf16.msra.mxu0 %v116
  %149 = vmatpush.bf16.msra.mxu0 %v115
  %150 = vmatpush.bf16.msra.mxu0 %v114
  %151 = vmatpush.bf16.msra.mxu0 %v113
  %152 = vmatmul.bf16.gmra.mxu0 %v59
  %v153 = vpop.f32.mrf.mxu0
  %v154 = vadd.f32 %v45, %v153
  %v155 = vpop.f32.mrf.mxu0
  %v156 = vadd.f32 %v45, %v155
  %157 = vmatmul.bf16.gmra.mxu0 %v61
  %v158 = vpop.f32.mrf.mxu0
  %v159 = vadd.f32 %v45, %v158
  %v160 = vpop.f32.mrf.mxu0
  %v161 = vadd.f32 %v45, %v160
  %162 = vdwg.mxu0
  %163 = vmatpush.bf16.msra.mxu0 0
  %164 = vmatpush.bf16.msra.mxu0 0
  %165 = vmatpush.bf16.msra.mxu0 0
  %166 = vmatpush.bf16.msra.mxu0 0
  %167 = vmatpush.bf16.msra.mxu0 %v124
  %168 = vmatpush.bf16.msra.mxu0 %v123
  %169 = vmatpush.bf16.msra.mxu0 %v122
  %170 = vmatpush.bf16.msra.mxu0 %v121
  %171 = vmatmul.bf16.gmra.mxu0 %v139
  %v172 = vpop.f32.mrf.mxu0
  %v173 = vadd.f32 %v154, %v172
  %v174 = vpop.f32.mrf.mxu0
  %v175 = vadd.f32 %v156, %v174
  %176 = vmatmul.bf16.gmra.mxu0 %v142
  %v177 = vpop.f32.mrf.mxu0
  %v178 = vadd.f32 %v159, %v177
  %v179 = vpop.f32.mrf.mxu0
  %v180 = vadd.f32 %v161, %v179
  %181 = vdwg.mxu0
  %v182 = vpack.c.bf16 %v173, %v173
  %v183 = vpack.c.bf16 %v175, %v175
  %v184 = vpack.c.bf16 %v178, %v178
  %v185 = vpack.c.bf16 %v180, %v180
  %186 = vst [vmem:[%s3] sm:$0xf] %v182
  %187 = vst [vmem:[%s3 + $0x4] sm:$0xf] %v183
  %188 = vst [vmem:[%s3 + $0x8] sm:$0xf] %v184
  %189 = vst [vmem:[%s3 + $0xc] sm:$0xf] %v185
  // Predicated region
  $region14: #{ibot_forward.2} parent=0 // pred_check
    _
  $region15: #{ibot_forward.2} parent=0 // pred_check_branch
    %191 = sbr.rel (0) target = $region17
  $region16: #{ibot_forward.2} parent=0 // pred_region
    _
  $region17: #{ibot_forward.2} parent=0 // pred_fallthru
    _
  // Predicated region
  $region18: #{ibot_forward.2} parent=0 // pred_check
    _
  $region19: #{ibot_forward.2} parent=0 // pred_check_branch
    %193 = sbr.rel (0) target = $region21
  $region20: #{ibot_forward.2} parent=0 // pred_region
    _
  $region21: #{ibot_forward.2} parent=0 // pred_fallthru
    _

// kernel: ibot_forward.3
$region0: #{ibot_forward.3}
  #allocation0 [shape = 'u32[]', space=smem, size = 0x4, offset = 0x4, fixed_abs, tag = 'smem constant byte address 0x4 - core index']
  #allocation1 [shape = 'u32[72,128]{1,0:T(1,128)}', space=vmem, size = 0x9000, scoped, tag = 'internal scratch']
  #allocation2 [shape = 'f32[48,128]{1,0:T(8,128)}', space=vmem, size = 0x6000, scoped, tag = 'scratch operand']
  #allocation3 [shape = 'bf16[48,128]{1,0:T(8,128)(2,1)}', space=vmem, size = 0x3000, scoped, tag = 'scratch operand']
  %s0 = inlined_call_operand.vmem [shape: bf16[48,128], index: 0, kind: input, shape index: {}]
  %s1 = inlined_call_operand.vmem [shape: f32[2,1,128], index: 1, kind: input, shape index: {}]
  %s2 = inlined_call_operand.vmem [shape: f32[2,1,128], index: 2, kind: input, shape index: {}]
  %s3 = inlined_call_operand.vmem [shape: bf16[2,128,384], index: 3, kind: input, shape index: {}]
  %s4 = inlined_call_operand.vmem [shape: f32[2,1,384], index: 4, kind: input, shape index: {}]
  %s5 = inlined_call_operand.vmem [shape: bf16[2,128,128], index: 5, kind: input, shape index: {}]
  %s6 = inlined_call_operand.vmem [shape: f32[2,1,128], index: 6, kind: input, shape index: {}]
  %s7 = inlined_call_operand.vmem [shape: f32[2,1,128], index: 7, kind: input, shape index: {}]
  %s8 = inlined_call_operand.vmem [shape: f32[2,1,128], index: 8, kind: input, shape index: {}]
  %s9 = inlined_call_operand.vmem [shape: bf16[2,128,512], index: 9, kind: input, shape index: {}]
  %s10 = inlined_call_operand.vmem [shape: f32[2,1,512], index: 10, kind: input, shape index: {}]
  %s11 = inlined_call_operand.vmem [shape: bf16[2,512,128], index: 11, kind: input, shape index: {}]
  %s12 = inlined_call_operand.vmem [shape: f32[2,1,128], index: 12, kind: input, shape index: {}]
  %s13 = inlined_call_operand.vmem [shape: f32[1,128], index: 13, kind: input, shape index: {}]
  %s14 = inlined_call_operand.vmem [shape: f32[1,128], index: 14, kind: input, shape index: {}]
  %s15 = inlined_call_operand.vmem [shape: bf16[128,128], index: 15, kind: input, shape index: {}]
  %s16 = inlined_call_operand.vmem [shape: f32[1,128], index: 16, kind: input, shape index: {}]
  %s17 = inlined_call_operand.hbm [shape: f32[2,128], index: 17, kind: output, shape index: {}]
  %s18 = sld [smem:[#allocation0]]
  $region109: #{ibot_forward.3} parent=0
    _
  %s20 = ssub.s32 1, %s18
  %s21 = scalar_select 0, %s20, %s18
  $region1: #{ibot_forward.3} parent=0
    #allocation4 [shape = 'u8[1024]{0}', space=vmem, size = 0x400, scoped, tag = 'output window, operand 0, single buffered']
    #allocation5 [shape = 's32[2]{0}', space=sflag, size = 0x8, scoped, tag = 'scoped memory for ibot_forward.3']
    %22 = vsyncpa [#allocation5], 0
    loop: start=0, step=1, limit=4
    $region2: #{ibot_forward.3} parent=1 // loop_pre_header
      _
    $region3: #{ibot_forward.3} parent=1 // loop_header
      %s24 = sphi 0, %s28
      %p25 = scmp.ge.s32.totalorder %s24, 4
      %s32 = sphi 0, %s32
      %s34 = sphi 0, %s32
      %s35 = sphi 0, %s34
      %s49 = sphi 0, %s35
      %s55 = sphi 0, %s57
      %s58 = sphi 0, %s55
      %s59 = sphi 0, %s58
      %s75 = sphi 0, %s59
      %s81 = sphi 0, %s83
      %s84 = sphi 0, %s81
      %s85 = sphi 0, %s84
      %s101 = sphi 0, %s85
      %s107 = sphi 0, %s109
      %s110 = sphi 0, %s107
      %s111 = sphi 0, %s110
      %s127 = sphi 0, %s111
      %s133 = sphi 0, %s135
      %s136 = sphi 0, %s133
      %s137 = sphi 0, %s136
      %s153 = sphi 0, %s137
      %s159 = sphi 0, %s161
      %s162 = sphi 0, %s159
      %s163 = sphi 0, %s162
      %s179 = sphi 0, %s163
      %s185 = sphi 0, %s187
      %s188 = sphi 0, %s185
      %s189 = sphi 0, %s188
      %s205 = sphi 0, %s189
      %s211 = sphi 0, %s213
      %s214 = sphi 0, %s211
      %s215 = sphi 0, %s214
      %s231 = sphi 0, %s215
      %s237 = sphi 0, %s239
      %s240 = sphi 0, %s237
      %s241 = sphi 0, %s240
      %s257 = sphi 0, %s241
      %s263 = sphi 0, %s265
      %s266 = sphi 0, %s263
      %s267 = sphi 0, %s266
      %s283 = sphi 0, %s267
      %s289 = sphi 0, %s291
      %s292 = sphi 0, %s289
      %s293 = sphi 0, %s292
      %s309 = sphi 0, %s293
      %s315 = sphi 0, %s317
      %s318 = sphi 0, %s315
      %s319 = sphi 0, %s318
      %s335 = sphi 0, %s319
      %s341 = sphi 0, %s343
      %s344 = sphi 0, %s341
      %s345 = sphi 0, %s344
      %s361 = sphi 0, %s345
      %s365 = sphi 0, %s365
      %s367 = sphi 0, %s365
      %s368 = sphi 0, %s367
      %s382 = sphi 0, %s368
      %s386 = sphi 0, %s386
      %s388 = sphi 0, %s386
      %s389 = sphi 0, %s388
      %s403 = sphi 0, %s389
      %s407 = sphi 0, %s407
      %s409 = sphi 0, %s407
      %s410 = sphi 0, %s409
      %s424 = sphi 0, %s410
      %s428 = sphi 0, %s428
      %s430 = sphi 0, %s428
      %s431 = sphi 0, %s430
      %s445 = sphi 0, %s431
      %s449 = sphi 0, %s449
      %s451 = sphi 0, %s449
      %s452 = sphi 0, %s451
      %s466 = sphi 0, %s452
    $region4: #{ibot_forward.3} parent=1 // loop_header_branch
      %27 = sbr.rel (%p25) target = $region8
    $region5: #{ibot_forward.3} parent=1 // loop_body
      %s29 = ssub.s32 %s24, 1
      %s30 = ssub.s32 %s24, 2
      %s31 = sadd.s32 %s24, 1
      %s33 = sadd.s32 %s32, 1
      %p36 = scmp.eq.s32.totalorder %s24, 1
      %p37 = scmp.ne.s32.totalorder %s32, %s34
      %p38 = scmp.eq.s32.totalorder %s24, 0
      %p39 = por %p37, %p38
      %p40 = scmp.ne.s32.totalorder %s32, %s34
      %p41 = scmp.eq.s32.totalorder %s29, 1
      %p42 = por %p40, %p41
      %p43 = scmp.ne.s32.totalorder %s34, %s35
      %p44 = scmp.eq.s32.totalorder %s29, 0
      %p45 = por %p43, %p44
      %p46 = scmp.ne.s32.totalorder %s34, %s35
      %p47 = scmp.eq.s32.totalorder %s30, 1
      %p48 = por %p46, %p47
      %p50 = scmp.ne.s32.totalorder %s35, %s49
      %p51 = scmp.eq.s32.totalorder %s30, 0
      %p52 = por %p50, %p51
      %s53 = ssub.s32 %s24, %s31
      %p54 = scmp.eq.s32.totalorder %s53, 0
      %s56 = sadd.s32 %s55, 1
      %s57 = scalar_select %p54, %s55, %s56
      %p60 = pneg %p54
      %p61 = scmp.eq.s32.totalorder %s24, 1
      %p62 = por %p60, %p61
      %p63 = scmp.ne.s32.totalorder %s55, %s58
      %p64 = scmp.eq.s32.totalorder %s24, 0
      %p65 = por %p63, %p64
      %p66 = scmp.ne.s32.totalorder %s55, %s58
      %p67 = scmp.eq.s32.totalorder %s29, 1
      %p68 = por %p66, %p67
      %p69 = scmp.ne.s32.totalorder %s58, %s59
      %p70 = scmp.eq.s32.totalorder %s29, 0
      %p71 = por %p69, %p70
      %p72 = scmp.ne.s32.totalorder %s58, %s59
      %p73 = scmp.eq.s32.totalorder %s30, 1
      %p74 = por %p72, %p73
      %p76 = scmp.ne.s32.totalorder %s59, %s75
      %p77 = scmp.eq.s32.totalorder %s30, 0
      %p78 = por %p76, %p77
      %s79 = ssub.s32 %s24, %s31
      %p80 = scmp.eq.s32.totalorder %s79, 0
      %s82 = sadd.s32 %s81, 1
      %s83 = scalar_select %p80, %s81, %s82
      %p86 = pneg %p80
      %p87 = scmp.eq.s32.totalorder %s24, 1
      %p88 = por %p86, %p87
      %p89 = scmp.ne.s32.totalorder %s81, %s84
      %p90 = scmp.eq.s32.totalorder %s24, 0
      %p91 = por %p89, %p90
      %p92 = scmp.ne.s32.totalorder %s81, %s84
      %p93 = scmp.eq.s32.totalorder %s29, 1
      %p94 = por %p92, %p93
      %p95 = scmp.ne.s32.totalorder %s84, %s85
      %p96 = scmp.eq.s32.totalorder %s29, 0
      %p97 = por %p95, %p96
      %p98 = scmp.ne.s32.totalorder %s84, %s85
      %p99 = scmp.eq.s32.totalorder %s30, 1
      %p100 = por %p98, %p99
      %p102 = scmp.ne.s32.totalorder %s85, %s101
      %p103 = scmp.eq.s32.totalorder %s30, 0
      %p104 = por %p102, %p103
      %s105 = ssub.s32 %s24, %s31
      %p106 = scmp.eq.s32.totalorder %s105, 0
      %s108 = sadd.s32 %s107, 1
      %s109 = scalar_select %p106, %s107, %s108
      %p112 = pneg %p106
      %p113 = scmp.eq.s32.totalorder %s24, 1
      %p114 = por %p112, %p113
      %p115 = scmp.ne.s32.totalorder %s107, %s110
      %p116 = scmp.eq.s32.totalorder %s24, 0
      %p117 = por %p115, %p116
      %p118 = scmp.ne.s32.totalorder %s107, %s110
      %p119 = scmp.eq.s32.totalorder %s29, 1
      %p120 = por %p118, %p119
      %p121 = scmp.ne.s32.totalorder %s110, %s111
      %p122 = scmp.eq.s32.totalorder %s29, 0
      %p123 = por %p121, %p122
      %p124 = scmp.ne.s32.totalorder %s110, %s111
      %p125 = scmp.eq.s32.totalorder %s30, 1
      %p126 = por %p124, %p125
      %p128 = scmp.ne.s32.totalorder %s111, %s127
      %p129 = scmp.eq.s32.totalorder %s30, 0
      %p130 = por %p128, %p129
      %s131 = ssub.s32 %s24, %s31
      %p132 = scmp.eq.s32.totalorder %s131, 0
      %s134 = sadd.s32 %s133, 1
      %s135 = scalar_select %p132, %s133, %s134
      %p138 = pneg %p132
      %p139 = scmp.eq.s32.totalorder %s24, 1
      %p140 = por %p138, %p139
      %p141 = scmp.ne.s32.totalorder %s133, %s136
      %p142 = scmp.eq.s32.totalorder %s24, 0
      %p143 = por %p141, %p142
      %p144 = scmp.ne.s32.totalorder %s133, %s136
      %p145 = scmp.eq.s32.totalorder %s29, 1
      %p146 = por %p144, %p145
      %p147 = scmp.ne.s32.totalorder %s136, %s137
      %p148 = scmp.eq.s32.totalorder %s29, 0
      %p149 = por %p147, %p148
      %p150 = scmp.ne.s32.totalorder %s136, %s137
      %p151 = scmp.eq.s32.totalorder %s30, 1
      %p152 = por %p150, %p151
      %p154 = scmp.ne.s32.totalorder %s137, %s153
      %p155 = scmp.eq.s32.totalorder %s30, 0
      %p156 = por %p154, %p155
      %s157 = ssub.s32 %s24, %s31
      %p158 = scmp.eq.s32.totalorder %s157, 0
      %s160 = sadd.s32 %s159, 1
      %s161 = scalar_select %p158, %s159, %s160
      %p164 = pneg %p158
      %p165 = scmp.eq.s32.totalorder %s24, 1
      %p166 = por %p164, %p165
      %p167 = scmp.ne.s32.totalorder %s159, %s162
      %p168 = scmp.eq.s32.totalorder %s24, 0
      %p169 = por %p167, %p168
      %p170 = scmp.ne.s32.totalorder %s159, %s162
      %p171 = scmp.eq.s32.totalorder %s29, 1
      %p172 = por %p170, %p171
      %p173 = scmp.ne.s32.totalorder %s162, %s163
      %p174 = scmp.eq.s32.totalorder %s29, 0
      %p175 = por %p173, %p174
      %p176 = scmp.ne.s32.totalorder %s162, %s163
      %p177 = scmp.eq.s32.totalorder %s30, 1
      %p178 = por %p176, %p177
      %p180 = scmp.ne.s32.totalorder %s163, %s179
      %p181 = scmp.eq.s32.totalorder %s30, 0
      %p182 = por %p180, %p181
      %s183 = ssub.s32 %s24, %s31
      %p184 = scmp.eq.s32.totalorder %s183, 0
      %s186 = sadd.s32 %s185, 1
      %s187 = scalar_select %p184, %s185, %s186
      %p190 = pneg %p184
      %p191 = scmp.eq.s32.totalorder %s24, 1
      %p192 = por %p190, %p191
      %p193 = scmp.ne.s32.totalorder %s185, %s188
      %p194 = scmp.eq.s32.totalorder %s24, 0
      %p195 = por %p193, %p194
      %p196 = scmp.ne.s32.totalorder %s185, %s188
      %p197 = scmp.eq.s32.totalorder %s29, 1
      %p198 = por %p196, %p197
      %p199 = scmp.ne.s32.totalorder %s188, %s189
      %p200 = scmp.eq.s32.totalorder %s29, 0
      %p201 = por %p199, %p200
      %p202 = scmp.ne.s32.totalorder %s188, %s189
      %p203 = scmp.eq.s32.totalorder %s30, 1
      %p204 = por %p202, %p203
      %p206 = scmp.ne.s32.totalorder %s189, %s205
      %p207 = scmp.eq.s32.totalorder %s30, 0
      %p208 = por %p206, %p207
      %s209 = ssub.s32 %s24, %s31
      %p210 = scmp.eq.s32.totalorder %s209, 0
      %s212 = sadd.s32 %s211, 1
      %s213 = scalar_select %p210, %s211, %s212
      %p216 = pneg %p210
      %p217 = scmp.eq.s32.totalorder %s24, 1
      %p218 = por %p216, %p217
      %p219 = scmp.ne.s32.totalorder %s211, %s214
      %p220 = scmp.eq.s32.totalorder %s24, 0
      %p221 = por %p219, %p220
      %p222 = scmp.ne.s32.totalorder %s211, %s214
      %p223 = scmp.eq.s32.totalorder %s29, 1
      %p224 = por %p222, %p223
      %p225 = scmp.ne.s32.totalorder %s214, %s215
      %p226 = scmp.eq.s32.totalorder %s29, 0
      %p227 = por %p225, %p226
      %p228 = scmp.ne.s32.totalorder %s214, %s215
      %p229 = scmp.eq.s32.totalorder %s30, 1
      %p230 = por %p228, %p229
      %p232 = scmp.ne.s32.totalorder %s215, %s231
      %p233 = scmp.eq.s32.totalorder %s30, 0
      %p234 = por %p232, %p233
      %s235 = ssub.s32 %s24, %s31
      %p236 = scmp.eq.s32.totalorder %s235, 0
      %s238 = sadd.s32 %s237, 1
      %s239 = scalar_select %p236, %s237, %s238
      %p242 = pneg %p236
      %p243 = scmp.eq.s32.totalorder %s24, 1
      %p244 = por %p242, %p243
      %p245 = scmp.ne.s32.totalorder %s237, %s240
      %p246 = scmp.eq.s32.totalorder %s24, 0
      %p247 = por %p245, %p246
      %p248 = scmp.ne.s32.totalorder %s237, %s240
      %p249 = scmp.eq.s32.totalorder %s29, 1
      %p250 = por %p248, %p249
      %p251 = scmp.ne.s32.totalorder %s240, %s241
      %p252 = scmp.eq.s32.totalorder %s29, 0
      %p253 = por %p251, %p252
      %p254 = scmp.ne.s32.totalorder %s240, %s241
      %p255 = scmp.eq.s32.totalorder %s30, 1
      %p256 = por %p254, %p255
      %p258 = scmp.ne.s32.totalorder %s241, %s257
      %p259 = scmp.eq.s32.totalorder %s30, 0
      %p260 = por %p258, %p259
      %s261 = ssub.s32 %s24, %s31
      %p262 = scmp.eq.s32.totalorder %s261, 0
      %s264 = sadd.s32 %s263, 1
      %s265 = scalar_select %p262, %s263, %s264
      %p268 = pneg %p262
      %p269 = scmp.eq.s32.totalorder %s24, 1
      %p270 = por %p268, %p269
      %p271 = scmp.ne.s32.totalorder %s263, %s266
      %p272 = scmp.eq.s32.totalorder %s24, 0
      %p273 = por %p271, %p272
      %p274 = scmp.ne.s32.totalorder %s263, %s266
      %p275 = scmp.eq.s32.totalorder %s29, 1
      %p276 = por %p274, %p275
      %p277 = scmp.ne.s32.totalorder %s266, %s267
      %p278 = scmp.eq.s32.totalorder %s29, 0
      %p279 = por %p277, %p278
      %p280 = scmp.ne.s32.totalorder %s266, %s267
      %p281 = scmp.eq.s32.totalorder %s30, 1
      %p282 = por %p280, %p281
      %p284 = scmp.ne.s32.totalorder %s267, %s283
      %p285 = scmp.eq.s32.totalorder %s30, 0
      %p286 = por %p284, %p285
      %s287 = ssub.s32 %s24, %s31
      %p288 = scmp.eq.s32.totalorder %s287, 0
      %s290 = sadd.s32 %s289, 1
      %s291 = scalar_select %p288, %s289, %s290
      %p294 = pneg %p288
      %p295 = scmp.eq.s32.totalorder %s24, 1
      %p296 = por %p294, %p295
      %p297 = scmp.ne.s32.totalorder %s289, %s292
      %p298 = scmp.eq.s32.totalorder %s24, 0
      %p299 = por %p297, %p298
      %p300 = scmp.ne.s32.totalorder %s289, %s292
      %p301 = scmp.eq.s32.totalorder %s29, 1
      %p302 = por %p300, %p301
      %p303 = scmp.ne.s32.totalorder %s292, %s293
      %p304 = scmp.eq.s32.totalorder %s29, 0
      %p305 = por %p303, %p304
      %p306 = scmp.ne.s32.totalorder %s292, %s293
      %p307 = scmp.eq.s32.totalorder %s30, 1
      %p308 = por %p306, %p307
      %p310 = scmp.ne.s32.totalorder %s293, %s309
      %p311 = scmp.eq.s32.totalorder %s30, 0
      %p312 = por %p310, %p311
      %s313 = ssub.s32 %s24, %s31
      %p314 = scmp.eq.s32.totalorder %s313, 0
      %s316 = sadd.s32 %s315, 1
      %s317 = scalar_select %p314, %s315, %s316
      %p320 = pneg %p314
      %p321 = scmp.eq.s32.totalorder %s24, 1
      %p322 = por %p320, %p321
      %p323 = scmp.ne.s32.totalorder %s315, %s318
      %p324 = scmp.eq.s32.totalorder %s24, 0
      %p325 = por %p323, %p324
      %p326 = scmp.ne.s32.totalorder %s315, %s318
      %p327 = scmp.eq.s32.totalorder %s29, 1
      %p328 = por %p326, %p327
      %p329 = scmp.ne.s32.totalorder %s318, %s319
      %p330 = scmp.eq.s32.totalorder %s29, 0
      %p331 = por %p329, %p330
      %p332 = scmp.ne.s32.totalorder %s318, %s319
      %p333 = scmp.eq.s32.totalorder %s30, 1
      %p334 = por %p332, %p333
      %p336 = scmp.ne.s32.totalorder %s319, %s335
      %p337 = scmp.eq.s32.totalorder %s30, 0
      %p338 = por %p336, %p337
      %s339 = ssub.s32 %s24, %s31
      %p340 = scmp.eq.s32.totalorder %s339, 0
      %s342 = sadd.s32 %s341, 1
      %s343 = scalar_select %p340, %s341, %s342
      %p346 = pneg %p340
      %p347 = scmp.eq.s32.totalorder %s24, 1
      %p348 = por %p346, %p347
      %p349 = scmp.ne.s32.totalorder %s341, %s344
      %p350 = scmp.eq.s32.totalorder %s24, 0
      %p351 = por %p349, %p350
      %p352 = scmp.ne.s32.totalorder %s341, %s344
      %p353 = scmp.eq.s32.totalorder %s29, 1
      %p354 = por %p352, %p353
      %p355 = scmp.ne.s32.totalorder %s344, %s345
      %p356 = scmp.eq.s32.totalorder %s29, 0
      %p357 = por %p355, %p356
      %p358 = scmp.ne.s32.totalorder %s344, %s345
      %p359 = scmp.eq.s32.totalorder %s30, 1
      %p360 = por %p358, %p359
      %p362 = scmp.ne.s32.totalorder %s345, %s361
      %p363 = scmp.eq.s32.totalorder %s30, 0
      %p364 = por %p362, %p363
      %s366 = sadd.s32 %s365, 1
      %p369 = scmp.eq.s32.totalorder %s24, 1
      %p370 = scmp.ne.s32.totalorder %s365, %s367
      %p371 = scmp.eq.s32.totalorder %s24, 0
      %p372 = por %p370, %p371
      %p373 = scmp.ne.s32.totalorder %s365, %s367
      %p374 = scmp.eq.s32.totalorder %s29, 1
      %p375 = por %p373, %p374
      %p376 = scmp.ne.s32.totalorder %s367, %s368
      %p377 = scmp.eq.s32.totalorder %s29, 0
      %p378 = por %p376, %p377
      %p379 = scmp.ne.s32.totalorder %s367, %s368
      %p380 = scmp.eq.s32.totalorder %s30, 1
      %p381 = por %p379, %p380
      %p383 = scmp.ne.s32.totalorder %s368, %s382
      %p384 = scmp.eq.s32.totalorder %s30, 0
      %p385 = por %p383, %p384
      %s387 = sadd.s32 %s386, 1
      %p390 = scmp.eq.s32.totalorder %s24, 1
      %p391 = scmp.ne.s32.totalorder %s386, %s388
      %p392 = scmp.eq.s32.totalorder %s24, 0
      %p393 = por %p391, %p392
      %p394 = scmp.ne.s32.totalorder %s386, %s388
      %p395 = scmp.eq.s32.totalorder %s29, 1
      %p396 = por %p394, %p395
      %p397 = scmp.ne.s32.totalorder %s388, %s389
      %p398 = scmp.eq.s32.totalorder %s29, 0
      %p399 = por %p397, %p398
      %p400 = scmp.ne.s32.totalorder %s388, %s389
      %p401 = scmp.eq.s32.totalorder %s30, 1
      %p402 = por %p400, %p401
      %p404 = scmp.ne.s32.totalorder %s389, %s403
      %p405 = scmp.eq.s32.totalorder %s30, 0
      %p406 = por %p404, %p405
      %s408 = sadd.s32 %s407, 1
      %p411 = scmp.eq.s32.totalorder %s24, 1
      %p412 = scmp.ne.s32.totalorder %s407, %s409
      %p413 = scmp.eq.s32.totalorder %s24, 0
      %p414 = por %p412, %p413
      %p415 = scmp.ne.s32.totalorder %s407, %s409
      %p416 = scmp.eq.s32.totalorder %s29, 1
      %p417 = por %p415, %p416
      %p418 = scmp.ne.s32.totalorder %s409, %s410
      %p419 = scmp.eq.s32.totalorder %s29, 0
      %p420 = por %p418, %p419
      %p421 = scmp.ne.s32.totalorder %s409, %s410
      %p422 = scmp.eq.s32.totalorder %s30, 1
      %p423 = por %p421, %p422
      %p425 = scmp.ne.s32.totalorder %s410, %s424
      %p426 = scmp.eq.s32.totalorder %s30, 0
      %p427 = por %p425, %p426
      %s429 = sadd.s32 %s428, 1
      %p432 = scmp.eq.s32.totalorder %s24, 1
      %p433 = scmp.ne.s32.totalorder %s428, %s430
      %p434 = scmp.eq.s32.totalorder %s24, 0
      %p435 = por %p433, %p434
      %p436 = scmp.ne.s32.totalorder %s428, %s430
      %p437 = scmp.eq.s32.totalorder %s29, 1
      %p438 = por %p436, %p437
      %p439 = scmp.ne.s32.totalorder %s430, %s431
      %p440 = scmp.eq.s32.totalorder %s29, 0
      %p441 = por %p439, %p440
      %p442 = scmp.ne.s32.totalorder %s430, %s431
      %p443 = scmp.eq.s32.totalorder %s30, 1
      %p444 = por %p442, %p443
      %p446 = scmp.ne.s32.totalorder %s431, %s445
      %p447 = scmp.eq.s32.totalorder %s30, 0
      %p448 = por %p446, %p447
      %s450 = sadd.s32 %s449, 1
      %p453 = scmp.eq.s32.totalorder %s24, 1
      %p454 = scmp.ne.s32.totalorder %s449, %s451
      %p455 = scmp.eq.s32.totalorder %s24, 0
      %p456 = por %p454, %p455
      %p457 = scmp.ne.s32.totalorder %s449, %s451
      %p458 = scmp.eq.s32.totalorder %s29, 1
      %p459 = por %p457, %p458
      %p460 = scmp.ne.s32.totalorder %s451, %s452
      %p461 = scmp.eq.s32.totalorder %s29, 0
      %p462 = por %p460, %p461
      %p463 = scmp.ne.s32.totalorder %s451, %s452
      %p464 = scmp.eq.s32.totalorder %s30, 1
      %p465 = por %p463, %p464
      %p467 = scmp.ne.s32.totalorder %s452, %s466
      %p468 = scmp.eq.s32.totalorder %s30, 0
      %p469 = por %p467, %p468
      %p470 = scmp.le.s32.totalorder 1, %s24
      %p471 = scmp.lt.s32.totalorder %s24, 3
      %p472 = pnand %p470, %p471
      %p473 = pneg %p472
      // Predicated region
      $region9: #{ibot_forward.3} parent=5 // pred_check
        _
      $region10: #{ibot_forward.3} parent=5 // pred_check_branch
        %475 = sbr.rel (%p472) target = $region12
      $region11: #{ibot_forward.3} parent=5 // pred_region
        %s476 = ssub.s32 %s24, 1
        // Predicated region
        $region13: #{ibot_forward.3} parent=11 // pred_check
          %p477 = pneg %p45
        $region14: #{ibot_forward.3} parent=11 // pred_check_branch
          %479 = sbr.rel (%p477) target = $region16
        $region15: #{ibot_forward.3} parent=11 // pred_region
          _
        $region16: #{ibot_forward.3} parent=11 // pred_fallthru
          _
        // Predicated region
        $region17: #{ibot_forward.3} parent=11 // pred_check
          %p480 = pneg %p378
        $region18: #{ibot_forward.3} parent=11 // pred_check_branch
          %482 = sbr.rel (%p480) target = $region20
        $region19: #{ibot_forward.3} parent=11 // pred_region
          _
        $region20: #{ibot_forward.3} parent=11 // pred_fallthru
          _
        // Predicated region
        $region21: #{ibot_forward.3} parent=11 // pred_check
          %p483 = pneg %p399
        $region22: #{ibot_forward.3} parent=11 // pred_check_branch
          %485 = sbr.rel (%p483) target = $region24
        $region23: #{ibot_forward.3} parent=11 // pred_region
          _
        $region24: #{ibot_forward.3} parent=11 // pred_fallthru
          _
        // Predicated region
        $region25: #{ibot_forward.3} parent=11 // pred_check
          %p486 = pneg %p420
        $region26: #{ibot_forward.3} parent=11 // pred_check_branch
          %488 = sbr.rel (%p486) target = $region28
        $region27: #{ibot_forward.3} parent=11 // pred_region
          _
        $region28: #{ibot_forward.3} parent=11 // pred_fallthru
          _
        // Predicated region
        $region29: #{ibot_forward.3} parent=11 // pred_check
          %p489 = pneg %p441
        $region30: #{ibot_forward.3} parent=11 // pred_check_branch
          %491 = sbr.rel (%p489) target = $region32
        $region31: #{ibot_forward.3} parent=11 // pred_region
          _
        $region32: #{ibot_forward.3} parent=11 // pred_fallthru
          _
      $region12: #{ibot_forward.3} parent=5 // pred_fallthru
        _
      %p492 = scmp.lt.s32.totalorder %s24, 2
      // Predicated region
      $region33: #{ibot_forward.3} parent=5 // pred_check
        %p493 = pneg %p492
      $region34: #{ibot_forward.3} parent=5 // pred_check_branch
        %495 = sbr.rel (%p493) target = $region36
      $region35: #{ibot_forward.3} parent=5 // pred_region
        // Predicated region
        $region37: #{ibot_forward.3} parent=35 // pred_check
          %p496 = pneg %p65
        $region38: #{ibot_forward.3} parent=35 // pred_check_branch
          %498 = sbr.rel (%p496) target = $region40
        $region39: #{ibot_forward.3} parent=35 // pred_region
          %p499 = scmp.lt.s32.totalorder %s24, 1
          %s500 = scalar_select %p499, %s24, 1
          %s501 = scalar_lea.vmem %s1, %s500
        $region40: #{ibot_forward.3} parent=35 // pred_fallthru
          _
        // Predicated region
        $region41: #{ibot_forward.3} parent=35 // pred_check
          %p502 = pneg %p91
        $region42: #{ibot_forward.3} parent=35 // pred_check_branch
          %504 = sbr.rel (%p502) target = $region44
        $region43: #{ibot_forward.3} parent=35 // pred_region
          %p505 = scmp.lt.s32.totalorder %s24, 1
          %s506 = scalar_select %p505, %s24, 1
          %s507 = scalar_lea.vmem %s2, %s506
        $region44: #{ibot_forward.3} parent=35 // pred_fallthru
          _
        // Predicated region
        $region45: #{ibot_forward.3} parent=35 // pred_check
          %p508 = pneg %p117
        $region46: #{ibot_forward.3} parent=35 // pred_check_branch
          %510 = sbr.rel (%p508) target = $region48
        $region47: #{ibot_forward.3} parent=35 // pred_region
          %p511 = scmp.lt.s32.totalorder %s24, 1
          %s512 = scalar_select %p511, %s24, 1
          %s513 = smul.addr %s512, 48
          %s514 = smul.addr %s513, 4
          %s515 = scalar_lea.vmem %s3, %s514
        $region48: #{ibot_forward.3} parent=35 // pred_fallthru
          _
        // Predicated region
        $region49: #{ibot_forward.3} parent=35 // pred_check
          %p516 = pneg %p143
        $region50: #{ibot_forward.3} parent=35 // pred_check_branch
          %518 = sbr.rel (%p516) target = $region52
        $region51: #{ibot_forward.3} parent=35 // pred_region
          %p519 = scmp.lt.s32.totalorder %s24, 1
          %s520 = scalar_select %p519, %s24, 1
          %s521 = smul.addr %s520, 3
          %s522 = scalar_lea.vmem %s4, %s521
        $region52: #{ibot_forward.3} parent=35 // pred_fallthru
          _
        // Predicated region
        $region53: #{ibot_forward.3} parent=35 // pred_check
          %p523 = pneg %p169
        $region54: #{ibot_forward.3} parent=35 // pred_check_branch
          %525 = sbr.rel (%p523) target = $region56
        $region55: #{ibot_forward.3} parent=35 // pred_region
          %p526 = scmp.lt.s32.totalorder %s24, 1
          %s527 = scalar_select %p526, %s24, 1
          %s528 = smul.addr %s527, 16
          %s529 = smul.addr %s528, 4
          %s530 = scalar_lea.vmem %s5, %s529
        $region56: #{ibot_forward.3} parent=35 // pred_fallthru
          _
        // Predicated region
        $region57: #{ibot_forward.3} parent=35 // pred_check
          %p531 = pneg %p195
        $region58: #{ibot_forward.3} parent=35 // pred_check_branch
          %533 = sbr.rel (%p531) target = $region60
        $region59: #{ibot_forward.3} parent=35 // pred_region
          %p534 = scmp.lt.s32.totalorder %s24, 1
          %s535 = scalar_select %p534, %s24, 1
          %s536 = scalar_lea.vmem %s6, %s535
        $region60: #{ibot_forward.3} parent=35 // pred_fallthru
          _
        // Predicated region
        $region61: #{ibot_forward.3} parent=35 // pred_check
          %p537 = pneg %p221
        $region62: #{ibot_forward.3} parent=35 // pred_check_branch
          %539 = sbr.rel (%p537) target = $region64
        $region63: #{ibot_forward.3} parent=35 // pred_region
          %p540 = scmp.lt.s32.totalorder %s24, 1
          %s541 = scalar_select %p540, %s24, 1
          %s542 = scalar_lea.vmem %s7, %s541
        $region64: #{ibot_forward.3} parent=35 // pred_fallthru
          _
        // Predicated region
        $region65: #{ibot_forward.3} parent=35 // pred_check
          %p543 = pneg %p247
        $region66: #{ibot_forward.3} parent=35 // pred_check_branch
          %545 = sbr.rel (%p543) target = $region68
        $region67: #{ibot_forward.3} parent=35 // pred_region
          %p546 = scmp.lt.s32.totalorder %s24, 1
          %s547 = scalar_select %p546, %s24, 1
          %s548 = scalar_lea.vmem %s8, %s547
        $region68: #{ibot_forward.3} parent=35 // pred_fallthru
          _
        // Predicated region
        $region69: #{ibot_forward.3} parent=35 // pred_check
          %p549 = pneg %p273
        $region70: #{ibot_forward.3} parent=35 // pred_check_branch
          %551 = sbr.rel (%p549) target = $region72
        $region71: #{ibot_forward.3} parent=35 // pred_region
          %p552 = scmp.lt.s32.totalorder %s24, 1
          %s553 = scalar_select %p552, %s24, 1
          %s554 = smul.addr %s553, 64
          %s555 = smul.addr %s554, 4
          %s556 = scalar_lea.vmem %s9, %s555
        $region72: #{ibot_forward.3} parent=35 // pred_fallthru
          _
        // Predicated region
        $region73: #{ibot_forward.3} parent=35 // pred_check
          %p557 = pneg %p299
        $region74: #{ibot_forward.3} parent=35 // pred_check_branch
          %559 = sbr.rel (%p557) target = $region76
        $region75: #{ibot_forward.3} parent=35 // pred_region
          %p560 = scmp.lt.s32.totalorder %s24, 1
          %s561 = scalar_select %p560, %s24, 1
          %s562 = smul.addr %s561, 4
          %s563 = scalar_lea.vmem %s10, %s562
        $region76: #{ibot_forward.3} parent=35 // pred_fallthru
          _
        // Predicated region
        $region77: #{ibot_forward.3} parent=35 // pred_check
          %p564 = pneg %p325
        $region78: #{ibot_forward.3} parent=35 // pred_check_branch
          %566 = sbr.rel (%p564) target = $region80
        $region79: #{ibot_forward.3} parent=35 // pred_region
          %p567 = scmp.lt.s32.totalorder %s24, 1
          %s568 = scalar_select %p567, %s24, 1
          %s569 = smul.addr %s568, 64
          %s570 = smul.addr %s569, 4
          %s571 = scalar_lea.vmem %s11, %s570
        $region80: #{ibot_forward.3} parent=35 // pred_fallthru
          _
        // Predicated region
        $region81: #{ibot_forward.3} parent=35 // pred_check
          %p572 = pneg %p351
        $region82: #{ibot_forward.3} parent=35 // pred_check_branch
          %574 = sbr.rel (%p572) target = $region84
        $region83: #{ibot_forward.3} parent=35 // pred_region
          %p575 = scmp.lt.s32.totalorder %s24, 1
          %s576 = scalar_select %p575, %s24, 1
          %s577 = scalar_lea.vmem %s12, %s576
        $region84: #{ibot_forward.3} parent=35 // pred_fallthru
          _
      $region36: #{ibot_forward.3} parent=5 // pred_fallthru
        _
      %p578 = scmp.le.s32.totalorder 1, %s24
      %p579 = scmp.lt.s32.totalorder %s24, 3
      %p580 = pnand %p578, %p579
      %p581 = pneg %p580
      // Predicated region
      $region85: #{ibot_forward.3} parent=5 // pred_check
        _
      $region86: #{ibot_forward.3} parent=5 // pred_check_branch
        %583 = sbr.rel (%p580) target = $region88
      $region87: #{ibot_forward.3} parent=5 // pred_region
        %s584 = ssub.s32 %s24, 1
        %p585 = pneg %p45
        %p586 = pneg %p42
        %p587 = scmp.lt.s32.totalorder %s29, 1
        %s588 = scalar_select %p587, %s29, 1
        %s589 = scalar_lea.vmem %s1, %s588
        %p590 = pneg %p71
        %p591 = pneg %p68
        %p592 = scmp.lt.s32.totalorder %s29, 1
        %s593 = scalar_select %p592, %s29, 1
        %s594 = scalar_lea.vmem %s2, %s593
        %p595 = pneg %p97
        %p596 = pneg %p94
        %p597 = scmp.lt.s32.totalorder %s29, 1
        %s598 = scalar_select %p597, %s29, 1
        %s599 = smul.addr %s598, 48
        %s600 = smul.addr %s599, 4
        %s601 = scalar_lea.vmem %s3, %s600
        %p602 = pneg %p123
        %p603 = pneg %p120
        %p604 = scmp.lt.s32.totalorder %s29, 1
        %s605 = scalar_select %p604, %s29, 1
        %s606 = smul.addr %s605, 3
        %s607 = scalar_lea.vmem %s4, %s606
        %p608 = pneg %p149
        %p609 = pneg %p146
        %p610 = scmp.lt.s32.totalorder %s29, 1
        %s611 = scalar_select %p610, %s29, 1
        %s612 = smul.addr %s611, 16
        %s613 = smul.addr %s612, 4
        %s614 = scalar_lea.vmem %s5, %s613
        %p615 = pneg %p175
        %p616 = pneg %p172
        %p617 = scmp.lt.s32.totalorder %s29, 1
        %s618 = scalar_select %p617, %s29, 1
        %s619 = scalar_lea.vmem %s6, %s618
        %p620 = pneg %p201
        %p621 = pneg %p198
        %p622 = scmp.lt.s32.totalorder %s29, 1
        %s623 = scalar_select %p622, %s29, 1
        %s624 = scalar_lea.vmem %s7, %s623
        %p625 = pneg %p227
        %p626 = pneg %p224
        %p627 = scmp.lt.s32.totalorder %s29, 1
        %s628 = scalar_select %p627, %s29, 1
        %s629 = scalar_lea.vmem %s8, %s628
        %p630 = pneg %p253
        %p631 = pneg %p250
        %p632 = scmp.lt.s32.totalorder %s29, 1
        %s633 = scalar_select %p632, %s29, 1
        %s634 = smul.addr %s633, 64
        %s635 = smul.addr %s634, 4
        %s636 = scalar_lea.vmem %s9, %s635
        %p637 = pneg %p279
        %p638 = pneg %p276
        %p639 = scmp.lt.s32.totalorder %s29, 1
        %s640 = scalar_select %p639, %s29, 1
        %s641 = smul.addr %s640, 4
        %s642 = scalar_lea.vmem %s10, %s641
        %p643 = pneg %p305
        %p644 = pneg %p302
        %p645 = scmp.lt.s32.totalorder %s29, 1
        %s646 = scalar_select %p645, %s29, 1
        %s647 = smul.addr %s646, 64
        %s648 = smul.addr %s647, 4
        %s649 = scalar_lea.vmem %s11, %s648
        %p650 = pneg %p331
        %p651 = pneg %p328
        %p652 = scmp.lt.s32.totalorder %s29, 1
        %s653 = scalar_select %p652, %s29, 1
        %s654 = scalar_lea.vmem %s12, %s653
        %p655 = pneg %p357
        %p656 = pneg %p354
        %p657 = pneg %p378
        %p658 = pneg %p375
        %p659 = pneg %p399
        %p660 = pneg %p396
        %p661 = pneg %p420
        %p662 = pneg %p417
        %p663 = pneg %p441
        %p664 = pneg %p438
        %p665 = pneg %p462
        %p666 = pneg %p459
        %p667 = scmp.lt.s32.totalorder %s29, 1
        %s668 = scalar_select %p667, %s29, 1
        %s669 = scalar_lea.vmem %s1, %s668
        %p670 = scmp.lt.s32.totalorder %s29, 1
        %s671 = scalar_select %p670, %s29, 1
        %s672 = scalar_lea.vmem %s2, %s671
        %p673 = scmp.lt.s32.totalorder %s29, 1
        %s674 = scalar_select %p673, %s29, 1
        %s675 = smul.addr %s674, 48
        %s676 = smul.addr %s675, 4
        %s677 = scalar_lea.vmem %s3, %s676
        %p678 = scmp.lt.s32.totalorder %s29, 1
        %s679 = scalar_select %p678, %s29, 1
        %s680 = smul.addr %s679, 3
        %s681 = scalar_lea.vmem %s4, %s680
        %p682 = scmp.lt.s32.totalorder %s29, 1
        %s683 = scalar_select %p682, %s29, 1
        %s684 = smul.addr %s683, 16
        %s685 = smul.addr %s684, 4
        %s686 = scalar_lea.vmem %s5, %s685
        %p687 = scmp.lt.s32.totalorder %s29, 1
        %s688 = scalar_select %p687, %s29, 1
        %s689 = scalar_lea.vmem %s6, %s688
        %p690 = scmp.lt.s32.totalorder %s29, 1
        %s691 = scalar_select %p690, %s29, 1
        %s692 = scalar_lea.vmem %s7, %s691
        %p693 = scmp.lt.s32.totalorder %s29, 1
        %s694 = scalar_select %p693, %s29, 1
        %s695 = scalar_lea.vmem %s8, %s694
        %p696 = scmp.lt.s32.totalorder %s29, 1
        %s697 = scalar_select %p696, %s29, 1
        %s698 = smul.addr %s697, 64
        %s699 = smul.addr %s698, 4
        %s700 = scalar_lea.vmem %s9, %s699
        %p701 = scmp.lt.s32.totalorder %s29, 1
        %s702 = scalar_select %p701, %s29, 1
        %s703 = smul.addr %s702, 4
        %s704 = scalar_lea.vmem %s10, %s703
        %p705 = scmp.lt.s32.totalorder %s29, 1
        %s706 = scalar_select %p705, %s29, 1
        %s707 = smul.addr %s706, 64
        %s708 = smul.addr %s707, 4
        %s709 = scalar_lea.vmem %s11, %s708
        %p710 = scmp.lt.s32.totalorder %s29, 1
        %s711 = scalar_select %p710, %s29, 1
        %s712 = scalar_lea.vmem %s12, %s711
        %p714 = scmp.eq.s32.totalorder %s29, 0
        // Predicated region
        $region89: #{ibot_forward.3} parent=87 // pred_check
          %p715 = pneg %p714
        $region90: #{ibot_forward.3} parent=87 // pred_check_branch
          %717 = sbr.rel (%p715) target = $region92
        $region91: #{ibot_forward.3} parent=87 // pred_region
          %v718 = vld [vmem:[%s0] sm:$0xf]
          %v719 = vld [vmem:[%s0 + $0x4] sm:$0xf]
          %v720 = vld [vmem:[%s0 + $0x8] sm:$0xf]
          %v721 = vld [vmem:[%s0 + $0xc] sm:$0xf]
          %v722 = vld [vmem:[%s0 + $0x10] sm:$0xf]
          %v723 = vld [vmem:[%s0 + $0x14] sm:$0xf]
          %v724 = vunpack.c.l.bf16 %v718
          %v725 = vunpack.c.l.bf16 %v719
          %v726 = vunpack.c.l.bf16 %v720
          %v727 = vunpack.c.l.bf16 %v721
          %v728 = vunpack.c.l.bf16 %v722
          %v729 = vunpack.c.l.bf16 %v723
          %730 = vst [vmem:[#allocation2] sm:$0xff] %v724
          %731 = vst [vmem:[#allocation2 + $0x8] sm:$0xff] %v725
          %732 = vst [vmem:[#allocation2 + $0x10] sm:$0xff] %v726
          %733 = vst [vmem:[#allocation2 + $0x18] sm:$0xff] %v727
          %734 = vst [vmem:[#allocation2 + $0x20] sm:$0xff] %v728
          %735 = vst [vmem:[#allocation2 + $0x28] sm:$0xff] %v729
        $region92: #{ibot_forward.3} parent=87 // pred_fallthru
          _
        %v736 = vld [vmem:[#allocation2] sm:$0xff]
        %v737 = vld [vmem:[#allocation2 + $0x8] sm:$0xff]
        %v738 = vld [vmem:[#allocation2 + $0x10] sm:$0xff]
        %v739 = vld [vmem:[#allocation2 + $0x18] sm:$0xff]
        %v740 = vld [vmem:[#allocation2 + $0x20] sm:$0xff]
        %v741 = vld [vmem:[#allocation2 + $0x28] sm:$0xff]
        %v742 = vlaneseq
        %v743 = vand.u32 %v742, 127
        %vm744 = vcmp.lt.s32.totalorder %v743, 17
        %v745 = vsel %vm744, 0.0, -1e+30
        %v746 = vld [vmem:[%s669] sm:$0x1]
        %v747 = vld [vmem:[%s672] sm:$0x1]
        %748 = vadd.xlane.f32.xlu0 %v736
        %v749 = vpop.xlane.xlu0 %748
        %750 = vadd.xlane.f32.xlu0 %v737
        %v751 = vpop.xlane.xlu0 %750
        %752 = vadd.xlane.f32.xlu0 %v738
        %v753 = vpop.xlane.xlu0 %752
        %754 = vadd.xlane.f32.xlu0 %v739
        %v755 = vpop.xlane.xlu0 %754
        %756 = vadd.xlane.f32.xlu0 %v740
        %v757 = vpop.xlane.xlu0 %756
        %758 = vadd.xlane.f32.xlu0 %v741
        %v759 = vpop.xlane.xlu0 %758
        %v760 = vrcp.pop 128.0
        %v761 = vmul.f32 128.0, %v760
        %v762 = vsub.f32 1.0, %v761
        %v763 = vmul.f32 %v760, %v762
        %v764 = vadd.f32 %v760, %v763
        %vm765 = vweird.f32 %v760
        %v766 = vsel %vm765, %v760, %v764
        %v767 = vmul.f32 %v749, %v766
        %v768 = vmul.f32 %v751, %v766
        %v769 = vmul.f32 %v753, %v766
        %v770 = vmul.f32 %v755, %v766
        %v771 = vmul.f32 %v757, %v766
        %v772 = vmul.f32 %v759, %v766
        %v773 = vsub.f32 %v736, %v767
        %v774 = vsub.f32 %v737, %v768
        %v775 = vsub.f32 %v738, %v769
        %v776 = vsub.f32 %v739, %v770
        %v777 = vsub.f32 %v740, %v771
        %v778 = vsub.f32 %v741, %v772
        %v779 = vmul.f32 %v773, %v773
        %v780 = vmul.f32 %v774, %v774
        %v781 = vmul.f32 %v775, %v775
        %v782 = vmul.f32 %v776, %v776
        %v783 = vmul.f32 %v777, %v777
        %v784 = vmul.f32 %v778, %v778
        %785 = vadd.xlane.f32.xlu0 %v779
        %v786 = vpop.xlane.xlu0 %785
        %787 = vadd.xlane.f32.xlu0 %v780
        %v788 = vpop.xlane.xlu0 %787
        %789 = vadd.xlane.f32.xlu0 %v781
        %v790 = vpop.xlane.xlu0 %789
        %791 = vadd.xlane.f32.xlu0 %v782
        %v792 = vpop.xlane.xlu0 %791
        %793 = vadd.xlane.f32.xlu0 %v783
        %v794 = vpop.xlane.xlu0 %793
        %795 = vadd.xlane.f32.xlu0 %v784
        %v796 = vpop.xlane.xlu0 %795
        %v797 = vmul.f32 %v786, %v766
        %v798 = vmul.f32 %v788, %v766
        %v799 = vmul.f32 %v790, %v766
        %v800 = vmul.f32 %v792, %v766
        %v801 = vmul.f32 %v794, %v766
        %v802 = vmul.f32 %v796, %v766
        %v803 = vadd.f32 %v797, 1e-06
        %v804 = vadd.f32 %v798, 1e-06
        %v805 = vadd.f32 %v799, 1e-06
        %v806 = vadd.f32 %v800, 1e-06
        %v807 = vadd.f32 %v801, 1e-06
        %v808 = vadd.f32 %v802, 1e-06
        %v809 = vrsqrt.pop %v803
        %v810 = vmul.f32 %v809, %v803
        %v811 = vmul.f32 %v810, %v809
        %v812 = vmul.f32 0.5, %v811
        %v813 = vsub.f32 1.5, %v812
        %v814 = vmul.f32 %v809, %v813
        %vm815 = vweird.f32 %v803
        %vm816 = vweird.f32 %v809
        %vm817 = vmor %vm815, %vm816
        %v818 = vsel %vm817, %v809, %v814
        %v819 = vrsqrt.pop %v804
        %v820 = vmul.f32 %v819, %v804
        %v821 = vmul.f32 %v820, %v819
        %v822 = vmul.f32 0.5, %v821
        %v823 = vsub.f32 1.5, %v822
        %v824 = vmul.f32 %v819, %v823
        %vm825 = vweird.f32 %v804
        %vm826 = vweird.f32 %v819
        %vm827 = vmor %vm825, %vm826
        %v828 = vsel %vm827, %v819, %v824
        %v829 = vrsqrt.pop %v805
        %v830 = vmul.f32 %v829, %v805
        %v831 = vmul.f32 %v830, %v829
        %v832 = vmul.f32 0.5, %v831
        %v833 = vsub.f32 1.5, %v832
        %v834 = vmul.f32 %v829, %v833
        %vm835 = vweird.f32 %v805
        %vm836 = vweird.f32 %v829
        %vm837 = vmor %vm835, %vm836
        %v838 = vsel %vm837, %v829, %v834
        %v839 = vrsqrt.pop %v806
        %v840 = vmul.f32 %v839, %v806
        %v841 = vmul.f32 %v840, %v839
        %v842 = vmul.f32 0.5, %v841
        %v843 = vsub.f32 1.5, %v842
        %v844 = vmul.f32 %v839, %v843
        %vm845 = vweird.f32 %v806
        %vm846 = vweird.f32 %v839
        %vm847 = vmor %vm845, %vm846
        %v848 = vsel %vm847, %v839, %v844
        %v849 = vrsqrt.pop %v807
        %v850 = vmul.f32 %v849, %v807
        %v851 = vmul.f32 %v850, %v849
        %v852 = vmul.f32 0.5, %v851
        %v853 = vsub.f32 1.5, %v852
        %v854 = vmul.f32 %v849, %v853
        %vm855 = vweird.f32 %v807
        %vm856 = vweird.f32 %v849
        %vm857 = vmor %vm855, %vm856
        %v858 = vsel %vm857, %v849, %v854
        %v859 = vrsqrt.pop %v808
        %v860 = vmul.f32 %v859, %v808
        %v861 = vmul.f32 %v860, %v859
        %v862 = vmul.f32 0.5, %v861
        %v863 = vsub.f32 1.5, %v862
        %v864 = vmul.f32 %v859, %v863
        %vm865 = vweird.f32 %v808
        %vm866 = vweird.f32 %v859
        %vm867 = vmor %vm865, %vm866
        %v868 = vsel %vm867, %v859, %v864
        %v869 = vmul.f32 %v773, %v818
        %v870 = vmul.f32 %v774, %v828
        %v871 = vmul.f32 %v775, %v838
        %v872 = vmul.f32 %v776, %v848
        %v873 = vmul.f32 %v777, %v858
        %v874 = vmul.f32 %v778, %v868
        %v876 = vperm.slane %v746, 0
        %v878 = vmul.f32 %v869, %v876
        %v879 = vmul.f32 %v870, %v876
        %v880 = vmul.f32 %v871, %v876
        %v881 = vmul.f32 %v872, %v876
        %v882 = vmul.f32 %v873, %v876
        %v883 = vmul.f32 %v874, %v876
        %v885 = vperm.slane %v747, 0
        %v887 = vadd.f32 %v878, %v885
        %v888 = vadd.f32 %v879, %v885
        %v889 = vadd.f32 %v880, %v885
        %v890 = vadd.f32 %v881, %v885
        %v891 = vadd.f32 %v882, %v885
        %v892 = vadd.f32 %v883, %v885
        %v893 = vpack.c.bf16 %v888, %v887
        %v894 = vpack.c.bf16 %v890, %v889
        %v895 = vpack.c.bf16 %v892, %v891
        %v896 = vld [vmem:[%s677] sm:$0xff]
        %v897 = vld [vmem:[%s677 + $0x8] sm:$0xf]
        %v898 = vld [vmem:[%s677 + $0xc] sm:$0xff]
        %v899 = vld [vmem:[%s677 + $0x14] sm:$0xf]
        %v900 = vld [vmem:[%s677 + $0x18] sm:$0xff]
        %v901 = vld [vmem:[%s677 + $0x20] sm:$0xf]
        %v902 = vld [vmem:[%s677 + $0x24] sm:$0xff]
        %v903 = vld [vmem:[%s677 + $0x2c] sm:$0xf]
        %v904 = vld [vmem:[%s677 + $0x30] sm:$0xff]
        %v905 = vld [vmem:[%s677 + $0x38] sm:$0xf]
        %v906 = vld [vmem:[%s677 + $0x3c] sm:$0xff]
        %v907 = vld [vmem:[%s677 + $0x44] sm:$0xf]
        %v908 = vld [vmem:[%s677 + $0x48] sm:$0xff]
        %v909 = vld [vmem:[%s677 + $0x50] sm:$0xf]
        %v910 = vld [vmem:[%s677 + $0x54] sm:$0xff]
        %v911 = vld [vmem:[%s677 + $0x5c] sm:$0xf]
        %v912 = vld [vmem:[%s677 + $0x60] sm:$0xff]
        %v913 = vld [vmem:[%s677 + $0x68] sm:$0xf]
        %v914 = vld [vmem:[%s677 + $0x6c] sm:$0xff]
        %v915 = vld [vmem:[%s677 + $0x74] sm:$0xf]
        %v916 = vld [vmem:[%s677 + $0x78] sm:$0xff]
        %v917 = vld [vmem:[%s677 + $0x80] sm:$0xf]
        %v918 = vld [vmem:[%s677 + $0x84] sm:$0xff]
        %v919 = vld [vmem:[%s677 + $0x8c] sm:$0xf]
        %v920 = vld [vmem:[%s677 + $0x90] sm:$0xff]
        %v921 = vld [vmem:[%s677 + $0x98] sm:$0xf]
        %v922 = vld [vmem:[%s677 + $0x9c] sm:$0xff]
        %v923 = vld [vmem:[%s677 + $0xa4] sm:$0xf]
        %v924 = vld [vmem:[%s677 + $0xa8] sm:$0xff]
        %v925 = vld [vmem:[%s677 + $0xb0] sm:$0xf]
        %v926 = vld [vmem:[%s677 + $0xb4] sm:$0xff]
        %v927 = vld [vmem:[%s677 + $0xbc] sm:$0xf]
        %v928 = vld [vmem:[%s681] sm:$0x7]
        %v930 = vperm.slane %v928, 0
        %v931 = vperm.slane %v928, 1
        %v932 = vperm.slane %v928, 2
        %v968 = vunpack.c.l.b16 %v896
        %v969 = vunpack.c.h.b16 %v896
        %v970 = vunpack.c.l.b16 %v897
        %v971 = vunpack.c.l.b16 %v898
        %v972 = vunpack.c.h.b16 %v898
        %v973 = vunpack.c.l.b16 %v899
        %v974 = vunpack.c.l.b16 %v900
        %v975 = vunpack.c.h.b16 %v900
        %v976 = vunpack.c.l.b16 %v901
        %v977 = vunpack.c.l.b16 %v902
        %v978 = vunpack.c.h.b16 %v902
        %v979 = vunpack.c.l.b16 %v903
        %v980 = vunpack.c.l.b16 %v904
        %v981 = vunpack.c.h.b16 %v904
        %v982 = vunpack.c.l.b16 %v905
        %v983 = vunpack.c.l.b16 %v906
        %v984 = vunpack.c.h.b16 %v906
        %v985 = vunpack.c.l.b16 %v907
        %v986 = vunpack.c.l.b16 %v908
        %v987 = vunpack.c.h.b16 %v908
        %v988 = vunpack.c.l.b16 %v909
        %v989 = vunpack.c.l.b16 %v910
        %v990 = vunpack.c.h.b16 %v910
        %v991 = vunpack.c.l.b16 %v911
        %v992 = vunpack.c.l.b16 %v912
        %v993 = vunpack.c.h.b16 %v912
        %v994 = vunpack.c.l.b16 %v913
        %v995 = vunpack.c.l.b16 %v914
        %v996 = vunpack.c.h.b16 %v914
        %v997 = vunpack.c.l.b16 %v915
        %v998 = vunpack.c.l.b16 %v916
        %v999 = vunpack.c.h.b16 %v916
        %v1000 = vunpack.c.l.b16 %v917
        %v1001 = vunpack.c.l.b16 %v918
        %v1002 = vunpack.c.h.b16 %v918
        %v1003 = vunpack.c.l.b16 %v919
        %v1004 = vunpack.c.l.b16 %v920
        %v1005 = vunpack.c.h.b16 %v920
        %v1006 = vunpack.c.l.b16 %v921
        %v1007 = vunpack.c.l.b16 %v922
        %v1008 = vunpack.c.h.b16 %v922
        %v1009 = vunpack.c.l.b16 %v923
        %v1010 = vunpack.c.l.b16 %v924
        %v1011 = vunpack.c.h.b16 %v924
        %v1012 = vunpack.c.l.b16 %v925
        %v1013 = vunpack.c.l.b16 %v926
        %v1014 = vunpack.c.h.b16 %v926
        %v1015 = vunpack.c.l.b16 %v927
        %v1016 = vpack.c.b16 %v971, %v968
        %v1017 = vpack.c.b16 %v972, %v969
        %v1018 = vpack.c.b16 %v973, %v970
        %v1019 = vpack.c.b16 %v977, %v974
        %v1020 = vpack.c.b16 %v978, %v975
        %v1021 = vpack.c.b16 %v979, %v976
        %v1022 = vpack.c.b16 %v983, %v980
        %v1023 = vpack.c.b16 %v984, %v981
        %v1024 = vpack.c.b16 %v985, %v982
        %v1025 = vpack.c.b16 %v989, %v986
        %v1026 = vpack.c.b16 %v990, %v987
        %v1027 = vpack.c.b16 %v991, %v988
        %v1028 = vpack.c.b16 %v995, %v992
        %v1029 = vpack.c.b16 %v996, %v993
        %v1030 = vpack.c.b16 %v997, %v994
        %v1031 = vpack.c.b16 %v1001, %v998
        %v1032 = vpack.c.b16 %v1002, %v999
        %v1033 = vpack.c.b16 %v1003, %v1000
        %v1034 = vpack.c.b16 %v1007, %v1004
        %v1035 = vpack.c.b16 %v1008, %v1005
        %v1036 = vpack.c.b16 %v1009, %v1006
        %v1037 = vpack.c.b16 %v1013, %v1010
        %v1038 = vpack.c.b16 %v1014, %v1011
        %v1039 = vpack.c.b16 %v1015, %v1012
        %1064 = vmatpush.bf16.msra.mxu0 %v1037
        %1065 = vmatpush.bf16.msra.mxu0 %v1034
        %1066 = vmatpush.bf16.msra.mxu0 %v1031
        %1067 = vmatpush.bf16.msra.mxu0 %v1028
        %1068 = vmatpush.bf16.msra.mxu0 %v1025
        %1069 = vmatpush.bf16.msra.mxu0 %v1022
        %1070 = vmatpush.bf16.msra.mxu0 %v1019
        %1071 = vmatpush.bf16.msra.mxu0 %v1016
        %1072 = vmatmul.bf16.gmra.mxu0 %v893
        %v1073 = vpop.f32.mrf.mxu0
        %v1074 = vadd.f32 %v930, %v1073
        %v1075 = vpop.f32.mrf.mxu0
        %v1076 = vadd.f32 %v930, %v1075
        %1077 = vmatmul.bf16.gmra.mxu0 %v894
        %v1078 = vpop.f32.mrf.mxu0
        %v1079 = vadd.f32 %v930, %v1078
        %v1080 = vpop.f32.mrf.mxu0
        %v1081 = vadd.f32 %v930, %v1080
        %1082 = vmatmul.bf16.gmra.mxu0 %v895
        %v1083 = vpop.f32.mrf.mxu0
        %v1084 = vadd.f32 %v930, %v1083
        %v1085 = vpop.f32.mrf.mxu0
        %v1086 = vadd.f32 %v930, %v1085
        %1087 = vdwg.mxu0
        %1088 = vmatpush.bf16.msra.mxu0 %v1038
        %1089 = vmatpush.bf16.msra.mxu0 %v1035
        %1090 = vmatpush.bf16.msra.mxu0 %v1032
        %1091 = vmatpush.bf16.msra.mxu0 %v1029
        %1092 = vmatpush.bf16.msra.mxu0 %v1026
        %1093 = vmatpush.bf16.msra.mxu0 %v1023
        %1094 = vmatpush.bf16.msra.mxu0 %v1020
        %1095 = vmatpush.bf16.msra.mxu0 %v1017
        %1096 = vmatmul.bf16.gmra.mxu0 %v893
        %v1097 = vpop.f32.mrf.mxu0
        %v1098 = vadd.f32 %v931, %v1097
        %v1099 = vpop.f32.mrf.mxu0
        %v1100 = vadd.f32 %v931, %v1099
        %1101 = vmatmul.bf16.gmra.mxu0 %v894
        %v1102 = vpop.f32.mrf.mxu0
        %v1103 = vadd.f32 %v931, %v1102
        %v1104 = vpop.f32.mrf.mxu0
        %v1105 = vadd.f32 %v931, %v1104
        %1106 = vmatmul.bf16.gmra.mxu0 %v895
        %v1107 = vpop.f32.mrf.mxu0
        %v1108 = vadd.f32 %v931, %v1107
        %v1109 = vpop.f32.mrf.mxu0
        %v1110 = vadd.f32 %v931, %v1109
        %1111 = vdwg.mxu0
        %1112 = vmatpush.bf16.msra.mxu0 %v1039
        %1113 = vmatpush.bf16.msra.mxu0 %v1036
        %1114 = vmatpush.bf16.msra.mxu0 %v1033
        %1115 = vmatpush.bf16.msra.mxu0 %v1030
        %1116 = vmatpush.bf16.msra.mxu0 %v1027
        %1117 = vmatpush.bf16.msra.mxu0 %v1024
        %1118 = vmatpush.bf16.msra.mxu0 %v1021
        %1119 = vmatpush.bf16.msra.mxu0 %v1018
        %1120 = vmatmul.bf16.gmra.mxu0 %v893
        %v1121 = vpop.f32.mrf.mxu0
        %v1122 = vadd.f32 %v932, %v1121
        %v1123 = vpop.f32.mrf.mxu0
        %v1124 = vadd.f32 %v932, %v1123
        %1125 = vmatmul.bf16.gmra.mxu0 %v894
        %v1126 = vpop.f32.mrf.mxu0
        %v1127 = vadd.f32 %v932, %v1126
        %v1128 = vpop.f32.mrf.mxu0
        %v1129 = vadd.f32 %v932, %v1128
        %1130 = vmatmul.bf16.gmra.mxu0 %v895
        %v1131 = vpop.f32.mrf.mxu0
        %v1132 = vadd.f32 %v932, %v1131
        %v1133 = vpop.f32.mrf.mxu0
        %v1134 = vadd.f32 %v932, %v1133
        %1135 = vdwg.mxu0
        %v1136 = vmul.f32 %v1074, 0.125
        %v1137 = vmul.f32 %v1076, 0.125
        %v1138 = vmul.f32 %v1079, 0.125
        %v1139 = vmul.f32 %v1081, 0.125
        %v1140 = vmul.f32 %v1084, 0.125
        %v1141 = vmul.f32 %v1086, 0.125
        %v1142 = vpack.c.bf16 %v1136, %v1136
        %v1143 = vpack.c.bf16 %v1137, %v1137
        %v1144 = vpack.c.bf16 %v1138, %v1138
        %v1145 = vpack.c.bf16 %v1139, %v1139
        %v1146 = vpack.c.bf16 %v1140, %v1140
        %v1147 = vpack.c.bf16 %v1141, %v1141
        %v1148 = vpack.c.bf16 %v1098, %v1098
        %v1149 = vpack.c.bf16 %v1100, %v1100
        %v1150 = vpack.c.bf16 %v1103, %v1103
        %v1151 = vpack.c.bf16 %v1105, %v1105
        %v1152 = vpack.c.bf16 %v1108, %v1108
        %v1153 = vpack.c.bf16 %v1110, %v1110
        %v1154 = vpack.c.bf16 %v1122, %v1122
        %v1155 = vpack.c.bf16 %v1124, %v1124
        %v1156 = vpack.c.bf16 %v1127, %v1127
        %v1157 = vpack.c.bf16 %v1129, %v1129
        %v1158 = vpack.c.bf16 %v1132, %v1132
        %v1159 = vpack.c.bf16 %v1134, %v1134
        %v1163 = vunpack.c.l.b16 %v1142
        %v1164 = vunpack.c.l.b16 %v1143
        %v1165 = vunpack.c.l.b16 %v1144
        %v1166 = vpack.c.b16 %v1164, %v1163
        %v1167 = vpack.c.b16 %v1165, %v1165
        %v1171 = vunpack.c.l.b16 %v1148
        %v1172 = vunpack.c.l.b16 %v1149
        %v1173 = vunpack.c.l.b16 %v1150
        %v1174 = vpack.c.b16 %v1172, %v1171
        %v1175 = vpack.c.b16 %v1173, %v1173
        %vm1176 = vcmask 523264
        %v1178 = vsel %vm1176, %v1166, 0
        %v1181 = vsel %vm1176, %v1167, 0
        %v1184 = vsel %vm1176, %v1174, 0
        %v1187 = vsel %vm1176, %v1175, 0
        %1189 = vmatpush.bf16.xpose.msra.mxu0 0
        %1190 = vmatpush.bf16.xpose.msra.mxu0 0
        %1191 = vmatpush.bf16.xpose.msra.mxu0 0
        %1192 = vmatpush.bf16.xpose.msra.mxu0 0
        %1193 = vmatpush.bf16.xpose.msra.mxu0 0
        %1194 = vmatpush.bf16.xpose.msra.mxu0 0
        %1195 = vmatpush.bf16.xpose.msra.mxu0 %v1187
        %1196 = vmatpush.bf16.xpose.msra.mxu0 %v1184
        %1197 = vmatmul.bf16.gmra.mxu0 %v1178
        %v1198 = vpop.f32.mrf.mxu0
        %v1199 = vadd.f32 %v745, %v1198
        %v1200 = vpop.f32.mrf.mxu0
        %v1201 = vadd.f32 %v745, %v1200
        %1202 = vmatmul.bf16.gmra.mxu0 %v1181
        %v1203 = vpop.f32.mrf.mxu0
        %v1204 = vadd.f32 %v745, %v1203
        %v1205 = vpop.f32.mrf.mxu0
        %1206 = vdwg.mxu0
        %vm1207 = vcmask 195584
        %v1208 = vsel %vm1207, %v1199, -inf
        %1209 = vmax.xlane.f32.xlu0 %v1208
        %v1210 = vpop.xlane.xlu0 %1209
        %v1211 = vsel %vm1207, %v1201, -inf
        %1212 = vmax.xlane.f32.xlu0 %v1211
        %v1213 = vpop.xlane.xlu0 %1212
        %v1214 = vsel %vm1207, %v1204, -inf
        %1215 = vmax.xlane.f32.xlu0 %v1214
        %v1216 = vpop.xlane.xlu0 %1215
        %v1217 = vsub.f32 %v1199, %v1210
        %v1218 = vsub.f32 %v1201, %v1213
        %v1219 = vsub.f32 %v1204, %v1216
        %v1220 = vmul.f32 %v1217, 1.442695
        %v1221 = vpow.pop %v1220
        %v1222 = vmul.f32 %v1218, 1.442695
        %v1223 = vpow.pop %v1222
        %v1224 = vmul.f32 %v1219, 1.442695
        %v1225 = vpow.pop %v1224
        %v1226 = vsel %vm1207, %v1221, 0.0
        %1227 = vadd.xlane.f32.xlu0 %v1226
        %v1228 = vpop.xlane.xlu0 %1227
        %v1229 = vsel %vm1207, %v1223, 0.0
        %1230 = vadd.xlane.f32.xlu0 %v1229
        %v1231 = vpop.xlane.xlu0 %1230
        %v1232 = vsel %vm1207, %v1225, 0.0
        %1233 = vadd.xlane.f32.xlu0 %v1232
        %v1234 = vpop.xlane.xlu0 %1233
        %v1235 = vpack.c.bf16 %v1223, %v1221
        %v1236 = vpack.c.bf16 %v1225, %v1225
        %v1240 = vunpack.c.l.b16 %v1154
        %v1241 = vunpack.c.l.b16 %v1155
        %v1242 = vunpack.c.l.b16 %v1156
        %v1243 = vpack.c.b16 %v1241, %v1240
        %v1244 = vpack.c.b16 %v1242, %v1242
        %v1247 = vsel %vm1207, %v1235, 0
        %v1250 = vsel %vm1207, %v1236, 0
        %vm1252 = vcmask 1043456
        %v1254 = vsel %vm1252, %v1244, 0
        %1256 = vmatpush.bf16.msra.mxu0 0
        %1257 = vmatpush.bf16.msra.mxu0 0
        %1258 = vmatpush.bf16.msra.mxu0 0
        %1259 = vmatpush.bf16.msra.mxu0 0
        %1260 = vmatpush.bf16.msra.mxu0 0
        %1261 = vmatpush.bf16.msra.mxu0 0
        %1262 = vmatpush.bf16.msra.mxu0 %v1254
        %1263 = vmatpush.bf16.msra.mxu0 %v1243
        %1264 = vmatmul.bf16.gmra.mxu0 %v1247
        %v1265 = vpop.f32.mrf.mxu0
        %v1266 = vadd.f32 0.0, %v1265
        %v1267 = vpop.f32.mrf.mxu0
        %v1268 = vadd.f32 0.0, %v1267
        %1269 = vmatmul.bf16.gmra.mxu0 %v1250
        %v1270 = vpop.f32.mrf.mxu0
        %v1271 = vadd.f32 0.0, %v1270
        %v1272 = vpop.f32.mrf.mxu0
        %1273 = vdwg.mxu0
        %v1274 = vrcp.pop %v1228
        %v1275 = vrcp.pop %v1231
        %v1276 = vrcp.pop %v1234
        %v1277 = vmul.f32 %v1266, %v1274
        %v1278 = vmul.f32 %v1268, %v1275
        %v1279 = vmul.f32 %v1271, %v1276
        %v1280 = vpack.c.bf16 %v1277, %v1277
        %v1281 = vpack.c.bf16 %v1278, %v1278
        %v1282 = vpack.c.bf16 %v1279, %v1279
        %1283 = vrot.lane.b32.xlu0 %v1166, 64
        %v1284 = vpop.permute.xlu0 %1283
        %1285 = vrot.lane.b32.xlu0 %v1167, 64
        %v1286 = vpop.permute.xlu0 %1285
        %1287 = vrot.lane.b32.xlu0 %v1174, 64
        %v1288 = vpop.permute.xlu0 %1287
        %1289 = vrot.lane.b32.xlu0 %v1175, 64
        %v1290 = vpop.permute.xlu0 %1289
        %v1292 = vsel %vm1176, %v1284, 0
        %v1295 = vsel %vm1176, %v1286, 0
        %v1298 = vsel %vm1176, %v1288, 0
        %v1301 = vsel %vm1176, %v1290, 0
        %1303 = vmatpush.bf16.xpose.msra.mxu0 0
        %1304 = vmatpush.bf16.xpose.msra.mxu0 0
        %1305 = vmatpush.bf16.xpose.msra.mxu0 0
        %1306 = vmatpush.bf16.xpose.msra.mxu0 0
        %1307 = vmatpush.bf16.xpose.msra.mxu0 0
        %1308 = vmatpush.bf16.xpose.msra.mxu0 0
        %1309 = vmatpush.bf16.xpose.msra.mxu0 %v1301
        %1310 = vmatpush.bf16.xpose.msra.mxu0 %v1298
        %1311 = vmatmul.bf16.gmra.mxu0 %v1292
        %v1312 = vpop.f32.mrf.mxu0
        %v1313 = vadd.f32 %v745, %v1312
        %v1314 = vpop.f32.mrf.mxu0
        %v1315 = vadd.f32 %v745, %v1314
        %1316 = vmatmul.bf16.gmra.mxu0 %v1295
        %v1317 = vpop.f32.mrf.mxu0
        %v1318 = vadd.f32 %v745, %v1317
        %v1319 = vpop.f32.mrf.mxu0
        %1320 = vdwg.mxu0
        %v1321 = vsel %vm1207, %v1313, -inf
        %1322 = vmax.xlane.f32.xlu0 %v1321
        %v1323 = vpop.xlane.xlu0 %1322
        %v1324 = vsel %vm1207, %v1315, -inf
        %1325 = vmax.xlane.f32.xlu0 %v1324
        %v1326 = vpop.xlane.xlu0 %1325
        %v1327 = vsel %vm1207, %v1318, -inf
        %1328 = vmax.xlane.f32.xlu0 %v1327
        %v1329 = vpop.xlane.xlu0 %1328
        %v1330 = vsub.f32 %v1313, %v1323
        %v1331 = vsub.f32 %v1315, %v1326
        %v1332 = vsub.f32 %v1318, %v1329
        %v1333 = vmul.f32 %v1330, 1.442695
        %v1334 = vpow.pop %v1333
        %v1335 = vmul.f32 %v1331, 1.442695
        %v1336 = vpow.pop %v1335
        %v1337 = vmul.f32 %v1332, 1.442695
        %v1338 = vpow.pop %v1337
        %v1339 = vsel %vm1207, %v1334, 0.0
        %1340 = vadd.xlane.f32.xlu0 %v1339
        %v1341 = vpop.xlane.xlu0 %1340
        %v1342 = vsel %vm1207, %v1336, 0.0
        %1343 = vadd.xlane.f32.xlu0 %v1342
        %v1344 = vpop.xlane.xlu0 %1343
        %v1345 = vsel %vm1207, %v1338, 0.0
        %1346 = vadd.xlane.f32.xlu0 %v1345
        %v1347 = vpop.xlane.xlu0 %1346
        %v1348 = vpack.c.bf16 %v1336, %v1334
        %v1349 = vpack.c.bf16 %v1338, %v1338
        %1350 = vrot.lane.b32.xlu0 %v1243, 64
        %v1351 = vpop.permute.xlu0 %1350
        %1352 = vrot.lane.b32.xlu0 %v1244, 64
        %v1353 = vpop.permute.xlu0 %1352
        %v1356 = vsel %vm1207, %v1348, 0
        %v1359 = vsel %vm1207, %v1349, 0
        %v1362 = vsel %vm1252, %v1353, 0
        %1364 = vmatpush.bf16.msra.mxu0 0
        %1365 = vmatpush.bf16.msra.mxu0 0
        %1366 = vmatpush.bf16.msra.mxu0 0
        %1367 = vmatpush.bf16.msra.mxu0 0
        %1368 = vmatpush.bf16.msra.mxu0 0
        %1369 = vmatpush.bf16.msra.mxu0 0
        %1370 = vmatpush.bf16.msra.mxu0 %v1362
        %1371 = vmatpush.bf16.msra.mxu0 %v1351
        %1372 = vmatmul.bf16.gmra.mxu0 %v1356
        %v1373 = vpop.f32.mrf.mxu0
        %v1374 = vadd.f32 0.0, %v1373
        %v1375 = vpop.f32.mrf.mxu0
        %v1376 = vadd.f32 0.0, %v1375
        %1377 = vmatmul.bf16.gmra.mxu0 %v1359
        %v1378 = vpop.f32.mrf.mxu0
        %v1379 = vadd.f32 0.0, %v1378
        %v1380 = vpop.f32.mrf.mxu0
        %1381 = vdwg.mxu0
        %v1382 = vrcp.pop %v1341
        %v1383 = vrcp.pop %v1344
        %v1384 = vrcp.pop %v1347
        %v1385 = vmul.f32 %v1374, %v1382
        %v1386 = vmul.f32 %v1376, %v1383
        %v1387 = vmul.f32 %v1379, %v1384
        %v1388 = vpack.c.bf16 %v1385, %v1385
        %v1389 = vpack.c.bf16 %v1386, %v1386
        %v1390 = vpack.c.bf16 %v1387, %v1387
        %v1394 = vunpack.c.l.b16 %v1280
        %v1395 = vunpack.c.l.b16 %v1281
        %v1396 = vunpack.c.l.b16 %v1282
        %v1397 = vpack.c.b16 %v1395, %v1394
        %v1398 = vpack.c.b16 %v1396, %v1396
        %v1402 = vunpack.c.l.b16 %v1388
        %v1403 = vunpack.c.l.b16 %v1389
        %v1404 = vunpack.c.l.b16 %v1390
        %v1405 = vpack.c.b16 %v1403, %v1402
        %v1406 = vpack.c.b16 %v1404, %v1404
        %1407 = vrot.lane.b32.xlu0 %v1405, 64
        %v1408 = vpop.permute.xlu0 %1407
        %1409 = vrot.lane.b32.xlu0 %v1406, 64
        %v1410 = vpop.permute.xlu0 %1409
        %v1413 = vsel %vm1176, %v1397, %v1408
        %v1416 = vsel %vm1176, %v1398, %v1410
        %v1419 = vunpack.c.l.b16 %v1413
        %v1420 = vunpack.c.h.b16 %v1413
        %v1421 = vunpack.c.l.b16 %v1416
        %v1422 = vpack.c.b16 %v1419, %v1419
        %v1423 = vpack.c.b16 %v1420, %v1420
        %v1424 = vpack.c.b16 %v1421, %v1421
        %1428 = vst [vmem:[#allocation3] sm:$0xf] %v1422
        %1429 = vst [vmem:[#allocation3 + $0x4] sm:$0xf] %v1423
        %1430 = vst [vmem:[#allocation3 + $0x8] sm:$0xf] %v1424
        %v1434 = vunpack.c.l.b16 %v1145
        %v1435 = vunpack.c.l.b16 %v1146
        %v1436 = vunpack.c.l.b16 %v1147
        %v1437 = vpack.c.b16 %v1435, %v1434
        %v1438 = vpack.c.b16 %v1436, %v1436
        %v1442 = vunpack.c.l.b16 %v1151
        %v1443 = vunpack.c.l.b16 %v1152
        %v1444 = vunpack.c.l.b16 %v1153
        %v1445 = vpack.c.b16 %v1443, %v1442
        %v1446 = vpack.c.b16 %v1444, %v1444
        %v1448 = vsel %vm1176, %v1437, 0
        %v1451 = vsel %vm1176, %v1438, 0
        %v1454 = vsel %vm1176, %v1445, 0
        %v1457 = vsel %vm1176, %v1446, 0
        %1459 = vmatpush.bf16.xpose.msra.mxu0 0
        %1460 = vmatpush.bf16.xpose.msra.mxu0 0
        %1461 = vmatpush.bf16.xpose.msra.mxu0 0
        %1462 = vmatpush.bf16.xpose.msra.mxu0 0
        %1463 = vmatpush.bf16.xpose.msra.mxu0 0
        %1464 = vmatpush.bf16.xpose.msra.mxu0 0
        %1465 = vmatpush.bf16.xpose.msra.mxu0 %v1457
        %1466 = vmatpush.bf16.xpose.msra.mxu0 %v1454
        %1467 = vmatmul.bf16.gmra.mxu0 %v1448
        %v1468 = vpop.f32.mrf.mxu0
        %v1469 = vadd.f32 %v745, %v1468
        %v1470 = vpop.f32.mrf.mxu0
        %v1471 = vadd.f32 %v745, %v1470
        %1472 = vmatmul.bf16.gmra.mxu0 %v1451
        %v1473 = vpop.f32.mrf.mxu0
        %v1474 = vadd.f32 %v745, %v1473
        %v1475 = vpop.f32.mrf.mxu0
        %1476 = vdwg.mxu0
        %v1477 = vsel %vm1207, %v1469, -inf
        %1478 = vmax.xlane.f32.xlu0 %v1477
        %v1479 = vpop.xlane.xlu0 %1478
        %v1480 = vsel %vm1207, %v1471, -inf
        %1481 = vmax.xlane.f32.xlu0 %v1480
        %v1482 = vpop.xlane.xlu0 %1481
        %v1483 = vsel %vm1207, %v1474, -inf
        %1484 = vmax.xlane.f32.xlu0 %v1483
        %v1485 = vpop.xlane.xlu0 %1484
        %v1486 = vsub.f32 %v1469, %v1479
        %v1487 = vsub.f32 %v1471, %v1482
        %v1488 = vsub.f32 %v1474, %v1485
        %v1489 = vmul.f32 %v1486, 1.442695
        %v1490 = vpow.pop %v1489
        %v1491 = vmul.f32 %v1487, 1.442695
        %v1492 = vpow.pop %v1491
        %v1493 = vmul.f32 %v1488, 1.442695
        %v1494 = vpow.pop %v1493
        %v1495 = vsel %vm1207, %v1490, 0.0
        %1496 = vadd.xlane.f32.xlu0 %v1495
        %v1497 = vpop.xlane.xlu0 %1496
        %v1498 = vsel %vm1207, %v1492, 0.0
        %1499 = vadd.xlane.f32.xlu0 %v1498
        %v1500 = vpop.xlane.xlu0 %1499
        %v1501 = vsel %vm1207, %v1494, 0.0
        %1502 = vadd.xlane.f32.xlu0 %v1501
        %v1503 = vpop.xlane.xlu0 %1502
        %v1504 = vpack.c.bf16 %v1492, %v1490
        %v1505 = vpack.c.bf16 %v1494, %v1494
        %v1509 = vunpack.c.l.b16 %v1157
        %v1510 = vunpack.c.l.b16 %v1158
        %v1511 = vunpack.c.l.b16 %v1159
        %v1512 = vpack.c.b16 %v1510, %v1509
        %v1513 = vpack.c.b16 %v1511, %v1511
        %v1516 = vsel %vm1207, %v1504, 0
        %v1519 = vsel %vm1207, %v1505, 0
        %v1522 = vsel %vm1252, %v1513, 0
        %1524 = vmatpush.bf16.msra.mxu0 0
        %1525 = vmatpush.bf16.msra.mxu0 0
        %1526 = vmatpush.bf16.msra.mxu0 0
        %1527 = vmatpush.bf16.msra.mxu0 0
        %1528 = vmatpush.bf16.msra.mxu0 0
        %1529 = vmatpush.bf16.msra.mxu0 0
        %1530 = vmatpush.bf16.msra.mxu0 %v1522
        %1531 = vmatpush.bf16.msra.mxu0 %v1512
        %1532 = vmatmul.bf16.gmra.mxu0 %v1516
        %v1533 = vpop.f32.mrf.mxu0
        %v1534 = vadd.f32 0.0, %v1533
        %v1535 = vpop.f32.mrf.mxu0
        %v1536 = vadd.f32 0.0, %v1535
        %1537 = vmatmul.bf16.gmra.mxu0 %v1519
        %v1538 = vpop.f32.mrf.mxu0
        %v1539 = vadd.f32 0.0, %v1538
        %v1540 = vpop.f32.mrf.mxu0
        %1541 = vdwg.mxu0
        %v1542 = vrcp.pop %v1497
        %v1543 = vrcp.pop %v1500
        %v1544 = vrcp.pop %v1503
        %v1545 = vmul.f32 %v1534, %v1542
        %v1546 = vmul.f32 %v1536, %v1543
        %v1547 = vmul.f32 %v1539, %v1544
        %v1548 = vpack.c.bf16 %v1545, %v1545
        %v1549 = vpack.c.bf16 %v1546, %v1546
        %v1550 = vpack.c.bf16 %v1547, %v1547
        %1551 = vrot.lane.b32.xlu0 %v1437, 64
        %v1552 = vpop.permute.xlu0 %1551
        %1553 = vrot.lane.b32.xlu0 %v1438, 64
        %v1554 = vpop.permute.xlu0 %1553
        %1555 = vrot.lane.b32.xlu0 %v1445, 64
        %v1556 = vpop.permute.xlu0 %1555
        %1557 = vrot.lane.b32.xlu0 %v1446, 64
        %v1558 = vpop.permute.xlu0 %1557
        %v1560 = vsel %vm1176, %v1552, 0
        %v1563 = vsel %vm1176, %v1554, 0
        %v1566 = vsel %vm1176, %v1556, 0
        %v1569 = vsel %vm1176, %v1558, 0
        %1571 = vmatpush.bf16.xpose.msra.mxu0 0
        %1572 = vmatpush.bf16.xpose.msra.mxu0 0
        %1573 = vmatpush.bf16.xpose.msra.mxu0 0
        %1574 = vmatpush.bf16.xpose.msra.mxu0 0
        %1575 = vmatpush.bf16.xpose.msra.mxu0 0
        %1576 = vmatpush.bf16.xpose.msra.mxu0 0
        %1577 = vmatpush.bf16.xpose.msra.mxu0 %v1569
        %1578 = vmatpush.bf16.xpose.msra.mxu0 %v1566
        %1579 = vmatmul.bf16.gmra.mxu0 %v1560
        %v1580 = vpop.f32.mrf.mxu0
        %v1581 = vadd.f32 %v745, %v1580
        %v1582 = vpop.f32.mrf.mxu0
        %v1583 = vadd.f32 %v745, %v1582
        %1584 = vmatmul.bf16.gmra.mxu0 %v1563
        %v1585 = vpop.f32.mrf.mxu0
        %v1586 = vadd.f32 %v745, %v1585
        %v1587 = vpop.f32.mrf.mxu0
        %1588 = vdwg.mxu0
        %v1589 = vsel %vm1207, %v1581, -inf
        %1590 = vmax.xlane.f32.xlu0 %v1589
        %v1591 = vpop.xlane.xlu0 %1590
        %v1592 = vsel %vm1207, %v1583, -inf
        %1593 = vmax.xlane.f32.xlu0 %v1592
        %v1594 = vpop.xlane.xlu0 %1593
        %v1595 = vsel %vm1207, %v1586, -inf
        %1596 = vmax.xlane.f32.xlu0 %v1595
        %v1597 = vpop.xlane.xlu0 %1596
        %v1598 = vsub.f32 %v1581, %v1591
        %v1599 = vsub.f32 %v1583, %v1594
        %v1600 = vsub.f32 %v1586, %v1597
        %v1601 = vmul.f32 %v1598, 1.442695
        %v1602 = vpow.pop %v1601
        %v1603 = vmul.f32 %v1599, 1.442695
        %v1604 = vpow.pop %v1603
        %v1605 = vmul.f32 %v1600, 1.442695
        %v1606 = vpow.pop %v1605
        %v1607 = vsel %vm1207, %v1602, 0.0
        %1608 = vadd.xlane.f32.xlu0 %v1607
        %v1609 = vpop.xlane.xlu0 %1608
        %v1610 = vsel %vm1207, %v1604, 0.0
        %1611 = vadd.xlane.f32.xlu0 %v1610
        %v1612 = vpop.xlane.xlu0 %1611
        %v1613 = vsel %vm1207, %v1606, 0.0
        %1614 = vadd.xlane.f32.xlu0 %v1613
        %v1615 = vpop.xlane.xlu0 %1614
        %v1616 = vpack.c.bf16 %v1604, %v1602
        %v1617 = vpack.c.bf16 %v1606, %v1606
        %1618 = vrot.lane.b32.xlu0 %v1512, 64
        %v1619 = vpop.permute.xlu0 %1618
        %1620 = vrot.lane.b32.xlu0 %v1513, 64
        %v1621 = vpop.permute.xlu0 %1620
        %v1624 = vsel %vm1207, %v1616, 0
        %v1627 = vsel %vm1207, %v1617, 0
        %v1630 = vsel %vm1252, %v1621, 0
        %1632 = vmatpush.bf16.msra.mxu0 0
        %1633 = vmatpush.bf16.msra.mxu0 0
        %1634 = vmatpush.bf16.msra.mxu0 0
        %1635 = vmatpush.bf16.msra.mxu0 0
        %1636 = vmatpush.bf16.msra.mxu0 0
        %1637 = vmatpush.bf16.msra.mxu0 0
        %1638 = vmatpush.bf16.msra.mxu0 %v1630
        %1639 = vmatpush.bf16.msra.mxu0 %v1619
        %1640 = vmatmul.bf16.gmra.mxu0 %v1624
        %v1641 = vpop.f32.mrf.mxu0
        %v1642 = vadd.f32 0.0, %v1641
        %v1643 = vpop.f32.mrf.mxu0
        %v1644 = vadd.f32 0.0, %v1643
        %1645 = vmatmul.bf16.gmra.mxu0 %v1627
        %v1646 = vpop.f32.mrf.mxu0
        %v1647 = vadd.f32 0.0, %v1646
        %v1648 = vpop.f32.mrf.mxu0
        %1649 = vdwg.mxu0
        %v1650 = vrcp.pop %v1609
        %v1651 = vrcp.pop %v1612
        %v1652 = vrcp.pop %v1615
        %v1653 = vmul.f32 %v1642, %v1650
        %v1654 = vmul.f32 %v1644, %v1651
        %v1655 = vmul.f32 %v1647, %v1652
        %v1656 = vpack.c.bf16 %v1653, %v1653
        %v1657 = vpack.c.bf16 %v1654, %v1654
        %v1658 = vpack.c.bf16 %v1655, %v1655
        %v1662 = vunpack.c.l.b16 %v1548
        %v1663 = vunpack.c.l.b16 %v1549
        %v1664 = vunpack.c.l.b16 %v1550
        %v1665 = vpack.c.b16 %v1663, %v1662
        %v1666 = vpack.c.b16 %v1664, %v1664
        %v1670 = vunpack.c.l.b16 %v1656
        %v1671 = vunpack.c.l.b16 %v1657
        %v1672 = vunpack.c.l.b16 %v1658
        %v1673 = vpack.c.b16 %v1671, %v1670
        %v1674 = vpack.c.b16 %v1672, %v1672
        %1675 = vrot.lane.b32.xlu0 %v1673, 64
        %v1676 = vpop.permute.xlu0 %1675
        %1677 = vrot.lane.b32.xlu0 %v1674, 64
        %v1678 = vpop.permute.xlu0 %1677
        %v1681 = vsel %vm1176, %v1665, %v1676
        %v1684 = vsel %vm1176, %v1666, %v1678
        %v1687 = vunpack.c.l.b16 %v1681
        %v1688 = vunpack.c.h.b16 %v1681
        %v1689 = vunpack.c.l.b16 %v1684
        %v1690 = vpack.c.b16 %v1687, %v1687
        %v1691 = vpack.c.b16 %v1688, %v1688
        %v1692 = vpack.c.b16 %v1689, %v1689
        %1696 = vst [vmem:[#allocation3 + $0xc] sm:$0xf] %v1690
        %1697 = vst [vmem:[#allocation3 + $0x10] sm:$0xf] %v1691
        %1698 = vst [vmem:[#allocation3 + $0x14] sm:$0xf] %v1692
        %v1699 = vld [vmem:[#allocation3] sm:$0xf]
        %v1700 = vld [vmem:[#allocation3 + $0x4] sm:$0xf]
        %v1701 = vld [vmem:[#allocation3 + $0x8] sm:$0xf]
        %v1702 = vld [vmem:[#allocation3 + $0xc] sm:$0xf]
        %v1703 = vld [vmem:[#allocation3 + $0x10] sm:$0xf]
        %v1704 = vld [vmem:[#allocation3 + $0x14] sm:$0xf]
        %v1705 = vld [vmem:[%s686] sm:$0xf]
        %v1706 = vld [vmem:[%s686 + $0x4] sm:$0xf]
        %v1707 = vld [vmem:[%s686 + $0x8] sm:$0xf]
        %v1708 = vld [vmem:[%s686 + $0xc] sm:$0xf]
        %v1709 = vld [vmem:[%s686 + $0x10] sm:$0xf]
        %v1710 = vld [vmem:[%s686 + $0x14] sm:$0xf]
        %v1711 = vld [vmem:[%s686 + $0x18] sm:$0xf]
        %v1712 = vld [vmem:[%s686 + $0x1c] sm:$0xf]
        %v1713 = vld [vmem:[%s686 + $0x20] sm:$0xf]
        %v1714 = vld [vmem:[%s686 + $0x24] sm:$0xf]
        %v1715 = vld [vmem:[%s686 + $0x28] sm:$0xf]
        %v1716 = vld [vmem:[%s686 + $0x2c] sm:$0xf]
        %v1717 = vld [vmem:[%s686 + $0x30] sm:$0xf]
        %v1718 = vld [vmem:[%s686 + $0x34] sm:$0xf]
        %v1719 = vld [vmem:[%s686 + $0x38] sm:$0xf]
        %v1720 = vld [vmem:[%s686 + $0x3c] sm:$0xf]
        %v1727 = vunpack.c.l.b16 %v1699
        %v1728 = vunpack.c.l.b16 %v1700
        %v1729 = vunpack.c.l.b16 %v1701
        %v1730 = vunpack.c.l.b16 %v1702
        %v1731 = vunpack.c.l.b16 %v1703
        %v1732 = vunpack.c.l.b16 %v1704
        %v1733 = vpack.c.b16 %v1728, %v1727
        %v1734 = vpack.c.b16 %v1730, %v1729
        %v1735 = vpack.c.b16 %v1732, %v1731
        %v1755 = vunpack.c.l.b16 %v1705
        %v1756 = vunpack.c.l.b16 %v1706
        %v1757 = vunpack.c.l.b16 %v1707
        %v1758 = vunpack.c.l.b16 %v1708
        %v1759 = vunpack.c.l.b16 %v1709
        %v1760 = vunpack.c.l.b16 %v1710
        %v1761 = vunpack.c.l.b16 %v1711
        %v1762 = vunpack.c.l.b16 %v1712
        %v1763 = vunpack.c.l.b16 %v1713
        %v1764 = vunpack.c.l.b16 %v1714
        %v1765 = vunpack.c.l.b16 %v1715
        %v1766 = vunpack.c.l.b16 %v1716
        %v1767 = vunpack.c.l.b16 %v1717
        %v1768 = vunpack.c.l.b16 %v1718
        %v1769 = vunpack.c.l.b16 %v1719
        %v1770 = vunpack.c.l.b16 %v1720
        %v1771 = vpack.c.b16 %v1756, %v1755
        %v1772 = vpack.c.b16 %v1758, %v1757
        %v1773 = vpack.c.b16 %v1760, %v1759
        %v1774 = vpack.c.b16 %v1762, %v1761
        %v1775 = vpack.c.b16 %v1764, %v1763
        %v1776 = vpack.c.b16 %v1766, %v1765
        %v1777 = vpack.c.b16 %v1768, %v1767
        %v1778 = vpack.c.b16 %v1770, %v1769
        %1787 = vmatpush.bf16.msra.mxu0 %v1778
        %1788 = vmatpush.bf16.msra.mxu0 %v1777
        %1789 = vmatpush.bf16.msra.mxu0 %v1776
        %1790 = vmatpush.bf16.msra.mxu0 %v1775
        %1791 = vmatpush.bf16.msra.mxu0 %v1774
        %1792 = vmatpush.bf16.msra.mxu0 %v1773
        %1793 = vmatpush.bf16.msra.mxu0 %v1772
        %1794 = vmatpush.bf16.msra.mxu0 %v1771
        %1795 = vmatmul.bf16.gmra.mxu0 %v1733
        %v1796 = vpop.f32.mrf.mxu0
        %v1797 = vadd.f32 0.0, %v1796
        %v1798 = vpop.f32.mrf.mxu0
        %v1799 = vadd.f32 0.0, %v1798
        %1800 = vmatmul.bf16.gmra.mxu0 %v1734
        %v1801 = vpop.f32.mrf.mxu0
        %v1802 = vadd.f32 0.0, %v1801
        %v1803 = vpop.f32.mrf.mxu0
        %v1804 = vadd.f32 0.0, %v1803
        %1805 = vmatmul.bf16.gmra.mxu0 %v1735
        %v1806 = vpop.f32.mrf.mxu0
        %v1807 = vadd.f32 0.0, %v1806
        %v1808 = vpop.f32.mrf.mxu0
        %v1809 = vadd.f32 0.0, %v1808
        %1810 = vdwg.mxu0
        %v1811 = vadd.f32 %v736, %v1797
        %v1812 = vadd.f32 %v737, %v1799
        %v1813 = vadd.f32 %v738, %v1802
        %v1814 = vadd.f32 %v739, %v1804
        %v1815 = vadd.f32 %v740, %v1807
        %v1816 = vadd.f32 %v741, %v1809
        %v1817 = vld [vmem:[%s689] sm:$0x1]
        %v1819 = vperm.slane %v1817, 0
        %v1821 = vadd.f32 %v1811, %v1819
        %v1822 = vadd.f32 %v1812, %v1819
        %v1823 = vadd.f32 %v1813, %v1819
        %v1824 = vadd.f32 %v1814, %v1819
        %v1825 = vadd.f32 %v1815, %v1819
        %v1826 = vadd.f32 %v1816, %v1819
        %v1827 = vld [vmem:[%s692] sm:$0x1]
        %v1828 = vld [vmem:[%s695] sm:$0x1]
        %1829 = vadd.xlane.f32.xlu0 %v1821
        %v1830 = vpop.xlane.xlu0 %1829
        %1831 = vadd.xlane.f32.xlu0 %v1822
        %v1832 = vpop.xlane.xlu0 %1831
        %1833 = vadd.xlane.f32.xlu0 %v1823
        %v1834 = vpop.xlane.xlu0 %1833
        %1835 = vadd.xlane.f32.xlu0 %v1824
        %v1836 = vpop.xlane.xlu0 %1835
        %1837 = vadd.xlane.f32.xlu0 %v1825
        %v1838 = vpop.xlane.xlu0 %1837
        %1839 = vadd.xlane.f32.xlu0 %v1826
        %v1840 = vpop.xlane.xlu0 %1839
        %v1841 = vmul.f32 %v1830, %v766
        %v1842 = vmul.f32 %v1832, %v766
        %v1843 = vmul.f32 %v1834, %v766
        %v1844 = vmul.f32 %v1836, %v766
        %v1845 = vmul.f32 %v1838, %v766
        %v1846 = vmul.f32 %v1840, %v766
        %v1847 = vsub.f32 %v1821, %v1841
        %v1848 = vsub.f32 %v1822, %v1842
        %v1849 = vsub.f32 %v1823, %v1843
        %v1850 = vsub.f32 %v1824, %v1844
        %v1851 = vsub.f32 %v1825, %v1845
        %v1852 = vsub.f32 %v1826, %v1846
        %v1853 = vmul.f32 %v1847, %v1847
        %v1854 = vmul.f32 %v1848, %v1848
        %v1855 = vmul.f32 %v1849, %v1849
        %v1856 = vmul.f32 %v1850, %v1850
        %v1857 = vmul.f32 %v1851, %v1851
        %v1858 = vmul.f32 %v1852, %v1852
        %1859 = vadd.xlane.f32.xlu0 %v1853
        %v1860 = vpop.xlane.xlu0 %1859
        %1861 = vadd.xlane.f32.xlu0 %v1854
        %v1862 = vpop.xlane.xlu0 %1861
        %1863 = vadd.xlane.f32.xlu0 %v1855
        %v1864 = vpop.xlane.xlu0 %1863
        %1865 = vadd.xlane.f32.xlu0 %v1856
        %v1866 = vpop.xlane.xlu0 %1865
        %1867 = vadd.xlane.f32.xlu0 %v1857
        %v1868 = vpop.xlane.xlu0 %1867
        %1869 = vadd.xlane.f32.xlu0 %v1858
        %v1870 = vpop.xlane.xlu0 %1869
        %v1871 = vmul.f32 %v1860, %v766
        %v1872 = vmul.f32 %v1862, %v766
        %v1873 = vmul.f32 %v1864, %v766
        %v1874 = vmul.f32 %v1866, %v766
        %v1875 = vmul.f32 %v1868, %v766
        %v1876 = vmul.f32 %v1870, %v766
        %v1877 = vadd.f32 %v1871, 1e-06
        %v1878 = vadd.f32 %v1872, 1e-06
        %v1879 = vadd.f32 %v1873, 1e-06
        %v1880 = vadd.f32 %v1874, 1e-06
        %v1881 = vadd.f32 %v1875, 1e-06
        %v1882 = vadd.f32 %v1876, 1e-06
        %v1883 = vrsqrt.pop %v1877
        %v1884 = vmul.f32 %v1883, %v1877
        %v1885 = vmul.f32 %v1884, %v1883
        %v1886 = vmul.f32 0.5, %v1885
        %v1887 = vsub.f32 1.5, %v1886
        %v1888 = vmul.f32 %v1883, %v1887
        %vm1889 = vweird.f32 %v1877
        %vm1890 = vweird.f32 %v1883
        %vm1891 = vmor %vm1889, %vm1890
        %v1892 = vsel %vm1891, %v1883, %v1888
        %v1893 = vrsqrt.pop %v1878
        %v1894 = vmul.f32 %v1893, %v1878
        %v1895 = vmul.f32 %v1894, %v1893
        %v1896 = vmul.f32 0.5, %v1895
        %v1897 = vsub.f32 1.5, %v1896
        %v1898 = vmul.f32 %v1893, %v1897
        %vm1899 = vweird.f32 %v1878
        %vm1900 = vweird.f32 %v1893
        %vm1901 = vmor %vm1899, %vm1900
        %v1902 = vsel %vm1901, %v1893, %v1898
        %v1903 = vrsqrt.pop %v1879
        %v1904 = vmul.f32 %v1903, %v1879
        %v1905 = vmul.f32 %v1904, %v1903
        %v1906 = vmul.f32 0.5, %v1905
        %v1907 = vsub.f32 1.5, %v1906
        %v1908 = vmul.f32 %v1903, %v1907
        %vm1909 = vweird.f32 %v1879
        %vm1910 = vweird.f32 %v1903
        %vm1911 = vmor %vm1909, %vm1910
        %v1912 = vsel %vm1911, %v1903, %v1908
        %v1913 = vrsqrt.pop %v1880
        %v1914 = vmul.f32 %v1913, %v1880
        %v1915 = vmul.f32 %v1914, %v1913
        %v1916 = vmul.f32 0.5, %v1915
        %v1917 = vsub.f32 1.5, %v1916
        %v1918 = vmul.f32 %v1913, %v1917
        %vm1919 = vweird.f32 %v1880
        %vm1920 = vweird.f32 %v1913
        %vm1921 = vmor %vm1919, %vm1920
        %v1922 = vsel %vm1921, %v1913, %v1918
        %v1923 = vrsqrt.pop %v1881
        %v1924 = vmul.f32 %v1923, %v1881
        %v1925 = vmul.f32 %v1924, %v1923
        %v1926 = vmul.f32 0.5, %v1925
        %v1927 = vsub.f32 1.5, %v1926
        %v1928 = vmul.f32 %v1923, %v1927
        %vm1929 = vweird.f32 %v1881
        %vm1930 = vweird.f32 %v1923
        %vm1931 = vmor %vm1929, %vm1930
        %v1932 = vsel %vm1931, %v1923, %v1928
        %v1933 = vrsqrt.pop %v1882
        %v1934 = vmul.f32 %v1933, %v1882
        %v1935 = vmul.f32 %v1934, %v1933
        %v1936 = vmul.f32 0.5, %v1935
        %v1937 = vsub.f32 1.5, %v1936
        %v1938 = vmul.f32 %v1933, %v1937
        %vm1939 = vweird.f32 %v1882
        %vm1940 = vweird.f32 %v1933
        %vm1941 = vmor %vm1939, %vm1940
        %v1942 = vsel %vm1941, %v1933, %v1938
        %v1943 = vmul.f32 %v1847, %v1892
        %v1944 = vmul.f32 %v1848, %v1902
        %v1945 = vmul.f32 %v1849, %v1912
        %v1946 = vmul.f32 %v1850, %v1922
        %v1947 = vmul.f32 %v1851, %v1932
        %v1948 = vmul.f32 %v1852, %v1942
        %v1950 = vperm.slane %v1827, 0
        %v1952 = vmul.f32 %v1943, %v1950
        %v1953 = vmul.f32 %v1944, %v1950
        %v1954 = vmul.f32 %v1945, %v1950
        %v1955 = vmul.f32 %v1946, %v1950
        %v1956 = vmul.f32 %v1947, %v1950
        %v1957 = vmul.f32 %v1948, %v1950
        %v1959 = vperm.slane %v1828, 0
        %v1961 = vadd.f32 %v1952, %v1959
        %v1962 = vadd.f32 %v1953, %v1959
        %v1963 = vadd.f32 %v1954, %v1959
        %v1964 = vadd.f32 %v1955, %v1959
        %v1965 = vadd.f32 %v1956, %v1959
        %v1966 = vadd.f32 %v1957, %v1959
        %v1967 = vpack.c.bf16 %v1962, %v1961
        %v1968 = vpack.c.bf16 %v1964, %v1963
        %v1969 = vpack.c.bf16 %v1966, %v1965
        %v1970 = vld [vmem:[%s700] sm:$0xff]
        %v1971 = vld [vmem:[%s700 + $0x8] sm:$0xff]
        %v1972 = vld [vmem:[%s700 + $0x10] sm:$0xff]
        %v1973 = vld [vmem:[%s700 + $0x18] sm:$0xff]
        %v1974 = vld [vmem:[%s700 + $0x20] sm:$0xff]
        %v1975 = vld [vmem:[%s700 + $0x28] sm:$0xff]
        %v1976 = vld [vmem:[%s700 + $0x30] sm:$0xff]
        %v1977 = vld [vmem:[%s700 + $0x38] sm:$0xff]
        %v1978 = vld [vmem:[%s700 + $0x40] sm:$0xff]
        %v1979 = vld [vmem:[%s700 + $0x48] sm:$0xff]
        %v1980 = vld [vmem:[%s700 + $0x50] sm:$0xff]
        %v1981 = vld [vmem:[%s700 + $0x58] sm:$0xff]
        %v1982 = vld [vmem:[%s700 + $0x60] sm:$0xff]
        %v1983 = vld [vmem:[%s700 + $0x68] sm:$0xff]
        %v1984 = vld [vmem:[%s700 + $0x70] sm:$0xff]
        %v1985 = vld [vmem:[%s700 + $0x78] sm:$0xff]
        %v1986 = vld [vmem:[%s700 + $0x80] sm:$0xff]
        %v1987 = vld [vmem:[%s700 + $0x88] sm:$0xff]
        %v1988 = vld [vmem:[%s700 + $0x90] sm:$0xff]
        %v1989 = vld [vmem:[%s700 + $0x98] sm:$0xff]
        %v1990 = vld [vmem:[%s700 + $0xa0] sm:$0xff]
        %v1991 = vld [vmem:[%s700 + $0xa8] sm:$0xff]
        %v1992 = vld [vmem:[%s700 + $0xb0] sm:$0xff]
        %v1993 = vld [vmem:[%s700 + $0xb8] sm:$0xff]
        %v1994 = vld [vmem:[%s700 + $0xc0] sm:$0xff]
        %v1995 = vld [vmem:[%s700 + $0xc8] sm:$0xff]
        %v1996 = vld [vmem:[%s700 + $0xd0] sm:$0xff]
        %v1997 = vld [vmem:[%s700 + $0xd8] sm:$0xff]
        %v1998 = vld [vmem:[%s700 + $0xe0] sm:$0xff]
        %v1999 = vld [vmem:[%s700 + $0xe8] sm:$0xff]
        %v2000 = vld [vmem:[%s700 + $0xf0] sm:$0xff]
        %v2001 = vld [vmem:[%s700 + $0xf8] sm:$0xff]
        %v2002 = vld [vmem:[%s704] sm:$0xf]
        %v2004 = vperm.slane %v2002, 0
        %v2005 = vperm.slane %v2002, 1
        %v2006 = vperm.slane %v2002, 2
        %v2007 = vperm.slane %v2002, 3
        %v2044 = vunpack.c.l.b16 %v1970
        %v2045 = vunpack.c.h.b16 %v1970
        %v2046 = vunpack.c.l.b16 %v1971
        %v2047 = vunpack.c.h.b16 %v1971
        %v2048 = vunpack.c.l.b16 %v1972
        %v2049 = vunpack.c.h.b16 %v1972
        %v2050 = vunpack.c.l.b16 %v1973
        %v2051 = vunpack.c.h.b16 %v1973
        %v2052 = vunpack.c.l.b16 %v1974
        %v2053 = vunpack.c.h.b16 %v1974
        %v2054 = vunpack.c.l.b16 %v1975
        %v2055 = vunpack.c.h.b16 %v1975
        %v2056 = vunpack.c.l.b16 %v1976
        %v2057 = vunpack.c.h.b16 %v1976
        %v2058 = vunpack.c.l.b16 %v1977
        %v2059 = vunpack.c.h.b16 %v1977
        %v2060 = vunpack.c.l.b16 %v1978
        %v2061 = vunpack.c.h.b16 %v1978
        %v2062 = vunpack.c.l.b16 %v1979
        %v2063 = vunpack.c.h.b16 %v1979
        %v2064 = vunpack.c.l.b16 %v1980
        %v2065 = vunpack.c.h.b16 %v1980
        %v2066 = vunpack.c.l.b16 %v1981
        %v2067 = vunpack.c.h.b16 %v1981
        %v2068 = vunpack.c.l.b16 %v1982
        %v2069 = vunpack.c.h.b16 %v1982
        %v2070 = vunpack.c.l.b16 %v1983
        %v2071 = vunpack.c.h.b16 %v1983
        %v2072 = vunpack.c.l.b16 %v1984
        %v2073 = vunpack.c.h.b16 %v1984
        %v2074 = vunpack.c.l.b16 %v1985
        %v2075 = vunpack.c.h.b16 %v1985
        %v2076 = vunpack.c.l.b16 %v1986
        %v2077 = vunpack.c.h.b16 %v1986
        %v2078 = vunpack.c.l.b16 %v1987
        %v2079 = vunpack.c.h.b16 %v1987
        %v2080 = vunpack.c.l.b16 %v1988
        %v2081 = vunpack.c.h.b16 %v1988
        %v2082 = vunpack.c.l.b16 %v1989
        %v2083 = vunpack.c.h.b16 %v1989
        %v2084 = vunpack.c.l.b16 %v1990
        %v2085 = vunpack.c.h.b16 %v1990
        %v2086 = vunpack.c.l.b16 %v1991
        %v2087 = vunpack.c.h.b16 %v1991
        %v2088 = vunpack.c.l.b16 %v1992
        %v2089 = vunpack.c.h.b16 %v1992
        %v2090 = vunpack.c.l.b16 %v1993
        %v2091 = vunpack.c.h.b16 %v1993
        %v2092 = vunpack.c.l.b16 %v1994
        %v2093 = vunpack.c.h.b16 %v1994
        %v2094 = vunpack.c.l.b16 %v1995
        %v2095 = vunpack.c.h.b16 %v1995
        %v2096 = vunpack.c.l.b16 %v1996
        %v2097 = vunpack.c.h.b16 %v1996
        %v2098 = vunpack.c.l.b16 %v1997
        %v2099 = vunpack.c.h.b16 %v1997
        %v2100 = vunpack.c.l.b16 %v1998
        %v2101 = vunpack.c.h.b16 %v1998
        %v2102 = vunpack.c.l.b16 %v1999
        %v2103 = vunpack.c.h.b16 %v1999
        %v2104 = vunpack.c.l.b16 %v2000
        %v2105 = vunpack.c.h.b16 %v2000
        %v2106 = vunpack.c.l.b16 %v2001
        %v2107 = vunpack.c.h.b16 %v2001
        %v2108 = vpack.c.b16 %v2048, %v2044
        %v2109 = vpack.c.b16 %v2049, %v2045
        %v2110 = vpack.c.b16 %v2050, %v2046
        %v2111 = vpack.c.b16 %v2051, %v2047
        %v2112 = vpack.c.b16 %v2056, %v2052
        %v2113 = vpack.c.b16 %v2057, %v2053
        %v2114 = vpack.c.b16 %v2058, %v2054
        %v2115 = vpack.c.b16 %v2059, %v2055
        %v2116 = vpack.c.b16 %v2064, %v2060
        %v2117 = vpack.c.b16 %v2065, %v2061
        %v2118 = vpack.c.b16 %v2066, %v2062
        %v2119 = vpack.c.b16 %v2067, %v2063
        %v2120 = vpack.c.b16 %v2072, %v2068
        %v2121 = vpack.c.b16 %v2073, %v2069
        %v2122 = vpack.c.b16 %v2074, %v2070
        %v2123 = vpack.c.b16 %v2075, %v2071
        %v2124 = vpack.c.b16 %v2080, %v2076
        %v2125 = vpack.c.b16 %v2081, %v2077
        %v2126 = vpack.c.b16 %v2082, %v2078
        %v2127 = vpack.c.b16 %v2083, %v2079
        %v2128 = vpack.c.b16 %v2088, %v2084
        %v2129 = vpack.c.b16 %v2089, %v2085
        %v2130 = vpack.c.b16 %v2090, %v2086
        %v2131 = vpack.c.b16 %v2091, %v2087
        %v2132 = vpack.c.b16 %v2096, %v2092
        %v2133 = vpack.c.b16 %v2097, %v2093
        %v2134 = vpack.c.b16 %v2098, %v2094
        %v2135 = vpack.c.b16 %v2099, %v2095
        %v2136 = vpack.c.b16 %v2104, %v2100
        %v2137 = vpack.c.b16 %v2105, %v2101
        %v2138 = vpack.c.b16 %v2106, %v2102
        %v2139 = vpack.c.b16 %v2107, %v2103
        %2172 = vmatpush.bf16.msra.mxu0 %v2136
        %2173 = vmatpush.bf16.msra.mxu0 %v2132
        %2174 = vmatpush.bf16.msra.mxu0 %v2128
        %2175 = vmatpush.bf16.msra.mxu0 %v2124
        %2176 = vmatpush.bf16.msra.mxu0 %v2120
        %2177 = vmatpush.bf16.msra.mxu0 %v2116
        %2178 = vmatpush.bf16.msra.mxu0 %v2112
        %2179 = vmatpush.bf16.msra.mxu0 %v2108
        %2180 = vmatmul.bf16.gmra.mxu0 %v1967
        %v2181 = vpop.f32.mrf.mxu0
        %v2182 = vadd.f32 %v2004, %v2181
        %v2183 = vpop.f32.mrf.mxu0
        %v2184 = vadd.f32 %v2004, %v2183
        %2185 = vmatmul.bf16.gmra.mxu0 %v1968
        %v2186 = vpop.f32.mrf.mxu0
        %v2187 = vadd.f32 %v2004, %v2186
        %v2188 = vpop.f32.mrf.mxu0
        %v2189 = vadd.f32 %v2004, %v2188
        %2190 = vmatmul.bf16.gmra.mxu0 %v1969
        %v2191 = vpop.f32.mrf.mxu0
        %v2192 = vadd.f32 %v2004, %v2191
        %v2193 = vpop.f32.mrf.mxu0
        %v2194 = vadd.f32 %v2004, %v2193
        %2195 = vdwg.mxu0
        %2196 = vmatpush.bf16.msra.mxu0 %v2137
        %2197 = vmatpush.bf16.msra.mxu0 %v2133
        %2198 = vmatpush.bf16.msra.mxu0 %v2129
        %2199 = vmatpush.bf16.msra.mxu0 %v2125
        %2200 = vmatpush.bf16.msra.mxu0 %v2121
        %2201 = vmatpush.bf16.msra.mxu0 %v2117
        %2202 = vmatpush.bf16.msra.mxu0 %v2113
        %2203 = vmatpush.bf16.msra.mxu0 %v2109
        %2204 = vmatmul.bf16.gmra.mxu0 %v1967
        %v2205 = vpop.f32.mrf.mxu0
        %v2206 = vadd.f32 %v2005, %v2205
        %v2207 = vpop.f32.mrf.mxu0
        %v2208 = vadd.f32 %v2005, %v2207
        %2209 = vmatmul.bf16.gmra.mxu0 %v1968
        %v2210 = vpop.f32.mrf.mxu0
        %v2211 = vadd.f32 %v2005, %v2210
        %v2212 = vpop.f32.mrf.mxu0
        %v2213 = vadd.f32 %v2005, %v2212
        %2214 = vmatmul.bf16.gmra.mxu0 %v1969
        %v2215 = vpop.f32.mrf.mxu0
        %v2216 = vadd.f32 %v2005, %v2215
        %v2217 = vpop.f32.mrf.mxu0
        %v2218 = vadd.f32 %v2005, %v2217
        %2219 = vdwg.mxu0
        %2220 = vmatpush.bf16.msra.mxu0 %v2138
        %2221 = vmatpush.bf16.msra.mxu0 %v2134
        %2222 = vmatpush.bf16.msra.mxu0 %v2130
        %2223 = vmatpush.bf16.msra.mxu0 %v2126
        %2224 = vmatpush.bf16.msra.mxu0 %v2122
        %2225 = vmatpush.bf16.msra.mxu0 %v2118
        %2226 = vmatpush.bf16.msra.mxu0 %v2114
        %2227 = vmatpush.bf16.msra.mxu0 %v2110
        %2228 = vmatmul.bf16.gmra.mxu0 %v1967
        %v2229 = vpop.f32.mrf.mxu0
        %v2230 = vadd.f32 %v2006, %v2229
        %v2231 = vpop.f32.mrf.mxu0
        %v2232 = vadd.f32 %v2006, %v2231
        %2233 = vmatmul.bf16.gmra.mxu0 %v1968
        %v2234 = vpop.f32.mrf.mxu0
        %v2235 = vadd.f32 %v2006, %v2234
        %v2236 = vpop.f32.mrf.mxu0
        %v2237 = vadd.f32 %v2006, %v2236
        %2238 = vmatmul.bf16.gmra.mxu0 %v1969
        %v2239 = vpop.f32.mrf.mxu0
        %v2240 = vadd.f32 %v2006, %v2239
        %v2241 = vpop.f32.mrf.mxu0
        %v2242 = vadd.f32 %v2006, %v2241
        %2243 = vdwg.mxu0
        %2244 = vmatpush.bf16.msra.mxu0 %v2139
        %2245 = vmatpush.bf16.msra.mxu0 %v2135
        %2246 = vmatpush.bf16.msra.mxu0 %v2131
        %2247 = vmatpush.bf16.msra.mxu0 %v2127
        %2248 = vmatpush.bf16.msra.mxu0 %v2123
        %2249 = vmatpush.bf16.msra.mxu0 %v2119
        %2250 = vmatpush.bf16.msra.mxu0 %v2115
        %2251 = vmatpush.bf16.msra.mxu0 %v2111
        %2252 = vmatmul.bf16.gmra.mxu0 %v1967
        %v2253 = vpop.f32.mrf.mxu0
        %v2254 = vadd.f32 %v2007, %v2253
        %v2255 = vpop.f32.mrf.mxu0
        %v2256 = vadd.f32 %v2007, %v2255
        %2257 = vmatmul.bf16.gmra.mxu0 %v1968
        %v2258 = vpop.f32.mrf.mxu0
        %v2259 = vadd.f32 %v2007, %v2258
        %v2260 = vpop.f32.mrf.mxu0
        %v2261 = vadd.f32 %v2007, %v2260
        %2262 = vmatmul.bf16.gmra.mxu0 %v1969
        %v2263 = vpop.f32.mrf.mxu0
        %v2264 = vadd.f32 %v2007, %v2263
        %v2265 = vpop.f32.mrf.mxu0
        %v2266 = vadd.f32 %v2007, %v2265
        %2267 = vdwg.mxu0
        %v2268 = vmul.f32 %v2182, %v2182
        %v2269 = vmul.f32 %v2206, %v2206
        %v2270 = vmul.f32 %v2230, %v2230
        %v2271 = vmul.f32 %v2254, %v2254
        %v2272 = vmul.f32 %v2184, %v2184
        %v2273 = vmul.f32 %v2208, %v2208
        %v2274 = vmul.f32 %v2232, %v2232
        %v2275 = vmul.f32 %v2256, %v2256
        %v2276 = vmul.f32 %v2187, %v2187
        %v2277 = vmul.f32 %v2211, %v2211
        %v2278 = vmul.f32 %v2235, %v2235
        %v2279 = vmul.f32 %v2259, %v2259
        %v2280 = vmul.f32 %v2189, %v2189
        %v2281 = vmul.f32 %v2213, %v2213
        %v2282 = vmul.f32 %v2237, %v2237
        %v2283 = vmul.f32 %v2261, %v2261
        %v2284 = vmul.f32 %v2192, %v2192
        %v2285 = vmul.f32 %v2216, %v2216
        %v2286 = vmul.f32 %v2240, %v2240
        %v2287 = vmul.f32 %v2264, %v2264
        %v2288 = vmul.f32 %v2194, %v2194
        %v2289 = vmul.f32 %v2218, %v2218
        %v2290 = vmul.f32 %v2242, %v2242
        %v2291 = vmul.f32 %v2266, %v2266
        %v2292 = vmul.f32 %v2182, %v2268
        %v2293 = vmul.f32 %v2206, %v2269
        %v2294 = vmul.f32 %v2230, %v2270
        %v2295 = vmul.f32 %v2254, %v2271
        %v2296 = vmul.f32 %v2184, %v2272
        %v2297 = vmul.f32 %v2208, %v2273
        %v2298 = vmul.f32 %v2232, %v2274
        %v2299 = vmul.f32 %v2256, %v2275
        %v2300 = vmul.f32 %v2187, %v2276
        %v2301 = vmul.f32 %v2211, %v2277
        %v2302 = vmul.f32 %v2235, %v2278
        %v2303 = vmul.f32 %v2259, %v2279
        %v2304 = vmul.f32 %v2189, %v2280
        %v2305 = vmul.f32 %v2213, %v2281
        %v2306 = vmul.f32 %v2237, %v2282
        %v2307 = vmul.f32 %v2261, %v2283
        %v2308 = vmul.f32 %v2192, %v2284
        %v2309 = vmul.f32 %v2216, %v2285
        %v2310 = vmul.f32 %v2240, %v2286
        %v2311 = vmul.f32 %v2264, %v2287
        %v2312 = vmul.f32 %v2194, %v2288
        %v2313 = vmul.f32 %v2218, %v2289
        %v2314 = vmul.f32 %v2242, %v2290
        %v2315 = vmul.f32 %v2266, %v2291
        %v2316 = vmul.f32 %v2292, 0.044715
        %v2317 = vmul.f32 %v2293, 0.044715
        %v2318 = vmul.f32 %v2294, 0.044715
        %v2319 = vmul.f32 %v2295, 0.044715
        %v2320 = vmul.f32 %v2296, 0.044715
        %v2321 = vmul.f32 %v2297, 0.044715
        %v2322 = vmul.f32 %v2298, 0.044715
        %v2323 = vmul.f32 %v2299, 0.044715
        %v2324 = vmul.f32 %v2300, 0.044715
        %v2325 = vmul.f32 %v2301, 0.044715
        %v2326 = vmul.f32 %v2302, 0.044715
        %v2327 = vmul.f32 %v2303, 0.044715
        %v2328 = vmul.f32 %v2304, 0.044715
        %v2329 = vmul.f32 %v2305, 0.044715
        %v2330 = vmul.f32 %v2306, 0.044715
        %v2331 = vmul.f32 %v2307, 0.044715
        %v2332 = vmul.f32 %v2308, 0.044715
        %v2333 = vmul.f32 %v2309, 0.044715
        %v2334 = vmul.f32 %v2310, 0.044715
        %v2335 = vmul.f32 %v2311, 0.044715
        %v2336 = vmul.f32 %v2312, 0.044715
        %v2337 = vmul.f32 %v2313, 0.044715
        %v2338 = vmul.f32 %v2314, 0.044715
        %v2339 = vmul.f32 %v2315, 0.044715
        %v2340 = vadd.f32 %v2182, %v2316
        %v2341 = vadd.f32 %v2206, %v2317
        %v2342 = vadd.f32 %v2230, %v2318
        %v2343 = vadd.f32 %v2254, %v2319
        %v2344 = vadd.f32 %v2184, %v2320
        %v2345 = vadd.f32 %v2208, %v2321
        %v2346 = vadd.f32 %v2232, %v2322
        %v2347 = vadd.f32 %v2256, %v2323
        %v2348 = vadd.f32 %v2187, %v2324
        %v2349 = vadd.f32 %v2211, %v2325
        %v2350 = vadd.f32 %v2235, %v2326
        %v2351 = vadd.f32 %v2259, %v2327
        %v2352 = vadd.f32 %v2189, %v2328
        %v2353 = vadd.f32 %v2213, %v2329
        %v2354 = vadd.f32 %v2237, %v2330
        %v2355 = vadd.f32 %v2261, %v2331
        %v2356 = vadd.f32 %v2192, %v2332
        %v2357 = vadd.f32 %v2216, %v2333
        %v2358 = vadd.f32 %v2240, %v2334
        %v2359 = vadd.f32 %v2264, %v2335
        %v2360 = vadd.f32 %v2194, %v2336
        %v2361 = vadd.f32 %v2218, %v2337
        %v2362 = vadd.f32 %v2242, %v2338
        %v2363 = vadd.f32 %v2266, %v2339
        %v2364 = vmul.f32 %v2340, 0.7978846
        %v2365 = vmul.f32 %v2341, 0.7978846
        %v2366 = vmul.f32 %v2342, 0.7978846
        %v2367 = vmul.f32 %v2343, 0.7978846
        %v2368 = vmul.f32 %v2344, 0.7978846
        %v2369 = vmul.f32 %v2345, 0.7978846
        %v2370 = vmul.f32 %v2346, 0.7978846
        %v2371 = vmul.f32 %v2347, 0.7978846
        %v2372 = vmul.f32 %v2348, 0.7978846
        %v2373 = vmul.f32 %v2349, 0.7978846
        %v2374 = vmul.f32 %v2350, 0.7978846
        %v2375 = vmul.f32 %v2351, 0.7978846
        %v2376 = vmul.f32 %v2352, 0.7978846
        %v2377 = vmul.f32 %v2353, 0.7978846
        %v2378 = vmul.f32 %v2354, 0.7978846
        %v2379 = vmul.f32 %v2355, 0.7978846
        %v2380 = vmul.f32 %v2356, 0.7978846
        %v2381 = vmul.f32 %v2357, 0.7978846
        %v2382 = vmul.f32 %v2358, 0.7978846
        %v2383 = vmul.f32 %v2359, 0.7978846
        %v2384 = vmul.f32 %v2360, 0.7978846
        %v2385 = vmul.f32 %v2361, 0.7978846
        %v2386 = vmul.f32 %v2362, 0.7978846
        %v2387 = vmul.f32 %v2363, 0.7978846
        %v2388 = vtanh.pop %v2364
        %v2389 = vtanh.pop %v2365
        %v2390 = vtanh.pop %v2366
        %v2391 = vtanh.pop %v2367
        %v2392 = vtanh.pop %v2368
        %v2393 = vtanh.pop %v2369
        %v2394 = vtanh.pop %v2370
        %v2395 = vtanh.pop %v2371
        %v2396 = vtanh.pop %v2372
        %v2397 = vtanh.pop %v2373
        %v2398 = vtanh.pop %v2374
        %v2399 = vtanh.pop %v2375
        %v2400 = vtanh.pop %v2376
        %v2401 = vtanh.pop %v2377
        %v2402 = vtanh.pop %v2378
        %v2403 = vtanh.pop %v2379
        %v2404 = vtanh.pop %v2380
        %v2405 = vtanh.pop %v2381
        %v2406 = vtanh.pop %v2382
        %v2407 = vtanh.pop %v2383
        %v2408 = vtanh.pop %v2384
        %v2409 = vtanh.pop %v2385
        %v2410 = vtanh.pop %v2386
        %v2411 = vtanh.pop %v2387
        %v2412 = vadd.f32 %v2388, 1.0
        %v2413 = vadd.f32 %v2389, 1.0
        %v2414 = vadd.f32 %v2390, 1.0
        %v2415 = vadd.f32 %v2391, 1.0
        %v2416 = vadd.f32 %v2392, 1.0
        %v2417 = vadd.f32 %v2393, 1.0
        %v2418 = vadd.f32 %v2394, 1.0
        %v2419 = vadd.f32 %v2395, 1.0
        %v2420 = vadd.f32 %v2396, 1.0
        %v2421 = vadd.f32 %v2397, 1.0
        %v2422 = vadd.f32 %v2398, 1.0
        %v2423 = vadd.f32 %v2399, 1.0
        %v2424 = vadd.f32 %v2400, 1.0
        %v2425 = vadd.f32 %v2401, 1.0
        %v2426 = vadd.f32 %v2402, 1.0
        %v2427 = vadd.f32 %v2403, 1.0
        %v2428 = vadd.f32 %v2404, 1.0
        %v2429 = vadd.f32 %v2405, 1.0
        %v2430 = vadd.f32 %v2406, 1.0
        %v2431 = vadd.f32 %v2407, 1.0
        %v2432 = vadd.f32 %v2408, 1.0
        %v2433 = vadd.f32 %v2409, 1.0
        %v2434 = vadd.f32 %v2410, 1.0
        %v2435 = vadd.f32 %v2411, 1.0
        %v2436 = vmul.f32 %v2412, 0.5
        %v2437 = vmul.f32 %v2413, 0.5
        %v2438 = vmul.f32 %v2414, 0.5
        %v2439 = vmul.f32 %v2415, 0.5
        %v2440 = vmul.f32 %v2416, 0.5
        %v2441 = vmul.f32 %v2417, 0.5
        %v2442 = vmul.f32 %v2418, 0.5
        %v2443 = vmul.f32 %v2419, 0.5
        %v2444 = vmul.f32 %v2420, 0.5
        %v2445 = vmul.f32 %v2421, 0.5
        %v2446 = vmul.f32 %v2422, 0.5
        %v2447 = vmul.f32 %v2423, 0.5
        %v2448 = vmul.f32 %v2424, 0.5
        %v2449 = vmul.f32 %v2425, 0.5
        %v2450 = vmul.f32 %v2426, 0.5
        %v2451 = vmul.f32 %v2427, 0.5
        %v2452 = vmul.f32 %v2428, 0.5
        %v2453 = vmul.f32 %v2429, 0.5
        %v2454 = vmul.f32 %v2430, 0.5
        %v2455 = vmul.f32 %v2431, 0.5
        %v2456 = vmul.f32 %v2432, 0.5
        %v2457 = vmul.f32 %v2433, 0.5
        %v2458 = vmul.f32 %v2434, 0.5
        %v2459 = vmul.f32 %v2435, 0.5
        %v2460 = vmul.f32 %v2182, %v2436
        %v2461 = vmul.f32 %v2206, %v2437
        %v2462 = vmul.f32 %v2230, %v2438
        %v2463 = vmul.f32 %v2254, %v2439
        %v2464 = vmul.f32 %v2184, %v2440
        %v2465 = vmul.f32 %v2208, %v2441
        %v2466 = vmul.f32 %v2232, %v2442
        %v2467 = vmul.f32 %v2256, %v2443
        %v2468 = vmul.f32 %v2187, %v2444
        %v2469 = vmul.f32 %v2211, %v2445
        %v2470 = vmul.f32 %v2235, %v2446
        %v2471 = vmul.f32 %v2259, %v2447
        %v2472 = vmul.f32 %v2189, %v2448
        %v2473 = vmul.f32 %v2213, %v2449
        %v2474 = vmul.f32 %v2237, %v2450
        %v2475 = vmul.f32 %v2261, %v2451
        %v2476 = vmul.f32 %v2192, %v2452
        %v2477 = vmul.f32 %v2216, %v2453
        %v2478 = vmul.f32 %v2240, %v2454
        %v2479 = vmul.f32 %v2264, %v2455
        %v2480 = vmul.f32 %v2194, %v2456
        %v2481 = vmul.f32 %v2218, %v2457
        %v2482 = vmul.f32 %v2242, %v2458
        %v2483 = vmul.f32 %v2266, %v2459
        %v2484 = vpack.c.bf16 %v2464, %v2460
        %v2485 = vpack.c.bf16 %v2465, %v2461
        %v2486 = vpack.c.bf16 %v2466, %v2462
        %v2487 = vpack.c.bf16 %v2467, %v2463
        %v2488 = vpack.c.bf16 %v2472, %v2468
        %v2489 = vpack.c.bf16 %v2473, %v2469
        %v2490 = vpack.c.bf16 %v2474, %v2470
        %v2491 = vpack.c.bf16 %v2475, %v2471
        %v2492 = vpack.c.bf16 %v2480, %v2476
        %v2493 = vpack.c.bf16 %v2481, %v2477
        %v2494 = vpack.c.bf16 %v2482, %v2478
        %v2495 = vpack.c.bf16 %v2483, %v2479
        %v2496 = vld [vmem:[%s709] sm:$0xf]
        %v2497 = vld [vmem:[%s709 + $0x4] sm:$0xf]
        %v2498 = vld [vmem:[%s709 + $0x8] sm:$0xf]
        %v2499 = vld [vmem:[%s709 + $0xc] sm:$0xf]
        %v2500 = vld [vmem:[%s709 + $0x10] sm:$0xf]
        %v2501 = vld [vmem:[%s709 + $0x14] sm:$0xf]
        %v2502 = vld [vmem:[%s709 + $0x18] sm:$0xf]
        %v2503 = vld [vmem:[%s709 + $0x1c] sm:$0xf]
        %v2504 = vld [vmem:[%s709 + $0x20] sm:$0xf]
        %v2505 = vld [vmem:[%s709 + $0x24] sm:$0xf]
        %v2506 = vld [vmem:[%s709 + $0x28] sm:$0xf]
        %v2507 = vld [vmem:[%s709 + $0x2c] sm:$0xf]
        %v2508 = vld [vmem:[%s709 + $0x30] sm:$0xf]
        %v2509 = vld [vmem:[%s709 + $0x34] sm:$0xf]
        %v2510 = vld [vmem:[%s709 + $0x38] sm:$0xf]
        %v2511 = vld [vmem:[%s709 + $0x3c] sm:$0xf]
        %v2512 = vld [vmem:[%s709 + $0x40] sm:$0xf]
        %v2513 = vld [vmem:[%s709 + $0x44] sm:$0xf]
        %v2514 = vld [vmem:[%s709 + $0x48] sm:$0xf]
        %v2515 = vld [vmem:[%s709 + $0x4c] sm:$0xf]
        %v2516 = vld [vmem:[%s709 + $0x50] sm:$0xf]
        %v2517 = vld [vmem:[%s709 + $0x54] sm:$0xf]
        %v2518 = vld [vmem:[%s709 + $0x58] sm:$0xf]
        %v2519 = vld [vmem:[%s709 + $0x5c] sm:$0xf]
        %v2520 = vld [vmem:[%s709 + $0x60] sm:$0xf]
        %v2521 = vld [vmem:[%s709 + $0x64] sm:$0xf]
        %v2522 = vld [vmem:[%s709 + $0x68] sm:$0xf]
        %v2523 = vld [vmem:[%s709 + $0x6c] sm:$0xf]
        %v2524 = vld [vmem:[%s709 + $0x70] sm:$0xf]
        %v2525 = vld [vmem:[%s709 + $0x74] sm:$0xf]
        %v2526 = vld [vmem:[%s709 + $0x78] sm:$0xf]
        %v2527 = vld [vmem:[%s709 + $0x7c] sm:$0xf]
        %v2528 = vld [vmem:[%s709 + $0x80] sm:$0xf]
        %v2529 = vld [vmem:[%s709 + $0x84] sm:$0xf]
        %v2530 = vld [vmem:[%s709 + $0x88] sm:$0xf]
        %v2531 = vld [vmem:[%s709 + $0x8c] sm:$0xf]
        %v2532 = vld [vmem:[%s709 + $0x90] sm:$0xf]
        %v2533 = vld [vmem:[%s709 + $0x94] sm:$0xf]
        %v2534 = vld [vmem:[%s709 + $0x98] sm:$0xf]
        %v2535 = vld [vmem:[%s709 + $0x9c] sm:$0xf]
        %v2536 = vld [vmem:[%s709 + $0xa0] sm:$0xf]
        %v2537 = vld [vmem:[%s709 + $0xa4] sm:$0xf]
        %v2538 = vld [vmem:[%s709 + $0xa8] sm:$0xf]
        %v2539 = vld [vmem:[%s709 + $0xac] sm:$0xf]
        %v2540 = vld [vmem:[%s709 + $0xb0] sm:$0xf]
        %v2541 = vld [vmem:[%s709 + $0xb4] sm:$0xf]
        %v2542 = vld [vmem:[%s709 + $0xb8] sm:$0xf]
        %v2543 = vld [vmem:[%s709 + $0xbc] sm:$0xf]
        %v2544 = vld [vmem:[%s709 + $0xc0] sm:$0xf]
        %v2545 = vld [vmem:[%s709 + $0xc4] sm:$0xf]
        %v2546 = vld [vmem:[%s709 + $0xc8] sm:$0xf]
        %v2547 = vld [vmem:[%s709 + $0xcc] sm:$0xf]
        %v2548 = vld [vmem:[%s709 + $0xd0] sm:$0xf]
        %v2549 = vld [vmem:[%s709 + $0xd4] sm:$0xf]
        %v2550 = vld [vmem:[%s709 + $0xd8] sm:$0xf]
        %v2551 = vld [vmem:[%s709 + $0xdc] sm:$0xf]
        %v2552 = vld [vmem:[%s709 + $0xe0] sm:$0xf]
        %v2553 = vld [vmem:[%s709 + $0xe4] sm:$0xf]
        %v2554 = vld [vmem:[%s709 + $0xe8] sm:$0xf]
        %v2555 = vld [vmem:[%s709 + $0xec] sm:$0xf]
        %v2556 = vld [vmem:[%s709 + $0xf0] sm:$0xf]
        %v2557 = vld [vmem:[%s709 + $0xf4] sm:$0xf]
        %v2558 = vld [vmem:[%s709 + $0xf8] sm:$0xf]
        %v2559 = vld [vmem:[%s709 + $0xfc] sm:$0xf]
        %v2624 = vunpack.c.l.b16 %v2496
        %v2625 = vunpack.c.l.b16 %v2497
        %v2626 = vunpack.c.l.b16 %v2498
        %v2627 = vunpack.c.l.b16 %v2499
        %v2628 = vunpack.c.l.b16 %v2500
        %v2629 = vunpack.c.l.b16 %v2501
        %v2630 = vunpack.c.l.b16 %v2502
        %v2631 = vunpack.c.l.b16 %v2503
        %v2632 = vunpack.c.l.b16 %v2504
        %v2633 = vunpack.c.l.b16 %v2505
        %v2634 = vunpack.c.l.b16 %v2506
        %v2635 = vunpack.c.l.b16 %v2507
        %v2636 = vunpack.c.l.b16 %v2508
        %v2637 = vunpack.c.l.b16 %v2509
        %v2638 = vunpack.c.l.b16 %v2510
        %v2639 = vunpack.c.l.b16 %v2511
        %v2640 = vunpack.c.l.b16 %v2512
        %v2641 = vunpack.c.l.b16 %v2513
        %v2642 = vunpack.c.l.b16 %v2514
        %v2643 = vunpack.c.l.b16 %v2515
        %v2644 = vunpack.c.l.b16 %v2516
        %v2645 = vunpack.c.l.b16 %v2517
        %v2646 = vunpack.c.l.b16 %v2518
        %v2647 = vunpack.c.l.b16 %v2519
        %v2648 = vunpack.c.l.b16 %v2520
        %v2649 = vunpack.c.l.b16 %v2521
        %v2650 = vunpack.c.l.b16 %v2522
        %v2651 = vunpack.c.l.b16 %v2523
        %v2652 = vunpack.c.l.b16 %v2524
        %v2653 = vunpack.c.l.b16 %v2525
        %v2654 = vunpack.c.l.b16 %v2526
        %v2655 = vunpack.c.l.b16 %v2527
        %v2656 = vunpack.c.l.b16 %v2528
        %v2657 = vunpack.c.l.b16 %v2529
        %v2658 = vunpack.c.l.b16 %v2530
        %v2659 = vunpack.c.l.b16 %v2531
        %v2660 = vunpack.c.l.b16 %v2532
        %v2661 = vunpack.c.l.b16 %v2533
        %v2662 = vunpack.c.l.b16 %v2534
        %v2663 = vunpack.c.l.b16 %v2535
        %v2664 = vunpack.c.l.b16 %v2536
        %v2665 = vunpack.c.l.b16 %v2537
        %v2666 = vunpack.c.l.b16 %v2538
        %v2667 = vunpack.c.l.b16 %v2539
        %v2668 = vunpack.c.l.b16 %v2540
        %v2669 = vunpack.c.l.b16 %v2541
        %v2670 = vunpack.c.l.b16 %v2542
        %v2671 = vunpack.c.l.b16 %v2543
        %v2672 = vunpack.c.l.b16 %v2544
        %v2673 = vunpack.c.l.b16 %v2545
        %v2674 = vunpack.c.l.b16 %v2546
        %v2675 = vunpack.c.l.b16 %v2547
        %v2676 = vunpack.c.l.b16 %v2548
        %v2677 = vunpack.c.l.b16 %v2549
        %v2678 = vunpack.c.l.b16 %v2550
        %v2679 = vunpack.c.l.b16 %v2551
        %v2680 = vunpack.c.l.b16 %v2552
        %v2681 = vunpack.c.l.b16 %v2553
        %v2682 = vunpack.c.l.b16 %v2554
        %v2683 = vunpack.c.l.b16 %v2555
        %v2684 = vunpack.c.l.b16 %v2556
        %v2685 = vunpack.c.l.b16 %v2557
        %v2686 = vunpack.c.l.b16 %v2558
        %v2687 = vunpack.c.l.b16 %v2559
        %v2688 = vpack.c.b16 %v2625, %v2624
        %v2689 = vpack.c.b16 %v2627, %v2626
        %v2690 = vpack.c.b16 %v2629, %v2628
        %v2691 = vpack.c.b16 %v2631, %v2630
        %v2692 = vpack.c.b16 %v2633, %v2632
        %v2693 = vpack.c.b16 %v2635, %v2634
        %v2694 = vpack.c.b16 %v2637, %v2636
        %v2695 = vpack.c.b16 %v2639, %v2638
        %v2696 = vpack.c.b16 %v2641, %v2640
        %v2697 = vpack.c.b16 %v2643, %v2642
        %v2698 = vpack.c.b16 %v2645, %v2644
        %v2699 = vpack.c.b16 %v2647, %v2646
        %v2700 = vpack.c.b16 %v2649, %v2648
        %v2701 = vpack.c.b16 %v2651, %v2650
        %v2702 = vpack.c.b16 %v2653, %v2652
        %v2703 = vpack.c.b16 %v2655, %v2654
        %v2704 = vpack.c.b16 %v2657, %v2656
        %v2705 = vpack.c.b16 %v2659, %v2658
        %v2706 = vpack.c.b16 %v2661, %v2660
        %v2707 = vpack.c.b16 %v2663, %v2662
        %v2708 = vpack.c.b16 %v2665, %v2664
        %v2709 = vpack.c.b16 %v2667, %v2666
        %v2710 = vpack.c.b16 %v2669, %v2668
        %v2711 = vpack.c.b16 %v2671, %v2670
        %v2712 = vpack.c.b16 %v2673, %v2672
        %v2713 = vpack.c.b16 %v2675, %v2674
        %v2714 = vpack.c.b16 %v2677, %v2676
        %v2715 = vpack.c.b16 %v2679, %v2678
        %v2716 = vpack.c.b16 %v2681, %v2680
        %v2717 = vpack.c.b16 %v2683, %v2682
        %v2718 = vpack.c.b16 %v2685, %v2684
        %v2719 = vpack.c.b16 %v2687, %v2686
        %2752 = vmatpush.bf16.msra.mxu0 %v2695
        %2753 = vmatpush.bf16.msra.mxu0 %v2694
        %2754 = vmatpush.bf16.msra.mxu0 %v2693
        %2755 = vmatpush.bf16.msra.mxu0 %v2692
        %2756 = vmatpush.bf16.msra.mxu0 %v2691
        %2757 = vmatpush.bf16.msra.mxu0 %v2690
        %2758 = vmatpush.bf16.msra.mxu0 %v2689
        %2759 = vmatpush.bf16.msra.mxu0 %v2688
        %2760 = vmatmul.bf16.gmra.mxu0 %v2484
        %v2761 = vpop.f32.mrf.mxu0
        %v2762 = vadd.f32 0.0, %v2761
        %v2763 = vpop.f32.mrf.mxu0
        %v2764 = vadd.f32 0.0, %v2763
        %2765 = vmatmul.bf16.gmra.mxu0 %v2488
        %v2766 = vpop.f32.mrf.mxu0
        %v2767 = vadd.f32 0.0, %v2766
        %v2768 = vpop.f32.mrf.mxu0
        %v2769 = vadd.f32 0.0, %v2768
        %2770 = vmatmul.bf16.gmra.mxu0 %v2492
        %v2771 = vpop.f32.mrf.mxu0
        %v2772 = vadd.f32 0.0, %v2771
        %v2773 = vpop.f32.mrf.mxu0
        %v2774 = vadd.f32 0.0, %v2773
        %2775 = vdwg.mxu0
        %2776 = vmatpush.bf16.msra.mxu0 %v2703
        %2777 = vmatpush.bf16.msra.mxu0 %v2702
        %2778 = vmatpush.bf16.msra.mxu0 %v2701
        %2779 = vmatpush.bf16.msra.mxu0 %v2700
        %2780 = vmatpush.bf16.msra.mxu0 %v2699
        %2781 = vmatpush.bf16.msra.mxu0 %v2698
        %2782 = vmatpush.bf16.msra.mxu0 %v2697
        %2783 = vmatpush.bf16.msra.mxu0 %v2696
        %2784 = vmatmul.bf16.gmra.mxu0 %v2485
        %v2785 = vpop.f32.mrf.mxu0
        %v2786 = vadd.f32 %v2762, %v2785
        %v2787 = vpop.f32.mrf.mxu0
        %v2788 = vadd.f32 %v2764, %v2787
        %2789 = vmatmul.bf16.gmra.mxu0 %v2489
        %v2790 = vpop.f32.mrf.mxu0
        %v2791 = vadd.f32 %v2767, %v2790
        %v2792 = vpop.f32.mrf.mxu0
        %v2793 = vadd.f32 %v2769, %v2792
        %2794 = vmatmul.bf16.gmra.mxu0 %v2493
        %v2795 = vpop.f32.mrf.mxu0
        %v2796 = vadd.f32 %v2772, %v2795
        %v2797 = vpop.f32.mrf.mxu0
        %v2798 = vadd.f32 %v2774, %v2797
        %2799 = vdwg.mxu0
        %2800 = vmatpush.bf16.msra.mxu0 %v2711
        %2801 = vmatpush.bf16.msra.mxu0 %v2710
        %2802 = vmatpush.bf16.msra.mxu0 %v2709
        %2803 = vmatpush.bf16.msra.mxu0 %v2708
        %2804 = vmatpush.bf16.msra.mxu0 %v2707
        %2805 = vmatpush.bf16.msra.mxu0 %v2706
        %2806 = vmatpush.bf16.msra.mxu0 %v2705
        %2807 = vmatpush.bf16.msra.mxu0 %v2704
        %2808 = vmatmul.bf16.gmra.mxu0 %v2486
        %v2809 = vpop.f32.mrf.mxu0
        %v2810 = vadd.f32 %v2786, %v2809
        %v2811 = vpop.f32.mrf.mxu0
        %v2812 = vadd.f32 %v2788, %v2811
        %2813 = vmatmul.bf16.gmra.mxu0 %v2490
        %v2814 = vpop.f32.mrf.mxu0
        %v2815 = vadd.f32 %v2791, %v2814
        %v2816 = vpop.f32.mrf.mxu0
        %v2817 = vadd.f32 %v2793, %v2816
        %2818 = vmatmul.bf16.gmra.mxu0 %v2494
        %v2819 = vpop.f32.mrf.mxu0
        %v2820 = vadd.f32 %v2796, %v2819
        %v2821 = vpop.f32.mrf.mxu0
        %v2822 = vadd.f32 %v2798, %v2821
        %2823 = vdwg.mxu0
        %2824 = vmatpush.bf16.msra.mxu0 %v2719
        %2825 = vmatpush.bf16.msra.mxu0 %v2718
        %2826 = vmatpush.bf16.msra.mxu0 %v2717
        %2827 = vmatpush.bf16.msra.mxu0 %v2716
        %2828 = vmatpush.bf16.msra.mxu0 %v2715
        %2829 = vmatpush.bf16.msra.mxu0 %v2714
        %2830 = vmatpush.bf16.msra.mxu0 %v2713
        %2831 = vmatpush.bf16.msra.mxu0 %v2712
        %2832 = vmatmul.bf16.gmra.mxu0 %v2487
        %v2833 = vpop.f32.mrf.mxu0
        %v2834 = vadd.f32 %v2810, %v2833
        %v2835 = vpop.f32.mrf.mxu0
        %v2836 = vadd.f32 %v2812, %v2835
        %2837 = vmatmul.bf16.gmra.mxu0 %v2491
        %v2838 = vpop.f32.mrf.mxu0
        %v2839 = vadd.f32 %v2815, %v2838
        %v2840 = vpop.f32.mrf.mxu0
        %v2841 = vadd.f32 %v2817, %v2840
        %2842 = vmatmul.bf16.gmra.mxu0 %v2495
        %v2843 = vpop.f32.mrf.mxu0
        %v2844 = vadd.f32 %v2820, %v2843
        %v2845 = vpop.f32.mrf.mxu0
        %v2846 = vadd.f32 %v2822, %v2845
        %2847 = vdwg.mxu0
        %v2848 = vadd.f32 %v1821, %v2834
        %v2849 = vadd.f32 %v1822, %v2836
        %v2850 = vadd.f32 %v1823, %v2839
        %v2851 = vadd.f32 %v1824, %v2841
        %v2852 = vadd.f32 %v1825, %v2844
        %v2853 = vadd.f32 %v1826, %v2846
        %v2854 = vld [vmem:[%s712] sm:$0x1]
        %v2856 = vperm.slane %v2854, 0
        %v2858 = vadd.f32 %v2848, %v2856
        %v2859 = vadd.f32 %v2849, %v2856
        %v2860 = vadd.f32 %v2850, %v2856
        %v2861 = vadd.f32 %v2851, %v2856
        %v2862 = vadd.f32 %v2852, %v2856
        %v2863 = vadd.f32 %v2853, %v2856
        %2864 = vst [vmem:[#allocation2] sm:$0xff] %v2858
        %2865 = vst [vmem:[#allocation2 + $0x8] sm:$0xff] %v2859
        %2866 = vst [vmem:[#allocation2 + $0x10] sm:$0xff] %v2860
        %2867 = vst [vmem:[#allocation2 + $0x18] sm:$0xff] %v2861
        %2868 = vst [vmem:[#allocation2 + $0x20] sm:$0xff] %v2862
        %2869 = vst [vmem:[#allocation2 + $0x28] sm:$0xff] %v2863
        %p2870 = scmp.eq.s32.totalorder %s29, 1
        // Predicated region
        $region93: #{ibot_forward.3} parent=87 // pred_check
          %p2871 = pneg %p2870
        $region94: #{ibot_forward.3} parent=87 // pred_check_branch
          %2873 = sbr.rel (%p2871) target = $region96
        $region95: #{ibot_forward.3} parent=87 // pred_region
          %v2875 = vrot.slane %v2861, 7
          %vm2877 = vcmask 1040384
          %v2878 = vsel %vm2877, %v2858, %v2875
          %v2879 = vld [vmem:[%s13] sm:$0x1]
          %v2880 = vld [vmem:[%s14] sm:$0x1]
          %vm2881 = vcmask 1041408
          %v2882 = vsel %vm2881, %v2878, 0.0
          %2883 = vadd.xlane.f32.xlu0 %v2882
          %v2884 = vpop.xlane.xlu0 %2883
          %v2885 = vmul.f32 %v2884, %v766
          %v2886 = vsub.f32 %v2878, %v2885
          %v2887 = vmul.f32 %v2886, %v2886
          %v2888 = vsel %vm2881, %v2887, 0.0
          %2889 = vadd.xlane.f32.xlu0 %v2888
          %v2890 = vpop.xlane.xlu0 %2889
          %v2891 = vmul.f32 %v2890, %v766
          %v2892 = vadd.f32 %v2891, 1e-06
          %v2893 = vrsqrt.pop %v2892
          %v2894 = vmul.f32 %v2893, %v2892
          %v2895 = vmul.f32 %v2894, %v2893
          %v2896 = vmul.f32 0.5, %v2895
          %v2897 = vsub.f32 1.5, %v2896
          %v2898 = vmul.f32 %v2893, %v2897
          %vm2899 = vweird.f32 %v2892
          %vm2900 = vweird.f32 %v2893
          %vm2901 = vmor %vm2899, %vm2900
          %v2902 = vsel %vm2901, %v2893, %v2898
          %v2903 = vmul.f32 %v2886, %v2902
          %v2905 = vperm.slane %v2879, 0
          %v2907 = vmul.f32 %v2903, %v2905
          %v2909 = vperm.slane %v2880, 0
          %v2911 = vadd.f32 %v2907, %v2909
          %v2912 = vpack.c.bf16 %v2911, %v2911
          %v2913 = vld [vmem:[%s15] sm:$0xf]
          %v2914 = vld [vmem:[%s15 + $0x4] sm:$0xf]
          %v2915 = vld [vmem:[%s15 + $0x8] sm:$0xf]
          %v2916 = vld [vmem:[%s15 + $0xc] sm:$0xf]
          %v2917 = vld [vmem:[%s15 + $0x10] sm:$0xf]
          %v2918 = vld [vmem:[%s15 + $0x14] sm:$0xf]
          %v2919 = vld [vmem:[%s15 + $0x18] sm:$0xf]
          %v2920 = vld [vmem:[%s15 + $0x1c] sm:$0xf]
          %v2921 = vld [vmem:[%s15 + $0x20] sm:$0xf]
          %v2922 = vld [vmem:[%s15 + $0x24] sm:$0xf]
          %v2923 = vld [vmem:[%s15 + $0x28] sm:$0xf]
          %v2924 = vld [vmem:[%s15 + $0x2c] sm:$0xf]
          %v2925 = vld [vmem:[%s15 + $0x30] sm:$0xf]
          %v2926 = vld [vmem:[%s15 + $0x34] sm:$0xf]
          %v2927 = vld [vmem:[%s15 + $0x38] sm:$0xf]
          %v2928 = vld [vmem:[%s15 + $0x3c] sm:$0xf]
          %v2929 = vld [vmem:[%s16] sm:$0x1]
          %v2931 = vperm.slane %v2929, 0
          %v2949 = vunpack.c.l.b16 %v2913
          %v2950 = vunpack.c.l.b16 %v2914
          %v2951 = vunpack.c.l.b16 %v2915
          %v2952 = vunpack.c.l.b16 %v2916
          %v2953 = vunpack.c.l.b16 %v2917
          %v2954 = vunpack.c.l.b16 %v2918
          %v2955 = vunpack.c.l.b16 %v2919
          %v2956 = vunpack.c.l.b16 %v2920
          %v2957 = vunpack.c.l.b16 %v2921
          %v2958 = vunpack.c.l.b16 %v2922
          %v2959 = vunpack.c.l.b16 %v2923
          %v2960 = vunpack.c.l.b16 %v2924
          %v2961 = vunpack.c.l.b16 %v2925
          %v2962 = vunpack.c.l.b16 %v2926
          %v2963 = vunpack.c.l.b16 %v2927
          %v2964 = vunpack.c.l.b16 %v2928
          %v2965 = vpack.c.b16 %v2950, %v2949
          %v2966 = vpack.c.b16 %v2952, %v2951
          %v2967 = vpack.c.b16 %v2954, %v2953
          %v2968 = vpack.c.b16 %v2956, %v2955
          %v2969 = vpack.c.b16 %v2958, %v2957
          %v2970 = vpack.c.b16 %v2960, %v2959
          %v2971 = vpack.c.b16 %v2962, %v2961
          %v2972 = vpack.c.b16 %v2964, %v2963
          %2981 = vmatpush.bf16.msra.mxu0 %v2972
          %2982 = vmatpush.bf16.msra.mxu0 %v2971
          %2983 = vmatpush.bf16.msra.mxu0 %v2970
          %2984 = vmatpush.bf16.msra.mxu0 %v2969
          %2985 = vmatpush.bf16.msra.mxu0 %v2968
          %2986 = vmatpush.bf16.msra.mxu0 %v2967
          %2987 = vmatpush.bf16.msra.mxu0 %v2966
          %2988 = vmatpush.bf16.msra.mxu0 %v2965
          %2989 = vmatmul.bf16.gmra.mxu0 %v2912
          %v2990 = vpop.f32.mrf.mxu0
          %v2991 = vadd.f32 %v2931, %v2990
          %v2992 = vpop.f32.mrf.mxu0
          %2993 = vdwg.mxu0
          %2994 = vst [vmem:[#allocation4] sm:$0x3] %v2991
        $region96: #{ibot_forward.3} parent=87 // pred_fallthru
          _
        // Predicated region
        $region97: #{ibot_forward.3} parent=87 // pred_check
          %p2995 = pneg %p459
        $region98: #{ibot_forward.3} parent=87 // pred_check_branch
          %2997 = sbr.rel (%p2995) target = $region100
        $region99: #{ibot_forward.3} parent=87 // pred_region
          %2999 = vsyncadd [#allocation5], 0
          %s3001 = sshll.u32 [#allocation4], 4
          %s3002 = int_to_ptr.vmem [resolvable:$true] %s3001
          %s3003 = sshll.u32 %s17, 4
          %s3004 = int_to_ptr.hbm [resolvable:$true] %s3003
          %3006 = dma.vmem_to_hbm [thread:$0]  %s3002, 32, %s3004, [#allocation5]
        $region100: #{ibot_forward.3} parent=87 // pred_fallthru
          _
        // Predicated region
        $region101: #{ibot_forward.3} parent=87 // pred_check
          %p3007 = pneg %p459
        $region102: #{ibot_forward.3} parent=87 // pred_check_branch
          %3009 = sbr.rel (%p3007) target = $region104
        $region103: #{ibot_forward.3} parent=87 // pred_region
          %3011 = dma.done [#allocation5], 32
        $region104: #{ibot_forward.3} parent=87 // pred_fallthru
          _
      $region88: #{ibot_forward.3} parent=5 // pred_fallthru
        _
      %p3012 = scmp.le.s32.totalorder 2, %s24
      // Predicated region
      $region105: #{ibot_forward.3} parent=5 // pred_check
        %p3013 = pneg %p3012
      $region106: #{ibot_forward.3} parent=5 // pred_check_branch
        %3015 = sbr.rel (%p3013) target = $region108
      $region107: #{ibot_forward.3} parent=5 // pred_region
        %s3016 = ssub.s32 %s24, 2
      $region108: #{ibot_forward.3} parent=5 // pred_fallthru
        _
    $region6: #{ibot_forward.3} parent=1 // loop_footer
      %s28 = sadd.s32 1, %s24
    $region7: #{ibot_forward.3} parent=1 // loop_footer_branch
      %23 = sbr.rel target = $region3
    $region8: #{ibot_forward.3} parent=1 // loop_exit
      _
    %3017 = vsyncpa [#allocation5], 1
    %s3018 = scalar_lea.sflag [#allocation5], 1
    %3019 = vsyncpa %s3018, 1

</llo_original>
